<compile_context>
chip_gen: v5e
topology: v5e:2x2
jax: 0.10.0
libtpu: 0.0.40
codegen_flags: <defaults>
</compile_context>

<pallas_src>
import functools

import numpy as np
import jax
import jax.numpy as jnp
from jax.experimental import pallas as pl
from jax.experimental.pallas import tpu as pltpu


# ----------------------------- activations ---------------------------------

def _silu(y):
    return y * jax.nn.sigmoid(y)


def _gelu_exact(y):
    # PyTorch nn.GELU() default (approximate='none')
    return 0.5 * y * (1.0 + jax.lax.erf(y * (1.0 / np.sqrt(2.0))))


# --------------------- stage 1: Conv1x1 + Conv3x3 (fused) -------------------

def _stage1_kernel(xp_ref, wcv_ref, scv_ref, bcv_ref,
                   w33_ref, s33_ref, b33_ref,
                   y_ref, c_ref, ye_ref, *, H, W):
    """One batch element per grid step.

    xp_ref : (1, H+2, W+2, Cin)  zero-padded input (pad=1), bf16
    wcv_ref: (Cin, dim)          1x1 conv weight, bf16
    scv/bcv: (1, dim)            folded BN affine, f32
    w33_ref: (9, dim, dim//2)    3x3 conv weight (taps flattened), bf16
    s33/b33: (1, dim//2)         folded BN affine, f32
    y_ref  : (1, H, W, dim)      output (residual for stage 2), bf16
    c_ref  : (1, H, W, dim//2)   output (branch input), bf16
    ye_ref : (H+2, W+2, dim)     VMEM scratch holding the padded SiLU(BN(1x1))
    """
    Hp, Wp = H + 2, W + 2
    Cin = xp_ref.shape[-1]
    dim = y_ref.shape[-1]
    half = c_ref.shape[-1]

    # ---- Conv(in, dim, 1) + BN + SiLU, evaluated on the 1-px padded extent ----
    xe = xp_ref[0].reshape(Hp * Wp, Cin)
    ye = jnp.dot(xe, wcv_ref[...], preferred_element_type=jnp.float32)
    ye = _silu(ye * scv_ref[0] + bcv_ref[0]).reshape(Hp, Wp, dim)

    # zero the 1-px halo ring so the following 3x3 conv sees true zero padding
    row = jax.lax.broadcasted_iota(jnp.int32, (Hp, Wp, 1), 0)
    col = jax.lax.broadcasted_iota(jnp.int32, (Hp, Wp, 1), 1)
    inside = (row >= 1) & (row <= H) & (col >= 1) & (col <= W)
    ye_ref[...] = jnp.where(inside, ye, 0.0)

    # residual output = interior of the padded 1x1-conv result (exact on interior)
    y_ref[0] = ye_ref[1:1 + H, 1:1 + W, :].astype(y_ref.dtype)

    # ---- Conv(dim, dim//2, 3) + BN + SiLU on the VMEM-resident activation ----
    acc = jnp.zeros((H * W, half), jnp.float32)
    for ky in range(3):
        for kx in range(3):
            patch = ye_ref[ky:ky + H, kx:kx + W, :].reshape(H * W, dim)
            acc += jnp.dot(patch, w33_ref[ky * 3 + kx],
                           preferred_element_type=jnp.float32)
    c = _silu(acc * s33_ref[0] + b33_ref[0])
    c_ref[0] = c.reshape(H, W, half).astype(c_ref.dtype)


def _stage1_call(xp, wcv, scv, bcv, w33, s33, b33, *, H, W, dim, half):
    N = xp.shape[0]
    Hp, Wp = H + 2, W + 2
    Cin = xp.shape[-1]

    flops = 2 * N * (Hp * Wp * Cin * dim + H * W * 9 * dim * half)
    transc = N * (Hp * Wp * dim + H * W * half)
    bytes_acc = (xp.size * 2 + wcv.size * 2 + w33.size * 2
                 + N * H * W * (dim + half) * 2
                 + (scv.size + bcv.size + s33.size + b33.size) * 4)

    return pl.pallas_call(
        functools.partial(_stage1_kernel, H=H, W=W),
        out_shape=(jax.ShapeDtypeStruct((N, H, W, dim), jnp.bfloat16),
                   jax.ShapeDtypeStruct((N, H, W, half), jnp.bfloat16)),
        grid=(N,),
        in_specs=[
            pl.BlockSpec((1, Hp, Wp, Cin), lambda n: (n, 0, 0, 0)),
            pl.BlockSpec((Cin, dim), lambda n: (0, 0)),
            pl.BlockSpec((1, dim), lambda n: (0, 0)),
            pl.BlockSpec((1, dim), lambda n: (0, 0)),
            pl.BlockSpec((9, dim, half), lambda n: (0, 0, 0)),
            pl.BlockSpec((1, half), lambda n: (0, 0)),
            pl.BlockSpec((1, half), lambda n: (0, 0)),
        ],
        out_specs=(pl.BlockSpec((1, H, W, dim), lambda n: (n, 0, 0, 0)),
                   pl.BlockSpec((1, H, W, half), lambda n: (n, 0, 0, 0))),
        scratch_shapes=[pltpu.VMEM((Hp, Wp, dim), jnp.float32)],
        compiler_params=pltpu.CompilerParams(
            dimension_semantics=("parallel",),
            vmem_limit_bytes=32 * 1024 * 1024),
        cost_estimate=pl.CostEstimate(flops=flops, transcendentals=transc,
                                      bytes_accessed=bytes_acc),
    )(xp, wcv, scv, bcv, w33, s33, b33)


# --- stage 2: 3 dilated branches + 1x1 merge + residual + BN + GELU (fused) --

def _stage2_kernel(cp_ref, y_ref,
                   wd1_ref, sd1_ref, bd1_ref,
                   wd3_ref, sd3_ref, bd3_ref,
                   wd5_ref, sd5_ref, bd5_ref,
                   wc1_ref, wc2_ref, wc3_ref, sc_ref, bc_ref,
                   sbn_ref, bbn_ref, o_ref, *, H, W):
    """One batch element per grid step.

    cp_ref : (1, H+10, W+10, dim//2)  `c` zero-padded ONCE with pad=5, bf16
    y_ref  : (1, H, W, dim)           residual, bf16
    wd{1,3,5}: (9, dim//2, {dim,dim//2,dim//2}) dilated 3x3 weights, bf16
    wc{1,2,3}: row-slices of the (2*dim, dim) 1x1 merge weight, bf16
    s*/b*  : folded BN affines (f32); sbn/bbn = the final BatchNorm2d
    o_ref  : (1, H, W, dim) f32
    """
    half = cp_ref.shape[-1]
    dim = o_ref.shape[-1]

    def dilated_branch(w_ref, s_ref, b_ref, d):
        cout = w_ref.shape[-1]
        off = 5 - d                       # pad=5 buffer, branch needs pad=d
        acc = jnp.zeros((H * W, cout), jnp.float32)
        for ky in range(3):
            for kx in range(3):
                patch = cp_ref[0,
                               off + ky * d: off + ky * d + H,
                               off + kx * d: off + kx * d + W, :]
                acc += jnp.dot(patch.reshape(H * W, half), w_ref[ky * 3 + kx],
                               preferred_element_type=jnp.float32)
        # kept in f32: x1/x2/x3 never touch HBM, no reason to round them
        return _silu(acc * s_ref[0] + b_ref[0])

    x1 = dilated_branch(wd1_ref, sd1_ref, bd1_ref, 1)   # (H*W, dim)
    x2 = dilated_branch(wd3_ref, sd3_ref, bd3_ref, 3)   # (H*W, dim//2)
    x3 = dilated_branch(wd5_ref, sd5_ref, bd5_ref, 5)   # (H*W, dim//2)

    # conv_1x1 over the (virtual) channel-concat [x1, x2, x3]
    acc = jnp.dot(x1, wc1_ref[...], preferred_element_type=jnp.float32)
    acc += jnp.dot(x2, wc2_ref[...], preferred_element_type=jnp.float32)
    acc += jnp.dot(x3, wc3_ref[...], preferred_element_type=jnp.float32)
    z = _silu(acc * sc_ref[0] + bc_ref[0])
    z = z + y_ref[0].reshape(H * W, dim).astype(jnp.float32)   # "+ x" residual
    z = _gelu_exact(z * sbn_ref[0] + bbn_ref[0])               # final BN + GELU
    o_ref[0] = z.reshape(H, W, dim).astype(o_ref.dtype)


def _stage2_call(cp, y, wd1, sd1, bd1, wd3, sd3, bd3, wd5, sd5, bd5,
                 wc1, wc2, wc3, sc, bc, sbn, bbn, *, H, W, dim, half):
    N = cp.shape[0]
    Hc, Wc = H + 10, W + 10

    flops = 2 * N * H * W * (9 * half * dim + 2 * 9 * half * half
                             + dim * dim + 2 * half * dim)
    transc = N * H * W * (3 * dim + 2 * half)
    bytes_acc = (cp.size * 2 + y.size * 2 + N * H * W * dim * 4
                 + (wd1.size + wd3.size + wd5.size
                    + wc1.size + wc2.size + wc3.size) * 2)

    def vec_spec(ch):
        return pl.BlockSpec((1, ch), lambda n: (0, 0))

    in_specs = [
        pl.BlockSpec((1, Hc, Wc, half), lambda n: (n, 0, 0, 0)),   # cp
        pl.BlockSpec((1, H, W, dim), lambda n: (n, 0, 0, 0)),      # y (residual)
        pl.BlockSpec((9, half, dim), lambda n: (0, 0, 0)),         # wd1
        vec_spec(dim), vec_spec(dim),                              # sd1, bd1
        pl.BlockSpec((9, half, half), lambda n: (0, 0, 0)),        # wd3
        vec_spec(half), vec_spec(half),                            # sd3, bd3
        pl.BlockSpec((9, half, half), lambda n: (0, 0, 0)),        # wd5
        vec_spec(half), vec_spec(half),                            # sd5, bd5
        pl.BlockSpec((dim, dim), lambda n: (0, 0)),                # wc1
        pl.BlockSpec((half, dim), lambda n: (0, 0)),               # wc2
        pl.BlockSpec((half, dim), lambda n: (0, 0)),               # wc3
        vec_spec(dim), vec_spec(dim),                              # sc, bc
        vec_spec(dim), vec_spec(dim),                              # sbn, bbn
    ]

    return pl.pallas_call(
        functools.partial(_stage2_kernel, H=H, W=W),
        out_shape=jax.ShapeDtypeStruct((N, H, W, dim), jnp.float32),
        grid=(N,),
        in_specs=in_specs,
        out_specs=pl.BlockSpec((1, H, W, dim), lambda n: (n, 0, 0, 0)),
        compiler_params=pltpu.CompilerParams(
            dimension_semantics=("parallel",),
            vmem_limit_bytes=32 * 1024 * 1024),
        cost_estimate=pl.CostEstimate(flops=flops, transcendentals=transc,
                                      bytes_accessed=bytes_acc),
    )(cp, y, wd1, sd1, bd1, wd3, sd3, bd3, wd5, sd5, bd5,
      wc1, wc2, wc3, sc, bc, sbn, bbn)


# ----------------------------- parameter init -------------------------------

def _init_conv_bn(key, cin, cout, k):
    """Conv2d(bias=False) weight in HWIO + BatchNorm folded into scale/bias."""
    kw, kg, kb, km, kv = jax.random.split(key, 5)
    w = jax.random.normal(kw, (k, k, cin, cout), jnp.float32)
    w = w * (1.0 / np.sqrt(cin * k * k))
    gamma = 1.0 + 0.1 * jax.random.normal(kg, (cout,), jnp.float32)
    beta = 0.1 * jax.random.normal(kb, (cout,), jnp.float32)
    mean = 0.1 * jax.random.normal(km, (cout,), jnp.float32)
    var = 1.0 + 0.2 * jax.random.uniform(kv, (cout,), jnp.float32)
    scale = gamma / jnp.sqrt(var + 1e-5)
    bias = beta - mean * scale
    return (w, scale, bias)


def _init_bn(key, c):
    kg, kb, km, kv = jax.random.split(key, 4)
    gamma = 1.0 + 0.1 * jax.random.normal(kg, (c,), jnp.float32)
    beta = 0.1 * jax.random.normal(kb, (c,), jnp.float32)
    mean = 0.1 * jax.random.normal(km, (c,), jnp.float32)
    var = 1.0 + 0.2 * jax.random.uniform(kv, (c,), jnp.float32)
    scale = gamma / jnp.sqrt(var + 1e-5)
    bias = beta - mean * scale
    return scale, bias


def init_dwrseg_conv_params(key, in_channels, out_channels):
    dim = out_channels
    keys = jax.random.split(key, 7)
    return {
        "cv":      _init_conv_bn(keys[0], in_channels, dim, 1),    # Conv(in, out, 1)
        "dwr_3x3": _init_conv_bn(keys[1], dim, dim // 2, 3),       # Conv(dim, dim//2, 3)
        "dwr_d1":  _init_conv_bn(keys[2], dim // 2, dim, 3),       # d=1
        "dwr_d3":  _init_conv_bn(keys[3], dim // 2, dim // 2, 3),  # d=3
        "dwr_d5":  _init_conv_bn(keys[4], dim // 2, dim // 2, 3),  # d=5
        "dwr_1x1": _init_conv_bn(keys[5], dim * 2, dim, 1),        # Conv(2*dim, dim, 1)
        "bn":      _init_bn(keys[6], dim),                         # final BatchNorm2d
    }


# ------------------------------ forward pass --------------------------------

def dwrseg_conv_forward(x_nchw, params):
    """x_nchw: (N, Cin, H, W) float32 -> (N, Cout, H, W) float32."""
    x = jnp.transpose(x_nchw, (0, 2, 3, 1))                  # NCHW -> NHWC
    N, H, W, Cin = x.shape
    w_cv, s_cv, b_cv = params["cv"]
    dim = w_cv.shape[-1]
    half = dim // 2
    bf = jnp.bfloat16

    # ---- stage 1: Conv(in,dim,1)+BN+SiLU fused with Conv(dim,half,3)+BN+SiLU
    xp = jnp.pad(x.astype(bf), ((0, 0), (1, 1), (1, 1), (0, 0)))
    w_33, s_33, b_33 = params["dwr_3x3"]
    y, c = _stage1_call(
        xp,
        w_cv.reshape(Cin, dim).astype(bf),
        s_cv.reshape(1, dim), b_cv.reshape(1, dim),
        w_33.reshape(9, dim, half).astype(bf),
        s_33.reshape(1, half), b_33.reshape(1, half),
        H=H, W=W, dim=dim, half=half)

    # ---- stage 2: pad `c` ONCE (pad=5), reused by all three dilations
    cp = jnp.pad(c, ((0, 0), (5, 5), (5, 5), (0, 0)))
    w_d1, s_d1, b_d1 = params["dwr_d1"]
    w_d3, s_d3, b_d3 = params["dwr_d3"]
    w_d5, s_d5, b_d5 = params["dwr_d5"]
    w_c1, s_c1, b_c1 = params["dwr_1x1"]
    s_bn, b_bn = params["bn"]

    wc = w_c1.reshape(2 * dim, dim).astype(bf)
    wc1, wc2, wc3 = wc[:dim], wc[dim:dim + half], wc[dim + half:]

    out = _stage2_call(
        cp, y,
        w_d1.reshape(9, half, dim).astype(bf),
        s_d1.reshape(1, dim), b_d1.reshape(1, dim),
        w_d3.reshape(9, half, half).astype(bf),
        s_d3.reshape(1, half), b_d3.reshape(1, half),
        w_d5.reshape(9, half, half).astype(bf),
        s_d5.reshape(1, half), b_d5.reshape(1, half),
        wc1, wc2, wc3,
        s_c1.reshape(1, dim), b_c1.reshape(1, dim),
        s_bn.reshape(1, dim), b_bn.reshape(1, dim),
        H=H, W=W, dim=dim, half=half)

    return jnp.transpose(out, (0, 3, 1, 2))                  # NHWC -> NCHW


# ------------------------------ pure-JAX ref ---------------------------------

def _ref_conv_bn_act(x, w, scale, bias, dil, act, residual=None):
    k = w.shape[0]
    pad = dil * (k // 2)
    y = jax.lax.conv_general_dilated(
        x, w, window_strides=(1, 1), padding=((pad, pad), (pad, pad)),
        rhs_dilation=(dil, dil), dimension_numbers=("NHWC", "HWIO", "NHWC"))
    y = y * scale + bias
    y = _silu(y) if act == "silu" else _gelu_exact(y)
    if residual is not None:
        y = y + residual
    return y


def dwrseg_conv_ref(x_nchw, params):
    x = jnp.transpose(x_nchw, (0, 2, 3, 1))
    y = _ref_conv_bn_act(x, *params["cv"], 1, "silu")
    c = _ref_conv_bn_act(y, *params["dwr_3x3"], 1, "silu")
    x1 = _ref_conv_bn_act(c, *params["dwr_d1"], 1, "silu")
    x2 = _ref_conv_bn_act(c, *params["dwr_d3"], 3, "silu")
    x3 = _ref_conv_bn_act(c, *params["dwr_d5"], 5, "silu")
    cat = jnp.concatenate([x1, x2, x3], axis=-1)
    y2 = _ref_conv_bn_act(cat, *params["dwr_1x1"], 1, "silu", residual=y)
    s, b = params["bn"]
    out = _gelu_exact(y2 * s + b)
    return jnp.transpose(out, (0, 3, 1, 2))


# ---------------------------------- main -------------------------------------

if __name__ == "__main__":
    key = jax.random.PRNGKey(0)
    k_x, k_p = jax.random.split(key)

    N, Cin, Cout, H, W = 2, 4, 8, 16, 16
    x = jax.random.normal(k_x, (N, Cin, H, W), jnp.float32)
    params = init_dwrseg_conv_params(k_p, Cin, Cout)

    out = jax.block_until_ready(dwrseg_conv_forward(x, params))
    ref = jax.block_until_ready(dwrseg_conv_ref(x, params))

    assert out.shape == (N, Cout, H, W), out.shape
    # Pallas path stores activations/weights in bf16 (f32 accumulation) vs an
    # all-f32 reference, hence the slightly loosened tolerance.
    np.testing.assert_allclose(np.asarray(out), np.asarray(ref),
                               rtol=3e-2, atol=3e-2)
    print("KERNEL_OK")
</pallas_src>

<mosaic_0001>
module attributes {stable_mosaic.version = 11 : i64} {
  func.func @_stage1_kernel(%arg0: i32, %arg1: memref<1x18x18x4xbf16, #tpu.memory_space<vmem>>, %arg2: memref<4x8xbf16, #tpu.memory_space<vmem>>, %arg3: memref<1x8xf32, #tpu.memory_space<vmem>>, %arg4: memref<1x8xf32, #tpu.memory_space<vmem>>, %arg5: memref<9x8x4xbf16, #tpu.memory_space<vmem>>, %arg6: memref<1x4xf32, #tpu.memory_space<vmem>>, %arg7: memref<1x4xf32, #tpu.memory_space<vmem>>, %arg8: memref<1x16x16x8xbf16, #tpu.memory_space<vmem>>, %arg9: memref<1x16x16x4xbf16, #tpu.memory_space<vmem>>, %arg10: memref<18x18x8xf32, #tpu.memory_space<vmem>>) attributes {dimension_semantics = [#tpu.dimension_semantics<parallel>], iteration_bounds = array<i64: 2>, scalar_prefetch = 0 : i64, scratch_operands = 1 : i64, tpu.core_type = #tpu.core_type<tc>, window_params = [{transform_indices = @transform_0, window_bounds = array<i64: 1, 18, 18, 4>}, {pipeline_mode = #tpu.pipeline_mode<synchronous>, transform_indices = @transform_1, window_bounds = array<i64: 4, 8>}, {pipeline_mode = #tpu.pipeline_mode<synchronous>, transform_indices = @transform_2, window_bounds = array<i64: 1, 8>}, {pipeline_mode = #tpu.pipeline_mode<synchronous>, transform_indices = @transform_3, window_bounds = array<i64: 1, 8>}, {pipeline_mode = #tpu.pipeline_mode<synchronous>, transform_indices = @transform_4, window_bounds = array<i64: 9, 8, 4>}, {pipeline_mode = #tpu.pipeline_mode<synchronous>, transform_indices = @transform_5, window_bounds = array<i64: 1, 4>}, {pipeline_mode = #tpu.pipeline_mode<synchronous>, transform_indices = @transform_6, window_bounds = array<i64: 1, 4>}, {transform_indices = @transform_7, window_bounds = array<i64: 1, 16, 16, 8>}, {transform_indices = @transform_8, window_bounds = array<i64: 1, 16, 16, 4>}]} {
    %c0 = arith.constant 0 : index
    %c0_0 = arith.constant 0 : index
    %c0_1 = arith.constant 0 : index
    %c0_2 = arith.constant 0 : index
    %0 = vector.load %arg1[%c0, %c0_0, %c0_1, %c0_2] : memref<1x18x18x4xbf16, #tpu.memory_space<vmem>>, vector<1x18x18x4xbf16>
    %1 = vector.shape_cast %0 : vector<1x18x18x4xbf16> to vector<18x18x4xbf16>
    %2 = vector.shape_cast %1 : vector<18x18x4xbf16> to vector<324x4xbf16>
    %c0_3 = arith.constant 0 : index
    %c0_4 = arith.constant 0 : index
    %3 = vector.load %arg2[%c0_3, %c0_4] : memref<4x8xbf16, #tpu.memory_space<vmem>>, vector<4x8xbf16>
    %cst = arith.constant dense<0.000000e+00> : vector<324x8xf32>
    %4 = tpu.matmul %2, %3, %cst {dimension_numbers = #tpu.dot_dimension_numbers<[1], [0], [0], [1], [0, 0, 1, 1], [], []>} : vector<324x4xbf16>, vector<4x8xbf16>, vector<324x8xf32> -> vector<324x8xf32>
    %c0_5 = arith.constant 0 : index
    %c0_6 = arith.constant 0 : index
    %5 = vector.load %arg3[%c0_5, %c0_6] : memref<1x8xf32, #tpu.memory_space<vmem>>, vector<1x8xf32>
    %6 = vector.shape_cast %5 : vector<1x8xf32> to vector<8xf32>
    %7 = vector.shape_cast %6 : vector<8xf32> to vector<1x8xf32>
    %8 = vector.broadcast %7 : vector<1x8xf32> to vector<324x8xf32>
    %9 = arith.mulf %4, %8 : vector<324x8xf32>
    %c0_7 = arith.constant 0 : index
    %c0_8 = arith.constant 0 : index
    %10 = vector.load %arg4[%c0_7, %c0_8] : memref<1x8xf32, #tpu.memory_space<vmem>>, vector<1x8xf32>
    %11 = vector.shape_cast %10 : vector<1x8xf32> to vector<8xf32>
    %12 = vector.shape_cast %11 : vector<8xf32> to vector<1x8xf32>
    %13 = vector.broadcast %12 : vector<1x8xf32> to vector<324x8xf32>
    %14 = arith.addf %9, %13 : vector<324x8xf32>
    %15 = arith.negf %14 : vector<324x8xf32>
    %16 = math.exp %15 : vector<324x8xf32>
    %cst_9 = arith.constant 1.000000e+00 : f32
    %17 = vector.broadcast %cst_9 : f32 to vector<324x8xf32>
    %18 = arith.addf %17, %16 : vector<324x8xf32>
    %19 = arith.divf %17, %18 : vector<324x8xf32>
    %20 = arith.mulf %14, %19 : vector<324x8xf32>
    %21 = vector.shape_cast %20 : vector<324x8xf32> to vector<18x18x8xf32>
    %22 = tpu.iota {dimensions = array<i32: 0>} : vector<18x18x1xi32>
    %23 = tpu.iota {dimensions = array<i32: 1>} : vector<18x18x1xi32>
    %c1_i32 = arith.constant 1 : i32
    %24 = vector.broadcast %c1_i32 : i32 to vector<18x18x1xi32>
    %25 = arith.cmpi sge, %22, %24 : vector<18x18x1xi32>
    %c16_i32 = arith.constant 16 : i32
    %26 = vector.broadcast %c16_i32 : i32 to vector<18x18x1xi32>
    %27 = arith.cmpi sle, %22, %26 : vector<18x18x1xi32>
    %28 = arith.andi %25, %27 : vector<18x18x1xi1>
    %c1_i32_10 = arith.constant 1 : i32
    %29 = vector.broadcast %c1_i32_10 : i32 to vector<18x18x1xi32>
    %30 = arith.cmpi sge, %23, %29 : vector<18x18x1xi32>
    %31 = arith.andi %28, %30 : vector<18x18x1xi1>
    %c16_i32_11 = arith.constant 16 : i32
    %32 = vector.broadcast %c16_i32_11 : i32 to vector<18x18x1xi32>
    %33 = arith.cmpi sle, %23, %32 : vector<18x18x1xi32>
    %34 = arith.andi %31, %33 : vector<18x18x1xi1>
    %cst_12 = arith.constant 0.000000e+00 : f32
    %35 = vector.shape_cast %34 : vector<18x18x1xi1> to vector<18x18x1xi1>
    %36 = vector.broadcast %35 : vector<18x18x1xi1> to vector<18x18x8xi1>
    %37 = vector.broadcast %cst_12 : f32 to vector<18x18x8xf32>
    %38 = arith.select %36, %21, %37 : vector<18x18x8xi1>, vector<18x18x8xf32>
    %c0_13 = arith.constant 0 : index
    %c0_14 = arith.constant 0 : index
    %c0_15 = arith.constant 0 : index
    %39 = vector.load %arg10[%c0_13, %c0_14, %c0_15] : memref<18x18x8xf32, #tpu.memory_space<vmem>>, vector<18x18x8xf32>
    tpu.vector_store %arg10[%c0_13, %c0_14, %c0_15], %38 {strides = array<i32>} : memref<18x18x8xf32, #tpu.memory_space<vmem>>, vector<18x18x8xf32>,
    %c1 = arith.constant 1 : index
    %c1_16 = arith.constant 1 : index
    %c0_17 = arith.constant 0 : index
    %40 = vector.load %arg10[%c1, %c1_16, %c0_17] : memref<18x18x8xf32, #tpu.memory_space<vmem>>, vector<16x16x8xf32>
    %41 = arith.truncf %40 : vector<16x16x8xf32> to vector<16x16x8xbf16>
    %c0_18 = arith.constant 0 : index
    %c0_19 = arith.constant 0 : index
    %c0_20 = arith.constant 0 : index
    %c0_21 = arith.constant 0 : index
    %42 = vector.load %arg8[%c0_18, %c0_19, %c0_20, %c0_21] : memref<1x16x16x8xbf16, #tpu.memory_space<vmem>>, vector<1x16x16x8xbf16>
    %43 = vector.shape_cast %42 : vector<1x16x16x8xbf16> to vector<16x16x8xbf16>
    %44 = vector.shape_cast %41 : vector<16x16x8xbf16> to vector<1x16x16x8xbf16>
    tpu.vector_store %arg8[%c0_18, %c0_19, %c0_20, %c0_21], %44 {strides = array<i32>} : memref<1x16x16x8xbf16, #tpu.memory_space<vmem>>, vector<1x16x16x8xbf16>,
    %cst_22 = arith.constant 0.000000e+00 : f32
    %45 = vector.broadcast %cst_22 : f32 to vector<256x4xf32>
    %c0_23 = arith.constant 0 : index
    %c0_24 = arith.constant 0 : index
    %c0_25 = arith.constant 0 : index
    %46 = vector.load %arg10[%c0_23, %c0_24, %c0_25] : memref<18x18x8xf32, #tpu.memory_space<vmem>>, vector<16x16x8xf32>
    %47 = vector.shape_cast %46 : vector<16x16x8xf32> to vector<256x8xf32>
    %c0_26 = arith.constant 0 : index
    %c0_27 = arith.constant 0 : index
    %c0_28 = arith.constant 0 : index
    %48 = vector.load %arg5[%c0_26, %c0_27, %c0_28] : memref<9x8x4xbf16, #tpu.memory_space<vmem>>, vector<1x8x4xbf16>
    %49 = vector.shape_cast %48 : vector<1x8x4xbf16> to vector<8x4xbf16>
    %cst_29 = arith.constant dense<0.000000e+00> : vector<256x4xf32>
    %50 = tpu.matmul %47, %49, %cst_29 {dimension_numbers = #tpu.dot_dimension_numbers<[1], [0], [0], [1], [0, 0, 1, 1], [], []>} : vector<256x8xf32>, vector<8x4xbf16>, vector<256x4xf32> -> vector<256x4xf32>
    %51 = arith.addf %45, %50 : vector<256x4xf32>
    %c0_30 = arith.constant 0 : index
    %c1_31 = arith.constant 1 : index
    %c0_32 = arith.constant 0 : index
    %52 = vector.load %arg10[%c0_30, %c1_31, %c0_32] : memref<18x18x8xf32, #tpu.memory_space<vmem>>, vector<16x16x8xf32>
    %53 = vector.shape_cast %52 : vector<16x16x8xf32> to vector<256x8xf32>
    %c1_33 = arith.constant 1 : index
    %c0_34 = arith.constant 0 : index
    %c0_35 = arith.constant 0 : index
    %54 = vector.load %arg5[%c1_33, %c0_34, %c0_35] : memref<9x8x4xbf16, #tpu.memory_space<vmem>>, vector<1x8x4xbf16>
    %55 = vector.shape_cast %54 : vector<1x8x4xbf16> to vector<8x4xbf16>
    %cst_36 = arith.constant dense<0.000000e+00> : vector<256x4xf32>
    %56 = tpu.matmul %53, %55, %cst_36 {dimension_numbers = #tpu.dot_dimension_numbers<[1], [0], [0], [1], [0, 0, 1, 1], [], []>} : vector<256x8xf32>, vector<8x4xbf16>, vector<256x4xf32> -> vector<256x4xf32>
    %57 = arith.addf %51, %56 : vector<256x4xf32>
    %c0_37 = arith.constant 0 : index
    %c2 = arith.constant 2 : index
    %c0_38 = arith.constant 0 : index
    %58 = vector.load %arg10[%c0_37, %c2, %c0_38] : memref<18x18x8xf32, #tpu.memory_space<vmem>>, vector<16x16x8xf32>
    %59 = vector.shape_cast %58 : vector<16x16x8xf32> to vector<256x8xf32>
    %c2_39 = arith.constant 2 : index
    %c0_40 = arith.constant 0 : index
    %c0_41 = arith.constant 0 : index
    %60 = vector.load %arg5[%c2_39, %c0_40, %c0_41] : memref<9x8x4xbf16, #tpu.memory_space<vmem>>, vector<1x8x4xbf16>
    %61 = vector.shape_cast %60 : vector<1x8x4xbf16> to vector<8x4xbf16>
    %cst_42 = arith.constant dense<0.000000e+00> : vector<256x4xf32>
    %62 = tpu.matmul %59, %61, %cst_42 {dimension_numbers = #tpu.dot_dimension_numbers<[1], [0], [0], [1], [0, 0, 1, 1], [], []>} : vector<256x8xf32>, vector<8x4xbf16>, vector<256x4xf32> -> vector<256x4xf32>
    %63 = arith.addf %57, %62 : vector<256x4xf32>
    %c1_43 = arith.constant 1 : index
    %c0_44 = arith.constant 0 : index
    %c0_45 = arith.constant 0 : index
    %64 = vector.load %arg10[%c1_43, %c0_44, %c0_45] : memref<18x18x8xf32, #tpu.memory_space<vmem>>, vector<16x16x8xf32>
    %65 = vector.shape_cast %64 : vector<16x16x8xf32> to vector<256x8xf32>
    %c3 = arith.constant 3 : index
    %c0_46 = arith.constant 0 : index
    %c0_47 = arith.constant 0 : index
    %66 = vector.load %arg5[%c3, %c0_46, %c0_47] : memref<9x8x4xbf16, #tpu.memory_space<vmem>>, vector<1x8x4xbf16>
    %67 = vector.shape_cast %66 : vector<1x8x4xbf16> to vector<8x4xbf16>
    %cst_48 = arith.constant dense<0.000000e+00> : vector<256x4xf32>
    %68 = tpu.matmul %65, %67, %cst_48 {dimension_numbers = #tpu.dot_dimension_numbers<[1], [0], [0], [1], [0, 0, 1, 1], [], []>} : vector<256x8xf32>, vector<8x4xbf16>, vector<256x4xf32> -> vector<256x4xf32>
    %69 = arith.addf %63, %68 : vector<256x4xf32>
    %c1_49 = arith.constant 1 : index
    %c1_50 = arith.constant 1 : index
    %c0_51 = arith.constant 0 : index
    %70 = vector.load %arg10[%c1_49, %c1_50, %c0_51] : memref<18x18x8xf32, #tpu.memory_space<vmem>>, vector<16x16x8xf32>
    %71 = vector.shape_cast %70 : vector<16x16x8xf32> to vector<256x8xf32>
    %c4 = arith.constant 4 : index
    %c0_52 = arith.constant 0 : index
    %c0_53 = arith.constant 0 : index
    %72 = vector.load %arg5[%c4, %c0_52, %c0_53] : memref<9x8x4xbf16, #tpu.memory_space<vmem>>, vector<1x8x4xbf16>
    %73 = vector.shape_cast %72 : vector<1x8x4xbf16> to vector<8x4xbf16>
    %cst_54 = arith.constant dense<0.000000e+00> : vector<256x4xf32>
    %74 = tpu.matmul %71, %73, %cst_54 {dimension_numbers = #tpu.dot_dimension_numbers<[1], [0], [0], [1], [0, 0, 1, 1], [], []>} : vector<256x8xf32>, vector<8x4xbf16>, vector<256x4xf32> -> vector<256x4xf32>
    %75 = arith.addf %69, %74 : vector<256x4xf32>
    %c1_55 = arith.constant 1 : index
    %c2_56 = arith.constant 2 : index
    %c0_57 = arith.constant 0 : index
    %76 = vector.load %arg10[%c1_55, %c2_56, %c0_57] : memref<18x18x8xf32, #tpu.memory_space<vmem>>, vector<16x16x8xf32>
    %77 = vector.shape_cast %76 : vector<16x16x8xf32> to vector<256x8xf32>
    %c5 = arith.constant 5 : index
    %c0_58 = arith.constant 0 : index
    %c0_59 = arith.constant 0 : index
    %78 = vector.load %arg5[%c5, %c0_58, %c0_59] : memref<9x8x4xbf16, #tpu.memory_space<vmem>>, vector<1x8x4xbf16>
    %79 = vector.shape_cast %78 : vector<1x8x4xbf16> to vector<8x4xbf16>
    %cst_60 = arith.constant dense<0.000000e+00> : vector<256x4xf32>
    %80 = tpu.matmul %77, %79, %cst_60 {dimension_numbers = #tpu.dot_dimension_numbers<[1], [0], [0], [1], [0, 0, 1, 1], [], []>} : vector<256x8xf32>, vector<8x4xbf16>, vector<256x4xf32> -> vector<256x4xf32>
    %81 = arith.addf %75, %80 : vector<256x4xf32>
    %c2_61 = arith.constant 2 : index
    %c0_62 = arith.constant 0 : index
    %c0_63 = arith.constant 0 : index
    %82 = vector.load %arg10[%c2_61, %c0_62, %c0_63] : memref<18x18x8xf32, #tpu.memory_space<vmem>>, vector<16x16x8xf32>
    %83 = vector.shape_cast %82 : vector<16x16x8xf32> to vector<256x8xf32>
    %c6 = arith.constant 6 : index
    %c0_64 = arith.constant 0 : index
    %c0_65 = arith.constant 0 : index
    %84 = vector.load %arg5[%c6, %c0_64, %c0_65] : memref<9x8x4xbf16, #tpu.memory_space<vmem>>, vector<1x8x4xbf16>
    %85 = vector.shape_cast %84 : vector<1x8x4xbf16> to vector<8x4xbf16>
    %cst_66 = arith.constant dense<0.000000e+00> : vector<256x4xf32>
    %86 = tpu.matmul %83, %85, %cst_66 {dimension_numbers = #tpu.dot_dimension_numbers<[1], [0], [0], [1], [0, 0, 1, 1], [], []>} : vector<256x8xf32>, vector<8x4xbf16>, vector<256x4xf32> -> vector<256x4xf32>
    %87 = arith.addf %81, %86 : vector<256x4xf32>
    %c2_67 = arith.constant 2 : index
    %c1_68 = arith.constant 1 : index
    %c0_69 = arith.constant 0 : index
    %88 = vector.load %arg10[%c2_67, %c1_68, %c0_69] : memref<18x18x8xf32, #tpu.memory_space<vmem>>, vector<16x16x8xf32>
    %89 = vector.shape_cast %88 : vector<16x16x8xf32> to vector<256x8xf32>
    %c7 = arith.constant 7 : index
    %c0_70 = arith.constant 0 : index
    %c0_71 = arith.constant 0 : index
    %90 = vector.load %arg5[%c7, %c0_70, %c0_71] : memref<9x8x4xbf16, #tpu.memory_space<vmem>>, vector<1x8x4xbf16>
    %91 = vector.shape_cast %90 : vector<1x8x4xbf16> to vector<8x4xbf16>
    %cst_72 = arith.constant dense<0.000000e+00> : vector<256x4xf32>
    %92 = tpu.matmul %89, %91, %cst_72 {dimension_numbers = #tpu.dot_dimension_numbers<[1], [0], [0], [1], [0, 0, 1, 1], [], []>} : vector<256x8xf32>, vector<8x4xbf16>, vector<256x4xf32> -> vector<256x4xf32>
    %93 = arith.addf %87, %92 : vector<256x4xf32>
    %c2_73 = arith.constant 2 : index
    %c2_74 = arith.constant 2 : index
    %c0_75 = arith.constant 0 : index
    %94 = vector.load %arg10[%c2_73, %c2_74, %c0_75] : memref<18x18x8xf32, #tpu.memory_space<vmem>>, vector<16x16x8xf32>
    %95 = vector.shape_cast %94 : vector<16x16x8xf32> to vector<256x8xf32>
    %c8 = arith.constant 8 : index
    %c0_76 = arith.constant 0 : index
    %c0_77 = arith.constant 0 : index
    %96 = vector.load %arg5[%c8, %c0_76, %c0_77] : memref<9x8x4xbf16, #tpu.memory_space<vmem>>, vector<1x8x4xbf16>
    %97 = vector.shape_cast %96 : vector<1x8x4xbf16> to vector<8x4xbf16>
    %cst_78 = arith.constant dense<0.000000e+00> : vector<256x4xf32>
    %98 = tpu.matmul %95, %97, %cst_78 {dimension_numbers = #tpu.dot_dimension_numbers<[1], [0], [0], [1], [0, 0, 1, 1], [], []>} : vector<256x8xf32>, vector<8x4xbf16>, vector<256x4xf32> -> vector<256x4xf32>
    %99 = arith.addf %93, %98 : vector<256x4xf32>
    %c0_79 = arith.constant 0 : index
    %c0_80 = arith.constant 0 : index
    %100 = vector.load %arg6[%c0_79, %c0_80] : memref<1x4xf32, #tpu.memory_space<vmem>>, vector<1x4xf32>
    %101 = vector.shape_cast %100 : vector<1x4xf32> to vector<4xf32>
    %102 = vector.shape_cast %101 : vector<4xf32> to vector<1x4xf32>
    %103 = vector.broadcast %102 : vector<1x4xf32> to vector<256x4xf32>
    %104 = arith.mulf %99, %103 : vector<256x4xf32>
    %c0_81 = arith.constant 0 : index
    %c0_82 = arith.constant 0 : index
    %105 = vector.load %arg7[%c0_81, %c0_82] : memref<1x4xf32, #tpu.memory_space<vmem>>, vector<1x4xf32>
    %106 = vector.shape_cast %105 : vector<1x4xf32> to vector<4xf32>
    %107 = vector.shape_cast %106 : vector<4xf32> to vector<1x4xf32>
    %108 = vector.broadcast %107 : vector<1x4xf32> to vector<256x4xf32>
    %109 = arith.addf %104, %108 : vector<256x4xf32>
    %110 = arith.negf %109 : vector<256x4xf32>
    %111 = math.exp %110 : vector<256x4xf32>
    %cst_83 = arith.constant 1.000000e+00 : f32
    %112 = vector.broadcast %cst_83 : f32 to vector<256x4xf32>
    %113 = arith.addf %112, %111 : vector<256x4xf32>
    %114 = arith.divf %112, %113 : vector<256x4xf32>
    %115 = arith.mulf %109, %114 : vector<256x4xf32>
    %116 = vector.shape_cast %115 : vector<256x4xf32> to vector<16x16x4xf32>
    %117 = arith.truncf %116 : vector<16x16x4xf32> to vector<16x16x4xbf16>
    %c0_84 = arith.constant 0 : index
    %c0_85 = arith.constant 0 : index
    %c0_86 = arith.constant 0 : index
    %c0_87 = arith.constant 0 : index
    %118 = vector.load %arg9[%c0_84, %c0_85, %c0_86, %c0_87] : memref<1x16x16x4xbf16, #tpu.memory_space<vmem>>, vector<1x16x16x4xbf16>
    %119 = vector.shape_cast %118 : vector<1x16x16x4xbf16> to vector<16x16x4xbf16>
    %120 = vector.shape_cast %117 : vector<16x16x4xbf16> to vector<1x16x16x4xbf16>
    tpu.vector_store %arg9[%c0_84, %c0_85, %c0_86, %c0_87], %120 {strides = array<i32>} : memref<1x16x16x4xbf16, #tpu.memory_space<vmem>>, vector<1x16x16x4xbf16>,
    return
  }
  func.func @transform_0(%arg0: i32) -> (i32, i32, i32, i32) {
    %c0_i32 = arith.constant 0 : i32
    %c0_i32_0 = arith.constant 0 : i32
    %c0_i32_1 = arith.constant 0 : i32
    %c0_i32_2 = arith.constant 0 : i32
    return %arg0, %c0_i32, %c0_i32_0, %c0_i32_1 : i32, i32, i32, i32
  }
  func.func @transform_1(%arg0: i32) -> (i32, i32) {
    %c0_i32 = arith.constant 0 : i32
    %c0_i32_0 = arith.constant 0 : i32
    %c0_i32_1 = arith.constant 0 : i32
    return %c0_i32, %c0_i32_0 : i32, i32
  }
  func.func @transform_2(%arg0: i32) -> (i32, i32) {
    %c0_i32 = arith.constant 0 : i32
    %c0_i32_0 = arith.constant 0 : i32
    %c0_i32_1 = arith.constant 0 : i32
    return %c0_i32, %c0_i32_0 : i32, i32
  }
  func.func @transform_3(%arg0: i32) -> (i32, i32) {
    %c0_i32 = arith.constant 0 : i32
    %c0_i32_0 = arith.constant 0 : i32
    %c0_i32_1 = arith.constant 0 : i32
    return %c0_i32, %c0_i32_0 : i32, i32
  }
  func.func @transform_4(%arg0: i32) -> (i32, i32, i32) {
    %c0_i32 = arith.constant 0 : i32
    %c0_i32_0 = arith.constant 0 : i32
    %c0_i32_1 = arith.constant 0 : i32
    %c0_i32_2 = arith.constant 0 : i32
    return %c0_i32, %c0_i32_0, %c0_i32_1 : i32, i32, i32
  }
  func.func @transform_5(%arg0: i32) -> (i32, i32) {
    %c0_i32 = arith.constant 0 : i32
    %c0_i32_0 = arith.constant 0 : i32
    %c0_i32_1 = arith.constant 0 : i32
    return %c0_i32, %c0_i32_0 : i32, i32
  }
  func.func @transform_6(%arg0: i32) -> (i32, i32) {
    %c0_i32 = arith.constant 0 : i32
    %c0_i32_0 = arith.constant 0 : i32
    %c0_i32_1 = arith.constant 0 : i32
    return %c0_i32, %c0_i32_0 : i32, i32
  }
  func.func @transform_7(%arg0: i32) -> (i32, i32, i32, i32) {
    %c0_i32 = arith.constant 0 : i32
    %c0_i32_0 = arith.constant 0 : i32
    %c0_i32_1 = arith.constant 0 : i32
    %c0_i32_2 = arith.constant 0 : i32
    return %arg0, %c0_i32, %c0_i32_0, %c0_i32_1 : i32, i32, i32, i32
  }
  func.func @transform_8(%arg0: i32) -> (i32, i32, i32, i32) {
    %c0_i32 = arith.constant 0 : i32
    %c0_i32_0 = arith.constant 0 : i32
    %c0_i32_1 = arith.constant 0 : i32
    %c0_i32_2 = arith.constant 0 : i32
    return %arg0, %c0_i32, %c0_i32_0, %c0_i32_1 : i32, i32, i32, i32
  }
}

</mosaic_0001>

<llo_original>
// kernel: tpu_custom_call.1
$region0: #{tpu_custom_call.1}
  #allocation0 [shape = 'u32[]', space=smem, size = 0x4, offset = 0x4, fixed_abs, tag = 'smem constant byte address 0x4 - core index']
  #allocation1 [shape = 'u32[72,128]{1,0:T(1,128)}', space=vmem, size = 0x9000, scoped, tag = 'internal scratch']
  #allocation2 [shape = 'f32[18,18,8]{2,1,0:T(8,128)}', space=vmem, size = 0x36000, scoped, tag = 'scratch operand']
  %s0 = inlined_call_operand.vmem [shape: bf16[2,18,18,4], index: 0, kind: input, shape index: {}]
  %s1 = inlined_call_operand.vmem [shape: bf16[4,8], index: 1, kind: input, shape index: {}]
  %s2 = inlined_call_operand.vmem [shape: f32[1,8], index: 2, kind: input, shape index: {}]
  %s3 = inlined_call_operand.vmem [shape: f32[1,8], index: 3, kind: input, shape index: {}]
  %s4 = inlined_call_operand.vmem [shape: bf16[9,8,4], index: 4, kind: input, shape index: {}]
  %s5 = inlined_call_operand.vmem [shape: f32[1,4], index: 5, kind: input, shape index: {}]
  %s6 = inlined_call_operand.vmem [shape: f32[1,4], index: 6, kind: input, shape index: {}]
  %s7 = inlined_call_operand.vmem [shape: bf16[2,16,16,8], index: 7, kind: output, shape index: {0}]
  %s8 = inlined_call_operand.vmem [shape: bf16[2,16,16,4], index: 8, kind: output, shape index: {1}]
  %9 = xla_tuple %s7, %s8
  %s10 = sld [smem:[#allocation0]]
  $region69: #{tpu_custom_call.1} parent=0
    _
  %s12 = ssub.s32 1, %s10
  %s13 = scalar_select 0, %s12, %s10
  loop: start=0, step=1, limit=4
  $region2: #{tpu_custom_call.1} parent=0 // loop_pre_header
    _
  $region3: #{tpu_custom_call.1} parent=0 // loop_header
    %s15 = sphi 0, %s19
    %p16 = scmp.ge.s32.totalorder %s15, 4
    %s25 = sphi 0, %s27
    %s28 = sphi 0, %s25
    %s29 = sphi 0, %s28
    %s45 = sphi 0, %s29
    %s49 = sphi 0, %s49
    %s51 = sphi 0, %s49
    %s52 = sphi 0, %s51
    %s66 = sphi 0, %s52
    %s70 = sphi 0, %s70
    %s72 = sphi 0, %s70
    %s73 = sphi 0, %s72
    %s87 = sphi 0, %s73
    %s91 = sphi 0, %s91
    %s93 = sphi 0, %s91
    %s94 = sphi 0, %s93
    %s108 = sphi 0, %s94
    %s112 = sphi 0, %s112
    %s114 = sphi 0, %s112
    %s115 = sphi 0, %s114
    %s129 = sphi 0, %s115
    %s133 = sphi 0, %s133
    %s135 = sphi 0, %s133
    %s136 = sphi 0, %s135
    %s150 = sphi 0, %s136
    %s154 = sphi 0, %s154
    %s156 = sphi 0, %s154
    %s157 = sphi 0, %s156
    %s171 = sphi 0, %s157
    %s177 = sphi 0, %s179
    %s180 = sphi 0, %s177
    %s181 = sphi 0, %s180
    %s197 = sphi 0, %s181
    %s203 = sphi 0, %s205
    %s206 = sphi 0, %s203
    %s207 = sphi 0, %s206
    %s223 = sphi 0, %s207
  $region4: #{tpu_custom_call.1} parent=0 // loop_header_branch
    %18 = sbr.rel (%p16) target = $region8
  $region5: #{tpu_custom_call.1} parent=0 // loop_body
    %s20 = ssub.s32 %s15, 1
    %s21 = ssub.s32 %s15, 2
    %s22 = sadd.s32 %s15, 1
    %s23 = ssub.s32 %s15, %s22
    %p24 = scmp.eq.s32.totalorder %s23, 0
    %s26 = sadd.s32 %s25, 1
    %s27 = scalar_select %p24, %s25, %s26
    %p30 = pneg %p24
    %p31 = scmp.eq.s32.totalorder %s15, 1
    %p32 = por %p30, %p31
    %p33 = scmp.ne.s32.totalorder %s25, %s28
    %p34 = scmp.eq.s32.totalorder %s15, 0
    %p35 = por %p33, %p34
    %p36 = scmp.ne.s32.totalorder %s25, %s28
    %p37 = scmp.eq.s32.totalorder %s20, 1
    %p38 = por %p36, %p37
    %p39 = scmp.ne.s32.totalorder %s28, %s29
    %p40 = scmp.eq.s32.totalorder %s20, 0
    %p41 = por %p39, %p40
    %p42 = scmp.ne.s32.totalorder %s28, %s29
    %p43 = scmp.eq.s32.totalorder %s21, 1
    %p44 = por %p42, %p43
    %p46 = scmp.ne.s32.totalorder %s29, %s45
    %p47 = scmp.eq.s32.totalorder %s21, 0
    %p48 = por %p46, %p47
    %s50 = sadd.s32 %s49, 1
    %p53 = scmp.eq.s32.totalorder %s15, 1
    %p54 = scmp.ne.s32.totalorder %s49, %s51
    %p55 = scmp.eq.s32.totalorder %s15, 0
    %p56 = por %p54, %p55
    %p57 = scmp.ne.s32.totalorder %s49, %s51
    %p58 = scmp.eq.s32.totalorder %s20, 1
    %p59 = por %p57, %p58
    %p60 = scmp.ne.s32.totalorder %s51, %s52
    %p61 = scmp.eq.s32.totalorder %s20, 0
    %p62 = por %p60, %p61
    %p63 = scmp.ne.s32.totalorder %s51, %s52
    %p64 = scmp.eq.s32.totalorder %s21, 1
    %p65 = por %p63, %p64
    %p67 = scmp.ne.s32.totalorder %s52, %s66
    %p68 = scmp.eq.s32.totalorder %s21, 0
    %p69 = por %p67, %p68
    %s71 = sadd.s32 %s70, 1
    %p74 = scmp.eq.s32.totalorder %s15, 1
    %p75 = scmp.ne.s32.totalorder %s70, %s72
    %p76 = scmp.eq.s32.totalorder %s15, 0
    %p77 = por %p75, %p76
    %p78 = scmp.ne.s32.totalorder %s70, %s72
    %p79 = scmp.eq.s32.totalorder %s20, 1
    %p80 = por %p78, %p79
    %p81 = scmp.ne.s32.totalorder %s72, %s73
    %p82 = scmp.eq.s32.totalorder %s20, 0
    %p83 = por %p81, %p82
    %p84 = scmp.ne.s32.totalorder %s72, %s73
    %p85 = scmp.eq.s32.totalorder %s21, 1
    %p86 = por %p84, %p85
    %p88 = scmp.ne.s32.totalorder %s73, %s87
    %p89 = scmp.eq.s32.totalorder %s21, 0
    %p90 = por %p88, %p89
    %s92 = sadd.s32 %s91, 1
    %p95 = scmp.eq.s32.totalorder %s15, 1
    %p96 = scmp.ne.s32.totalorder %s91, %s93
    %p97 = scmp.eq.s32.totalorder %s15, 0
    %p98 = por %p96, %p97
    %p99 = scmp.ne.s32.totalorder %s91, %s93
    %p100 = scmp.eq.s32.totalorder %s20, 1
    %p101 = por %p99, %p100
    %p102 = scmp.ne.s32.totalorder %s93, %s94
    %p103 = scmp.eq.s32.totalorder %s20, 0
    %p104 = por %p102, %p103
    %p105 = scmp.ne.s32.totalorder %s93, %s94
    %p106 = scmp.eq.s32.totalorder %s21, 1
    %p107 = por %p105, %p106
    %p109 = scmp.ne.s32.totalorder %s94, %s108
    %p110 = scmp.eq.s32.totalorder %s21, 0
    %p111 = por %p109, %p110
    %s113 = sadd.s32 %s112, 1
    %p116 = scmp.eq.s32.totalorder %s15, 1
    %p117 = scmp.ne.s32.totalorder %s112, %s114
    %p118 = scmp.eq.s32.totalorder %s15, 0
    %p119 = por %p117, %p118
    %p120 = scmp.ne.s32.totalorder %s112, %s114
    %p121 = scmp.eq.s32.totalorder %s20, 1
    %p122 = por %p120, %p121
    %p123 = scmp.ne.s32.totalorder %s114, %s115
    %p124 = scmp.eq.s32.totalorder %s20, 0
    %p125 = por %p123, %p124
    %p126 = scmp.ne.s32.totalorder %s114, %s115
    %p127 = scmp.eq.s32.totalorder %s21, 1
    %p128 = por %p126, %p127
    %p130 = scmp.ne.s32.totalorder %s115, %s129
    %p131 = scmp.eq.s32.totalorder %s21, 0
    %p132 = por %p130, %p131
    %s134 = sadd.s32 %s133, 1
    %p137 = scmp.eq.s32.totalorder %s15, 1
    %p138 = scmp.ne.s32.totalorder %s133, %s135
    %p139 = scmp.eq.s32.totalorder %s15, 0
    %p140 = por %p138, %p139
    %p141 = scmp.ne.s32.totalorder %s133, %s135
    %p142 = scmp.eq.s32.totalorder %s20, 1
    %p143 = por %p141, %p142
    %p144 = scmp.ne.s32.totalorder %s135, %s136
    %p145 = scmp.eq.s32.totalorder %s20, 0
    %p146 = por %p144, %p145
    %p147 = scmp.ne.s32.totalorder %s135, %s136
    %p148 = scmp.eq.s32.totalorder %s21, 1
    %p149 = por %p147, %p148
    %p151 = scmp.ne.s32.totalorder %s136, %s150
    %p152 = scmp.eq.s32.totalorder %s21, 0
    %p153 = por %p151, %p152
    %s155 = sadd.s32 %s154, 1
    %p158 = scmp.eq.s32.totalorder %s15, 1
    %p159 = scmp.ne.s32.totalorder %s154, %s156
    %p160 = scmp.eq.s32.totalorder %s15, 0
    %p161 = por %p159, %p160
    %p162 = scmp.ne.s32.totalorder %s154, %s156
    %p163 = scmp.eq.s32.totalorder %s20, 1
    %p164 = por %p162, %p163
    %p165 = scmp.ne.s32.totalorder %s156, %s157
    %p166 = scmp.eq.s32.totalorder %s20, 0
    %p167 = por %p165, %p166
    %p168 = scmp.ne.s32.totalorder %s156, %s157
    %p169 = scmp.eq.s32.totalorder %s21, 1
    %p170 = por %p168, %p169
    %p172 = scmp.ne.s32.totalorder %s157, %s171
    %p173 = scmp.eq.s32.totalorder %s21, 0
    %p174 = por %p172, %p173
    %s175 = ssub.s32 %s15, %s22
    %p176 = scmp.eq.s32.totalorder %s175, 0
    %s178 = sadd.s32 %s177, 1
    %s179 = scalar_select %p176, %s177, %s178
    %p182 = pneg %p176
    %p183 = scmp.eq.s32.totalorder %s15, 1
    %p184 = por %p182, %p183
    %p185 = scmp.ne.s32.totalorder %s177, %s180
    %p186 = scmp.eq.s32.totalorder %s15, 0
    %p187 = por %p185, %p186
    %p188 = scmp.ne.s32.totalorder %s177, %s180
    %p189 = scmp.eq.s32.totalorder %s20, 1
    %p190 = por %p188, %p189
    %p191 = scmp.ne.s32.totalorder %s180, %s181
    %p192 = scmp.eq.s32.totalorder %s20, 0
    %p193 = por %p191, %p192
    %p194 = scmp.ne.s32.totalorder %s180, %s181
    %p195 = scmp.eq.s32.totalorder %s21, 1
    %p196 = por %p194, %p195
    %p198 = scmp.ne.s32.totalorder %s181, %s197
    %p199 = scmp.eq.s32.totalorder %s21, 0
    %p200 = por %p198, %p199
    %s201 = ssub.s32 %s15, %s22
    %p202 = scmp.eq.s32.totalorder %s201, 0
    %s204 = sadd.s32 %s203, 1
    %s205 = scalar_select %p202, %s203, %s204
    %p208 = pneg %p202
    %p209 = scmp.eq.s32.totalorder %s15, 1
    %p210 = por %p208, %p209
    %p211 = scmp.ne.s32.totalorder %s203, %s206
    %p212 = scmp.eq.s32.totalorder %s15, 0
    %p213 = por %p211, %p212
    %p214 = scmp.ne.s32.totalorder %s203, %s206
    %p215 = scmp.eq.s32.totalorder %s20, 1
    %p216 = por %p214, %p215
    %p217 = scmp.ne.s32.totalorder %s206, %s207
    %p218 = scmp.eq.s32.totalorder %s20, 0
    %p219 = por %p217, %p218
    %p220 = scmp.ne.s32.totalorder %s206, %s207
    %p221 = scmp.eq.s32.totalorder %s21, 1
    %p222 = por %p220, %p221
    %p224 = scmp.ne.s32.totalorder %s207, %s223
    %p225 = scmp.eq.s32.totalorder %s21, 0
    %p226 = por %p224, %p225
    %p227 = scmp.le.s32.totalorder 1, %s15
    %p228 = scmp.lt.s32.totalorder %s15, 3
    %p229 = pnand %p227, %p228
    %p230 = pneg %p229
    // Predicated region
    $region9: #{tpu_custom_call.1} parent=5 // pred_check
      _
    $region10: #{tpu_custom_call.1} parent=5 // pred_check_branch
      %232 = sbr.rel (%p229) target = $region12
    $region11: #{tpu_custom_call.1} parent=5 // pred_region
      %s233 = ssub.s32 %s15, 1
      // Predicated region
      $region13: #{tpu_custom_call.1} parent=11 // pred_check
        %p234 = pneg %p62
      $region14: #{tpu_custom_call.1} parent=11 // pred_check_branch
        %236 = sbr.rel (%p234) target = $region16
      $region15: #{tpu_custom_call.1} parent=11 // pred_region
        _
      $region16: #{tpu_custom_call.1} parent=11 // pred_fallthru
        _
      // Predicated region
      $region17: #{tpu_custom_call.1} parent=11 // pred_check
        %p237 = pneg %p83
      $region18: #{tpu_custom_call.1} parent=11 // pred_check_branch
        %239 = sbr.rel (%p237) target = $region20
      $region19: #{tpu_custom_call.1} parent=11 // pred_region
        _
      $region20: #{tpu_custom_call.1} parent=11 // pred_fallthru
        _
      // Predicated region
      $region21: #{tpu_custom_call.1} parent=11 // pred_check
        %p240 = pneg %p104
      $region22: #{tpu_custom_call.1} parent=11 // pred_check_branch
        %242 = sbr.rel (%p240) target = $region24
      $region23: #{tpu_custom_call.1} parent=11 // pred_region
        _
      $region24: #{tpu_custom_call.1} parent=11 // pred_fallthru
        _
      // Predicated region
      $region25: #{tpu_custom_call.1} parent=11 // pred_check
        %p243 = pneg %p125
      $region26: #{tpu_custom_call.1} parent=11 // pred_check_branch
        %245 = sbr.rel (%p243) target = $region28
      $region27: #{tpu_custom_call.1} parent=11 // pred_region
        _
      $region28: #{tpu_custom_call.1} parent=11 // pred_fallthru
        _
      // Predicated region
      $region29: #{tpu_custom_call.1} parent=11 // pred_check
        %p246 = pneg %p146
      $region30: #{tpu_custom_call.1} parent=11 // pred_check_branch
        %248 = sbr.rel (%p246) target = $region32
      $region31: #{tpu_custom_call.1} parent=11 // pred_region
        _
      $region32: #{tpu_custom_call.1} parent=11 // pred_fallthru
        _
      // Predicated region
      $region33: #{tpu_custom_call.1} parent=11 // pred_check
        %p249 = pneg %p167
      $region34: #{tpu_custom_call.1} parent=11 // pred_check_branch
        %251 = sbr.rel (%p249) target = $region36
      $region35: #{tpu_custom_call.1} parent=11 // pred_region
        _
      $region36: #{tpu_custom_call.1} parent=11 // pred_fallthru
        _
    $region12: #{tpu_custom_call.1} parent=5 // pred_fallthru
      _
    %p252 = scmp.lt.s32.totalorder %s15, 2
    // Predicated region
    $region37: #{tpu_custom_call.1} parent=5 // pred_check
      %p253 = pneg %p252
    $region38: #{tpu_custom_call.1} parent=5 // pred_check_branch
      %255 = sbr.rel (%p253) target = $region40
    $region39: #{tpu_custom_call.1} parent=5 // pred_region
      // Predicated region
      $region41: #{tpu_custom_call.1} parent=39 // pred_check
        %p256 = pneg %p35
      $region42: #{tpu_custom_call.1} parent=39 // pred_check_branch
        %258 = sbr.rel (%p256) target = $region44
      $region43: #{tpu_custom_call.1} parent=39 // pred_region
        %p259 = scmp.lt.s32.totalorder %s15, 1
        %s260 = scalar_select %p259, %s15, 1
        %s261 = smul.addr %s260, 54
        %s262 = smul.addr %s261, 4
        %s263 = scalar_lea.vmem %s0, %s262
      $region44: #{tpu_custom_call.1} parent=39 // pred_fallthru
        _
    $region40: #{tpu_custom_call.1} parent=5 // pred_fallthru
      _
    %p264 = scmp.le.s32.totalorder 1, %s15
    %p265 = scmp.lt.s32.totalorder %s15, 3
    %p266 = pnand %p264, %p265
    %p267 = pneg %p266
    // Predicated region
    $region45: #{tpu_custom_call.1} parent=5 // pred_check
      _
    $region46: #{tpu_custom_call.1} parent=5 // pred_check_branch
      %269 = sbr.rel (%p266) target = $region48
    $region47: #{tpu_custom_call.1} parent=5 // pred_region
      %s270 = ssub.s32 %s15, 1
      %p271 = scmp.lt.s32.totalorder %s20, 1
      %s272 = scalar_select %p271, %s20, 1
      %s273 = smul.addr %s272, 54
      %s274 = smul.addr %s273, 4
      %s275 = scalar_lea.vmem %s0, %s274
      %p276 = pneg %p41
      %p277 = pneg %p38
      %p278 = pneg %p62
      %p279 = pneg %p59
      %p280 = pneg %p83
      %p281 = pneg %p80
      %p282 = pneg %p104
      %p283 = pneg %p101
      %p284 = pneg %p125
      %p285 = pneg %p122
      %p286 = pneg %p146
      %p287 = pneg %p143
      %p288 = pneg %p167
      %p289 = pneg %p164
      %p290 = pneg %p193
      %p291 = pneg %p190
      %p292 = scmp.lt.s32.totalorder %s20, 1
      %s293 = scalar_select %p292, %s20, 1
      %s294 = smul.addr %s293, 32
      %s295 = smul.addr %s294, 4
      %s296 = scalar_lea.vmem %s7, %s295
      %p297 = pneg %p219
      %p298 = pneg %p216
      %p299 = scmp.lt.s32.totalorder %s20, 1
      %s300 = scalar_select %p299, %s20, 1
      %s301 = smul.addr %s300, 32
      %s302 = smul.addr %s301, 4
      %s303 = scalar_lea.vmem %s8, %s302
      %p304 = scmp.lt.s32.totalorder %s20, 1
      %s305 = scalar_select %p304, %s20, 1
      %s306 = smul.addr %s305, 54
      %s307 = smul.addr %s306, 4
      %s308 = scalar_lea.vmem %s0, %s307
      %p309 = scmp.lt.s32.totalorder %s20, 1
      %s310 = scalar_select %p309, %s20, 1
      %s311 = smul.addr %s310, 32
      %s312 = smul.addr %s311, 4
      %s313 = scalar_lea.vmem %s7, %s312
      %p314 = scmp.lt.s32.totalorder %s20, 1
      %s315 = scalar_select %p314, %s20, 1
      %s316 = smul.addr %s315, 32
      %s317 = smul.addr %s316, 4
      %s318 = scalar_lea.vmem %s8, %s317
      %v320 = vld [vmem:[%s308] sm:$0xf]
      %v321 = vld [vmem:[%s308 + $0x4] sm:$0xf]
      %v322 = vld [vmem:[%s308 + $0x8] sm:$0x1]
      %v323 = vld [vmem:[%s308 + $0xc] sm:$0xf]
      %v324 = vld [vmem:[%s308 + $0x10] sm:$0xf]
      %v325 = vld [vmem:[%s308 + $0x14] sm:$0x1]
      %v326 = vld [vmem:[%s308 + $0x18] sm:$0xf]
      %v327 = vld [vmem:[%s308 + $0x1c] sm:$0xf]
      %v328 = vld [vmem:[%s308 + $0x20] sm:$0x1]
      %v329 = vld [vmem:[%s308 + $0x24] sm:$0xf]
      %v330 = vld [vmem:[%s308 + $0x28] sm:$0xf]
      %v331 = vld [vmem:[%s308 + $0x2c] sm:$0x1]
      %v332 = vld [vmem:[%s308 + $0x30] sm:$0xf]
      %v333 = vld [vmem:[%s308 + $0x34] sm:$0xf]
      %v334 = vld [vmem:[%s308 + $0x38] sm:$0x1]
      %v335 = vld [vmem:[%s308 + $0x3c] sm:$0xf]
      %v336 = vld [vmem:[%s308 + $0x40] sm:$0xf]
      %v337 = vld [vmem:[%s308 + $0x44] sm:$0x1]
      %v338 = vld [vmem:[%s308 + $0x48] sm:$0xf]
      %v339 = vld [vmem:[%s308 + $0x4c] sm:$0xf]
      %v340 = vld [vmem:[%s308 + $0x50] sm:$0x1]
      %v341 = vld [vmem:[%s308 + $0x54] sm:$0xf]
      %v342 = vld [vmem:[%s308 + $0x58] sm:$0xf]
      %v343 = vld [vmem:[%s308 + $0x5c] sm:$0x1]
      %v344 = vld [vmem:[%s308 + $0x60] sm:$0xf]
      %v345 = vld [vmem:[%s308 + $0x64] sm:$0xf]
      %v346 = vld [vmem:[%s308 + $0x68] sm:$0x1]
      %v347 = vld [vmem:[%s308 + $0x6c] sm:$0xf]
      %v348 = vld [vmem:[%s308 + $0x70] sm:$0xf]
      %v349 = vld [vmem:[%s308 + $0x74] sm:$0x1]
      %v350 = vld [vmem:[%s308 + $0x78] sm:$0xf]
      %v351 = vld [vmem:[%s308 + $0x7c] sm:$0xf]
      %v352 = vld [vmem:[%s308 + $0x80] sm:$0x1]
      %v353 = vld [vmem:[%s308 + $0x84] sm:$0xf]
      %v354 = vld [vmem:[%s308 + $0x88] sm:$0xf]
      %v355 = vld [vmem:[%s308 + $0x8c] sm:$0x1]
      %v356 = vld [vmem:[%s308 + $0x90] sm:$0xf]
      %v357 = vld [vmem:[%s308 + $0x94] sm:$0xf]
      %v358 = vld [vmem:[%s308 + $0x98] sm:$0x1]
      %v359 = vld [vmem:[%s308 + $0x9c] sm:$0xf]
      %v360 = vld [vmem:[%s308 + $0xa0] sm:$0xf]
      %v361 = vld [vmem:[%s308 + $0xa4] sm:$0x1]
      %v362 = vld [vmem:[%s308 + $0xa8] sm:$0xf]
      %v363 = vld [vmem:[%s308 + $0xac] sm:$0xf]
      %v364 = vld [vmem:[%s308 + $0xb0] sm:$0x1]
      %v365 = vld [vmem:[%s308 + $0xb4] sm:$0xf]
      %v366 = vld [vmem:[%s308 + $0xb8] sm:$0xf]
      %v367 = vld [vmem:[%s308 + $0xbc] sm:$0x1]
      %v368 = vld [vmem:[%s308 + $0xc0] sm:$0xf]
      %v369 = vld [vmem:[%s308 + $0xc4] sm:$0xf]
      %v370 = vld [vmem:[%s308 + $0xc8] sm:$0x1]
      %v371 = vld [vmem:[%s308 + $0xcc] sm:$0xf]
      %v372 = vld [vmem:[%s308 + $0xd0] sm:$0xf]
      %v373 = vld [vmem:[%s308 + $0xd4] sm:$0x1]
      %v428 = vrot.slane %v320, 3
      %v429 = vrot.slane %v321, 3
      %v430 = vrot.slane %v322, 3
      %v431 = vrot.slane %v323, 3
      %v432 = vrot.slane %v324, 3
      %v433 = vrot.slane %v325, 3
      %v434 = vrot.slane %v326, 3
      %v435 = vrot.slane %v327, 3
      %v436 = vrot.slane %v328, 3
      %v437 = vrot.slane %v329, 3
      %v438 = vrot.slane %v330, 3
      %v439 = vrot.slane %v331, 3
      %v440 = vrot.slane %v332, 3
      %v441 = vrot.slane %v333, 3
      %v442 = vrot.slane %v334, 3
      %v443 = vrot.slane %v335, 3
      %v444 = vrot.slane %v336, 3
      %v445 = vrot.slane %v337, 3
      %v446 = vrot.slane %v338, 3
      %v447 = vrot.slane %v339, 3
      %v448 = vrot.slane %v340, 3
      %v449 = vrot.slane %v341, 3
      %v450 = vrot.slane %v342, 3
      %v451 = vrot.slane %v343, 3
      %v452 = vrot.slane %v344, 3
      %v453 = vrot.slane %v345, 3
      %v454 = vrot.slane %v346, 3
      %v455 = vrot.slane %v347, 3
      %v456 = vrot.slane %v348, 3
      %v457 = vrot.slane %v349, 3
      %v458 = vrot.slane %v350, 3
      %v459 = vrot.slane %v351, 3
      %v460 = vrot.slane %v352, 3
      %v461 = vrot.slane %v353, 3
      %v462 = vrot.slane %v354, 3
      %v463 = vrot.slane %v355, 3
      %v464 = vrot.slane %v356, 3
      %v465 = vrot.slane %v357, 3
      %v466 = vrot.slane %v358, 3
      %v467 = vrot.slane %v359, 3
      %v468 = vrot.slane %v360, 3
      %v469 = vrot.slane %v361, 3
      %v470 = vrot.slane %v362, 3
      %v471 = vrot.slane %v363, 3
      %v472 = vrot.slane %v364, 3
      %v473 = vrot.slane %v365, 3
      %v474 = vrot.slane %v366, 3
      %v475 = vrot.slane %v367, 3
      %v476 = vrot.slane %v368, 3
      %v477 = vrot.slane %v369, 3
      %v478 = vrot.slane %v370, 3
      %v479 = vrot.slane %v371, 3
      %v480 = vrot.slane %v372, 3
      %v481 = vrot.slane %v373, 3
      %vm482 = vcmask 1040384
      %v485 = vsel %vm482, %v320, %v428
      %vm486 = vcmask 1041409
      %v487 = vsel %vm486, %v320, %v428
      %v489 = vrot.slane %v487, 1
      %vm490 = vcmask 1042434
      %v491 = vsel %vm490, %v320, %v428
      %v493 = vrot.slane %v491, 2
      %vm494 = vcmask 1043459
      %v495 = vsel %vm494, %v320, %v428
      %v497 = vrot.slane %v495, 3
      %v500 = vsel %vm482, %v321, %v429
      %v501 = vsel %vm486, %v321, %v429
      %v503 = vrot.slane %v501, 1
      %v504 = vsel %vm490, %v321, %v429
      %v506 = vrot.slane %v504, 2
      %v507 = vsel %vm494, %v321, %v429
      %v509 = vrot.slane %v507, 3
      %v512 = vsel %vm482, %v322, %v430
      %v515 = vsel %vm482, %v323, %v431
      %v516 = vsel %vm486, %v323, %v431
      %v518 = vrot.slane %v516, 1
      %v519 = vsel %vm490, %v323, %v431
      %v521 = vrot.slane %v519, 2
      %v522 = vsel %vm494, %v323, %v431
      %v524 = vrot.slane %v522, 3
      %v527 = vsel %vm482, %v324, %v432
      %v528 = vsel %vm486, %v324, %v432
      %v530 = vrot.slane %v528, 1
      %v531 = vsel %vm490, %v324, %v432
      %v533 = vrot.slane %v531, 2
      %v534 = vsel %vm494, %v324, %v432
      %v536 = vrot.slane %v534, 3
      %v539 = vsel %vm482, %v325, %v433
      %v542 = vsel %vm482, %v326, %v434
      %v543 = vsel %vm486, %v326, %v434
      %v545 = vrot.slane %v543, 1
      %v546 = vsel %vm490, %v326, %v434
      %v548 = vrot.slane %v546, 2
      %v549 = vsel %vm494, %v326, %v434
      %v551 = vrot.slane %v549, 3
      %v554 = vsel %vm482, %v327, %v435
      %v555 = vsel %vm486, %v327, %v435
      %v557 = vrot.slane %v555, 1
      %v558 = vsel %vm490, %v327, %v435
      %v560 = vrot.slane %v558, 2
      %v561 = vsel %vm494, %v327, %v435
      %v563 = vrot.slane %v561, 3
      %v566 = vsel %vm482, %v328, %v436
      %v569 = vsel %vm482, %v329, %v437
      %v570 = vsel %vm486, %v329, %v437
      %v572 = vrot.slane %v570, 1
      %v573 = vsel %vm490, %v329, %v437
      %v575 = vrot.slane %v573, 2
      %v576 = vsel %vm494, %v329, %v437
      %v578 = vrot.slane %v576, 3
      %v581 = vsel %vm482, %v330, %v438
      %v582 = vsel %vm486, %v330, %v438
      %v584 = vrot.slane %v582, 1
      %v585 = vsel %vm490, %v330, %v438
      %v587 = vrot.slane %v585, 2
      %v588 = vsel %vm494, %v330, %v438
      %v590 = vrot.slane %v588, 3
      %v593 = vsel %vm482, %v331, %v439
      %v596 = vsel %vm482, %v332, %v440
      %v597 = vsel %vm486, %v332, %v440
      %v599 = vrot.slane %v597, 1
      %v600 = vsel %vm490, %v332, %v440
      %v602 = vrot.slane %v600, 2
      %v603 = vsel %vm494, %v332, %v440
      %v605 = vrot.slane %v603, 3
      %v608 = vsel %vm482, %v333, %v441
      %v609 = vsel %vm486, %v333, %v441
      %v611 = vrot.slane %v609, 1
      %v612 = vsel %vm490, %v333, %v441
      %v614 = vrot.slane %v612, 2
      %v615 = vsel %vm494, %v333, %v441
      %v617 = vrot.slane %v615, 3
      %v620 = vsel %vm482, %v334, %v442
      %v623 = vsel %vm482, %v335, %v443
      %v624 = vsel %vm486, %v335, %v443
      %v626 = vrot.slane %v624, 1
      %v627 = vsel %vm490, %v335, %v443
      %v629 = vrot.slane %v627, 2
      %v630 = vsel %vm494, %v335, %v443
      %v632 = vrot.slane %v630, 3
      %v635 = vsel %vm482, %v336, %v444
      %v636 = vsel %vm486, %v336, %v444
      %v638 = vrot.slane %v636, 1
      %v639 = vsel %vm490, %v336, %v444
      %v641 = vrot.slane %v639, 2
      %v642 = vsel %vm494, %v336, %v444
      %v644 = vrot.slane %v642, 3
      %v647 = vsel %vm482, %v337, %v445
      %v650 = vsel %vm482, %v338, %v446
      %v651 = vsel %vm486, %v338, %v446
      %v653 = vrot.slane %v651, 1
      %v654 = vsel %vm490, %v338, %v446
      %v656 = vrot.slane %v654, 2
      %v657 = vsel %vm494, %v338, %v446
      %v659 = vrot.slane %v657, 3
      %v662 = vsel %vm482, %v339, %v447
      %v663 = vsel %vm486, %v339, %v447
      %v665 = vrot.slane %v663, 1
      %v666 = vsel %vm490, %v339, %v447
      %v668 = vrot.slane %v666, 2
      %v669 = vsel %vm494, %v339, %v447
      %v671 = vrot.slane %v669, 3
      %v674 = vsel %vm482, %v340, %v448
      %v677 = vsel %vm482, %v341, %v449
      %v678 = vsel %vm486, %v341, %v449
      %v680 = vrot.slane %v678, 1
      %v681 = vsel %vm490, %v341, %v449
      %v683 = vrot.slane %v681, 2
      %v684 = vsel %vm494, %v341, %v449
      %v686 = vrot.slane %v684, 3
      %v689 = vsel %vm482, %v342, %v450
      %v690 = vsel %vm486, %v342, %v450
      %v692 = vrot.slane %v690, 1
      %v693 = vsel %vm490, %v342, %v450
      %v695 = vrot.slane %v693, 2
      %v696 = vsel %vm494, %v342, %v450
      %v698 = vrot.slane %v696, 3
      %v701 = vsel %vm482, %v343, %v451
      %v704 = vsel %vm482, %v344, %v452
      %v705 = vsel %vm486, %v344, %v452
      %v707 = vrot.slane %v705, 1
      %v708 = vsel %vm490, %v344, %v452
      %v710 = vrot.slane %v708, 2
      %v711 = vsel %vm494, %v344, %v452
      %v713 = vrot.slane %v711, 3
      %v716 = vsel %vm482, %v345, %v453
      %v717 = vsel %vm486, %v345, %v453
      %v719 = vrot.slane %v717, 1
      %v720 = vsel %vm490, %v345, %v453
      %v722 = vrot.slane %v720, 2
      %v723 = vsel %vm494, %v345, %v453
      %v725 = vrot.slane %v723, 3
      %v728 = vsel %vm482, %v346, %v454
      %v731 = vsel %vm482, %v347, %v455
      %v732 = vsel %vm486, %v347, %v455
      %v734 = vrot.slane %v732, 1
      %v735 = vsel %vm490, %v347, %v455
      %v737 = vrot.slane %v735, 2
      %v738 = vsel %vm494, %v347, %v455
      %v740 = vrot.slane %v738, 3
      %v743 = vsel %vm482, %v348, %v456
      %v744 = vsel %vm486, %v348, %v456
      %v746 = vrot.slane %v744, 1
      %v747 = vsel %vm490, %v348, %v456
      %v749 = vrot.slane %v747, 2
      %v750 = vsel %vm494, %v348, %v456
      %v752 = vrot.slane %v750, 3
      %v755 = vsel %vm482, %v349, %v457
      %v758 = vsel %vm482, %v350, %v458
      %v759 = vsel %vm486, %v350, %v458
      %v761 = vrot.slane %v759, 1
      %v762 = vsel %vm490, %v350, %v458
      %v764 = vrot.slane %v762, 2
      %v765 = vsel %vm494, %v350, %v458
      %v767 = vrot.slane %v765, 3
      %v770 = vsel %vm482, %v351, %v459
      %v771 = vsel %vm486, %v351, %v459
      %v773 = vrot.slane %v771, 1
      %v774 = vsel %vm490, %v351, %v459
      %v776 = vrot.slane %v774, 2
      %v777 = vsel %vm494, %v351, %v459
      %v779 = vrot.slane %v777, 3
      %v782 = vsel %vm482, %v352, %v460
      %v785 = vsel %vm482, %v353, %v461
      %v786 = vsel %vm486, %v353, %v461
      %v788 = vrot.slane %v786, 1
      %v789 = vsel %vm490, %v353, %v461
      %v791 = vrot.slane %v789, 2
      %v792 = vsel %vm494, %v353, %v461
      %v794 = vrot.slane %v792, 3
      %v797 = vsel %vm482, %v354, %v462
      %v798 = vsel %vm486, %v354, %v462
      %v800 = vrot.slane %v798, 1
      %v801 = vsel %vm490, %v354, %v462
      %v803 = vrot.slane %v801, 2
      %v804 = vsel %vm494, %v354, %v462
      %v806 = vrot.slane %v804, 3
      %v809 = vsel %vm482, %v355, %v463
      %v812 = vsel %vm482, %v356, %v464
      %v813 = vsel %vm486, %v356, %v464
      %v815 = vrot.slane %v813, 1
      %v816 = vsel %vm490, %v356, %v464
      %v818 = vrot.slane %v816, 2
      %v819 = vsel %vm494, %v356, %v464
      %v821 = vrot.slane %v819, 3
      %v824 = vsel %vm482, %v357, %v465
      %v825 = vsel %vm486, %v357, %v465
      %v827 = vrot.slane %v825, 1
      %v828 = vsel %vm490, %v357, %v465
      %v830 = vrot.slane %v828, 2
      %v831 = vsel %vm494, %v357, %v465
      %v833 = vrot.slane %v831, 3
      %v836 = vsel %vm482, %v358, %v466
      %v839 = vsel %vm482, %v359, %v467
      %v840 = vsel %vm486, %v359, %v467
      %v842 = vrot.slane %v840, 1
      %v843 = vsel %vm490, %v359, %v467
      %v845 = vrot.slane %v843, 2
      %v846 = vsel %vm494, %v359, %v467
      %v848 = vrot.slane %v846, 3
      %v851 = vsel %vm482, %v360, %v468
      %v852 = vsel %vm486, %v360, %v468
      %v854 = vrot.slane %v852, 1
      %v855 = vsel %vm490, %v360, %v468
      %v857 = vrot.slane %v855, 2
      %v858 = vsel %vm494, %v360, %v468
      %v860 = vrot.slane %v858, 3
      %v863 = vsel %vm482, %v361, %v469
      %v866 = vsel %vm482, %v362, %v470
      %v867 = vsel %vm486, %v362, %v470
      %v869 = vrot.slane %v867, 1
      %v870 = vsel %vm490, %v362, %v470
      %v872 = vrot.slane %v870, 2
      %v873 = vsel %vm494, %v362, %v470
      %v875 = vrot.slane %v873, 3
      %v878 = vsel %vm482, %v363, %v471
      %v879 = vsel %vm486, %v363, %v471
      %v881 = vrot.slane %v879, 1
      %v882 = vsel %vm490, %v363, %v471
      %v884 = vrot.slane %v882, 2
      %v885 = vsel %vm494, %v363, %v471
      %v887 = vrot.slane %v885, 3
      %v890 = vsel %vm482, %v364, %v472
      %v893 = vsel %vm482, %v365, %v473
      %v894 = vsel %vm486, %v365, %v473
      %v896 = vrot.slane %v894, 1
      %v897 = vsel %vm490, %v365, %v473
      %v899 = vrot.slane %v897, 2
      %v900 = vsel %vm494, %v365, %v473
      %v902 = vrot.slane %v900, 3
      %v905 = vsel %vm482, %v366, %v474
      %v906 = vsel %vm486, %v366, %v474
      %v908 = vrot.slane %v906, 1
      %v909 = vsel %vm490, %v366, %v474
      %v911 = vrot.slane %v909, 2
      %v912 = vsel %vm494, %v366, %v474
      %v914 = vrot.slane %v912, 3
      %v917 = vsel %vm482, %v367, %v475
      %v920 = vsel %vm482, %v368, %v476
      %v921 = vsel %vm486, %v368, %v476
      %v923 = vrot.slane %v921, 1
      %v924 = vsel %vm490, %v368, %v476
      %v926 = vrot.slane %v924, 2
      %v927 = vsel %vm494, %v368, %v476
      %v929 = vrot.slane %v927, 3
      %v932 = vsel %vm482, %v369, %v477
      %v933 = vsel %vm486, %v369, %v477
      %v935 = vrot.slane %v933, 1
      %v936 = vsel %vm490, %v369, %v477
      %v938 = vrot.slane %v936, 2
      %v939 = vsel %vm494, %v369, %v477
      %v941 = vrot.slane %v939, 3
      %v944 = vsel %vm482, %v370, %v478
      %v947 = vsel %vm482, %v371, %v479
      %v948 = vsel %vm486, %v371, %v479
      %v950 = vrot.slane %v948, 1
      %v951 = vsel %vm490, %v371, %v479
      %v953 = vrot.slane %v951, 2
      %v954 = vsel %vm494, %v371, %v479
      %v956 = vrot.slane %v954, 3
      %v959 = vsel %vm482, %v372, %v480
      %v960 = vsel %vm486, %v372, %v480
      %v962 = vrot.slane %v960, 1
      %v963 = vsel %vm490, %v372, %v480
      %v965 = vrot.slane %v963, 2
      %v966 = vsel %vm494, %v372, %v480
      %v968 = vrot.slane %v966, 3
      %v971 = vsel %vm482, %v373, %v481
      %v972 = vld [vmem:[%s1] sm:$0x3]
      %973 = vst [vmem:[#allocation1] ss:$9 sm:$0xff] %v485
      %s975 = scalar_lea.vmem [#allocation1], 1
      %976 = vst [vmem:[%s975] ss:$9 sm:$0xff] %v489
      %s978 = scalar_lea.vmem [#allocation1], 2
      %979 = vst [vmem:[%s978] ss:$9 sm:$0xff] %v493
      %s981 = scalar_lea.vmem [#allocation1], 3
      %982 = vst [vmem:[%s981] ss:$9 sm:$0xff] %v497
      %s983 = scalar_lea.vmem [#allocation1], 4
      %984 = vst [vmem:[%s983] ss:$9 sm:$0xff] %v500
      %s986 = scalar_lea.vmem [#allocation1], 5
      %987 = vst [vmem:[%s986] ss:$9 sm:$0xff] %v503
      %s989 = scalar_lea.vmem [#allocation1], 6
      %990 = vst [vmem:[%s989] ss:$9 sm:$0xff] %v506
      %s992 = scalar_lea.vmem [#allocation1], 7
      %993 = vst [vmem:[%s992] ss:$9 sm:$0xff] %v509
      %v994 = vld [vmem:[#allocation1] sm:$0xff]
      %995 = vst [vmem:[#allocation1] ss:$9 sm:$0xff] %v512
      %996 = vst [vmem:[%s975] ss:$9 sm:$0xff] %v515
      %998 = vst [vmem:[%s978] ss:$9 sm:$0xff] %v518
      %1000 = vst [vmem:[%s981] ss:$9 sm:$0xff] %v521
      %1002 = vst [vmem:[%s983] ss:$9 sm:$0xff] %v524
      %1003 = vst [vmem:[%s986] ss:$9 sm:$0xff] %v527
      %1005 = vst [vmem:[%s989] ss:$9 sm:$0xff] %v530
      %1007 = vst [vmem:[%s992] ss:$9 sm:$0xff] %v533
      %v1008 = vld [vmem:[#allocation1] sm:$0xff]
      %1010 = vst [vmem:[#allocation1] ss:$9 sm:$0xff] %v536
      %1011 = vst [vmem:[%s975] ss:$9 sm:$0xff] %v539
      %1012 = vst [vmem:[%s978] ss:$9 sm:$0xff] %v542
      %1014 = vst [vmem:[%s981] ss:$9 sm:$0xff] %v545
      %1016 = vst [vmem:[%s983] ss:$9 sm:$0xff] %v548
      %1018 = vst [vmem:[%s986] ss:$9 sm:$0xff] %v551
      %1019 = vst [vmem:[%s989] ss:$9 sm:$0xff] %v554
      %1021 = vst [vmem:[%s992] ss:$9 sm:$0xff] %v557
      %v1022 = vld [vmem:[#allocation1] sm:$0xff]
      %1024 = vst [vmem:[#allocation1] ss:$9 sm:$0xff] %v560
      %1026 = vst [vmem:[%s975] ss:$9 sm:$0xff] %v563
      %1027 = vst [vmem:[%s978] ss:$9 sm:$0xff] %v566
      %1028 = vst [vmem:[%s981] ss:$9 sm:$0xff] %v569
      %1030 = vst [vmem:[%s983] ss:$9 sm:$0xff] %v572
      %1032 = vst [vmem:[%s986] ss:$9 sm:$0xff] %v575
      %1034 = vst [vmem:[%s989] ss:$9 sm:$0xff] %v578
      %1035 = vst [vmem:[%s992] ss:$9 sm:$0xff] %v581
      %v1036 = vld [vmem:[#allocation1] sm:$0xff]
      %1038 = vst [vmem:[#allocation1] ss:$9 sm:$0xff] %v584
      %1040 = vst [vmem:[%s975] ss:$9 sm:$0xff] %v587
      %1042 = vst [vmem:[%s978] ss:$9 sm:$0xff] %v590
      %1043 = vst [vmem:[%s981] ss:$9 sm:$0xff] %v593
      %1044 = vst [vmem:[%s983] ss:$9 sm:$0xff] %v596
      %1046 = vst [vmem:[%s986] ss:$9 sm:$0xff] %v599
      %1048 = vst [vmem:[%s989] ss:$9 sm:$0xff] %v602
      %1050 = vst [vmem:[%s992] ss:$9 sm:$0xff] %v605
      %v1051 = vld [vmem:[#allocation1] sm:$0xff]
      %1052 = vst [vmem:[#allocation1] ss:$9 sm:$0xff] %v608
      %1054 = vst [vmem:[%s975] ss:$9 sm:$0xff] %v611
      %1056 = vst [vmem:[%s978] ss:$9 sm:$0xff] %v614
      %1058 = vst [vmem:[%s981] ss:$9 sm:$0xff] %v617
      %1059 = vst [vmem:[%s983] ss:$9 sm:$0xff] %v620
      %1060 = vst [vmem:[%s986] ss:$9 sm:$0xff] %v623
      %1062 = vst [vmem:[%s989] ss:$9 sm:$0xff] %v626
      %1064 = vst [vmem:[%s992] ss:$9 sm:$0xff] %v629
      %v1065 = vld [vmem:[#allocation1] sm:$0xff]
      %1067 = vst [vmem:[#allocation1] ss:$9 sm:$0xff] %v632
      %1068 = vst [vmem:[%s975] ss:$9 sm:$0xff] %v635
      %1070 = vst [vmem:[%s978] ss:$9 sm:$0xff] %v638
      %1072 = vst [vmem:[%s981] ss:$9 sm:$0xff] %v641
      %1074 = vst [vmem:[%s983] ss:$9 sm:$0xff] %v644
      %1075 = vst [vmem:[%s986] ss:$9 sm:$0xff] %v647
      %1076 = vst [vmem:[%s989] ss:$9 sm:$0xff] %v650
      %1078 = vst [vmem:[%s992] ss:$9 sm:$0xff] %v653
      %v1079 = vld [vmem:[#allocation1] sm:$0xff]
      %1081 = vst [vmem:[#allocation1] ss:$9 sm:$0xff] %v656
      %1083 = vst [vmem:[%s975] ss:$9 sm:$0xff] %v659
      %1084 = vst [vmem:[%s978] ss:$9 sm:$0xff] %v662
      %1086 = vst [vmem:[%s981] ss:$9 sm:$0xff] %v665
      %1088 = vst [vmem:[%s983] ss:$9 sm:$0xff] %v668
      %1090 = vst [vmem:[%s986] ss:$9 sm:$0xff] %v671
      %1091 = vst [vmem:[%s989] ss:$9 sm:$0xff] %v674
      %1092 = vst [vmem:[%s992] ss:$9 sm:$0xff] %v677
      %v1093 = vld [vmem:[#allocation1] sm:$0xff]
      %1095 = vst [vmem:[#allocation1] ss:$9 sm:$0xff] %v680
      %1097 = vst [vmem:[%s975] ss:$9 sm:$0xff] %v683
      %1099 = vst [vmem:[%s978] ss:$9 sm:$0xff] %v686
      %1100 = vst [vmem:[%s981] ss:$9 sm:$0xff] %v689
      %1102 = vst [vmem:[%s983] ss:$9 sm:$0xff] %v692
      %1104 = vst [vmem:[%s986] ss:$9 sm:$0xff] %v695
      %1106 = vst [vmem:[%s989] ss:$9 sm:$0xff] %v698
      %1107 = vst [vmem:[%s992] ss:$9 sm:$0xff] %v701
      %v1108 = vld [vmem:[#allocation1] sm:$0xff]
      %1109 = vst [vmem:[#allocation1] ss:$9 sm:$0xff] %v704
      %1111 = vst [vmem:[%s975] ss:$9 sm:$0xff] %v707
      %1113 = vst [vmem:[%s978] ss:$9 sm:$0xff] %v710
      %1115 = vst [vmem:[%s981] ss:$9 sm:$0xff] %v713
      %1116 = vst [vmem:[%s983] ss:$9 sm:$0xff] %v716
      %1118 = vst [vmem:[%s986] ss:$9 sm:$0xff] %v719
      %1120 = vst [vmem:[%s989] ss:$9 sm:$0xff] %v722
      %1122 = vst [vmem:[%s992] ss:$9 sm:$0xff] %v725
      %v1123 = vld [vmem:[#allocation1] sm:$0xff]
      %1124 = vst [vmem:[#allocation1] ss:$9 sm:$0xff] %v728
      %1125 = vst [vmem:[%s975] ss:$9 sm:$0xff] %v731
      %1127 = vst [vmem:[%s978] ss:$9 sm:$0xff] %v734
      %1129 = vst [vmem:[%s981] ss:$9 sm:$0xff] %v737
      %1131 = vst [vmem:[%s983] ss:$9 sm:$0xff] %v740
      %1132 = vst [vmem:[%s986] ss:$9 sm:$0xff] %v743
      %1134 = vst [vmem:[%s989] ss:$9 sm:$0xff] %v746
      %1136 = vst [vmem:[%s992] ss:$9 sm:$0xff] %v749
      %v1137 = vld [vmem:[#allocation1] sm:$0xff]
      %1139 = vst [vmem:[#allocation1] ss:$9 sm:$0xff] %v752
      %1140 = vst [vmem:[%s975] ss:$9 sm:$0xff] %v755
      %1141 = vst [vmem:[%s978] ss:$9 sm:$0xff] %v758
      %1143 = vst [vmem:[%s981] ss:$9 sm:$0xff] %v761
      %1145 = vst [vmem:[%s983] ss:$9 sm:$0xff] %v764
      %1147 = vst [vmem:[%s986] ss:$9 sm:$0xff] %v767
      %1148 = vst [vmem:[%s989] ss:$9 sm:$0xff] %v770
      %1150 = vst [vmem:[%s992] ss:$9 sm:$0xff] %v773
      %v1151 = vld [vmem:[#allocation1] sm:$0xff]
      %1153 = vst [vmem:[#allocation1] ss:$9 sm:$0xff] %v776
      %1155 = vst [vmem:[%s975] ss:$9 sm:$0xff] %v779
      %1156 = vst [vmem:[%s978] ss:$9 sm:$0xff] %v782
      %1157 = vst [vmem:[%s981] ss:$9 sm:$0xff] %v785
      %1159 = vst [vmem:[%s983] ss:$9 sm:$0xff] %v788
      %1161 = vst [vmem:[%s986] ss:$9 sm:$0xff] %v791
      %1163 = vst [vmem:[%s989] ss:$9 sm:$0xff] %v794
      %1164 = vst [vmem:[%s992] ss:$9 sm:$0xff] %v797
      %v1165 = vld [vmem:[#allocation1] sm:$0xff]
      %1167 = vst [vmem:[#allocation1] ss:$9 sm:$0xff] %v800
      %1169 = vst [vmem:[%s975] ss:$9 sm:$0xff] %v803
      %1171 = vst [vmem:[%s978] ss:$9 sm:$0xff] %v806
      %1172 = vst [vmem:[%s981] ss:$9 sm:$0xff] %v809
      %1173 = vst [vmem:[%s983] ss:$9 sm:$0xff] %v812
      %1175 = vst [vmem:[%s986] ss:$9 sm:$0xff] %v815
      %1177 = vst [vmem:[%s989] ss:$9 sm:$0xff] %v818
      %1179 = vst [vmem:[%s992] ss:$9 sm:$0xff] %v821
      %v1180 = vld [vmem:[#allocation1] sm:$0xff]
      %1181 = vst [vmem:[#allocation1] ss:$9 sm:$0xff] %v824
      %1183 = vst [vmem:[%s975] ss:$9 sm:$0xff] %v827
      %1185 = vst [vmem:[%s978] ss:$9 sm:$0xff] %v830
      %1187 = vst [vmem:[%s981] ss:$9 sm:$0xff] %v833
      %1188 = vst [vmem:[%s983] ss:$9 sm:$0xff] %v836
      %1189 = vst [vmem:[%s986] ss:$9 sm:$0xff] %v839
      %1191 = vst [vmem:[%s989] ss:$9 sm:$0xff] %v842
      %1193 = vst [vmem:[%s992] ss:$9 sm:$0xff] %v845
      %v1194 = vld [vmem:[#allocation1] sm:$0xff]
      %1196 = vst [vmem:[#allocation1] ss:$9 sm:$0xff] %v848
      %1197 = vst [vmem:[%s975] ss:$9 sm:$0xff] %v851
      %1199 = vst [vmem:[%s978] ss:$9 sm:$0xff] %v854
      %1201 = vst [vmem:[%s981] ss:$9 sm:$0xff] %v857
      %1203 = vst [vmem:[%s983] ss:$9 sm:$0xff] %v860
      %1204 = vst [vmem:[%s986] ss:$9 sm:$0xff] %v863
      %1205 = vst [vmem:[%s989] ss:$9 sm:$0xff] %v866
      %1207 = vst [vmem:[%s992] ss:$9 sm:$0xff] %v869
      %v1208 = vld [vmem:[#allocation1] sm:$0xff]
      %1210 = vst [vmem:[#allocation1] ss:$9 sm:$0xff] %v872
      %1212 = vst [vmem:[%s975] ss:$9 sm:$0xff] %v875
      %1213 = vst [vmem:[%s978] ss:$9 sm:$0xff] %v878
      %1215 = vst [vmem:[%s981] ss:$9 sm:$0xff] %v881
      %1217 = vst [vmem:[%s983] ss:$9 sm:$0xff] %v884
      %1219 = vst [vmem:[%s986] ss:$9 sm:$0xff] %v887
      %1220 = vst [vmem:[%s989] ss:$9 sm:$0xff] %v890
      %1221 = vst [vmem:[%s992] ss:$9 sm:$0xff] %v893
      %v1222 = vld [vmem:[#allocation1] sm:$0xff]
      %1224 = vst [vmem:[#allocation1] ss:$9 sm:$0xff] %v896
      %1226 = vst [vmem:[%s975] ss:$9 sm:$0xff] %v899
      %1228 = vst [vmem:[%s978] ss:$9 sm:$0xff] %v902
      %1229 = vst [vmem:[%s981] ss:$9 sm:$0xff] %v905
      %1231 = vst [vmem:[%s983] ss:$9 sm:$0xff] %v908
      %1233 = vst [vmem:[%s986] ss:$9 sm:$0xff] %v911
      %1235 = vst [vmem:[%s989] ss:$9 sm:$0xff] %v914
      %1236 = vst [vmem:[%s992] ss:$9 sm:$0xff] %v917
      %v1237 = vld [vmem:[#allocation1] sm:$0xff]
      %1238 = vst [vmem:[#allocation1] ss:$9 sm:$0xff] %v920
      %1240 = vst [vmem:[%s975] ss:$9 sm:$0xff] %v923
      %1242 = vst [vmem:[%s978] ss:$9 sm:$0xff] %v926
      %1244 = vst [vmem:[%s981] ss:$9 sm:$0xff] %v929
      %1245 = vst [vmem:[%s983] ss:$9 sm:$0xff] %v932
      %1247 = vst [vmem:[%s986] ss:$9 sm:$0xff] %v935
      %1249 = vst [vmem:[%s989] ss:$9 sm:$0xff] %v938
      %1251 = vst [vmem:[%s992] ss:$9 sm:$0xff] %v941
      %v1252 = vld [vmem:[#allocation1] sm:$0xff]
      %1253 = vst [vmem:[#allocation1] ss:$9 sm:$0xff] %v944
      %1254 = vst [vmem:[%s975] ss:$9 sm:$0xff] %v947
      %1256 = vst [vmem:[%s978] ss:$9 sm:$0xff] %v950
      %1258 = vst [vmem:[%s981] ss:$9 sm:$0xff] %v953
      %1260 = vst [vmem:[%s983] ss:$9 sm:$0xff] %v956
      %1261 = vst [vmem:[%s986] ss:$9 sm:$0xff] %v959
      %1263 = vst [vmem:[%s989] ss:$9 sm:$0xff] %v962
      %1265 = vst [vmem:[%s992] ss:$9 sm:$0xff] %v965
      %v1266 = vld [vmem:[#allocation1] sm:$0xff]
      %1268 = vst [vmem:[#allocation1] ss:$9 sm:$0xff] %v968
      %1269 = vst [vmem:[%s975] ss:$9 sm:$0xff] %v971
      %v1270 = vld [vmem:[#allocation1] sm:$0xff]
      %vm1271 = vcmask 31744
      %v1272 = vsel %vm1271, %v994, 0
      %v1274 = vsel %vm1271, %v1008, 0
      %v1276 = vsel %vm1271, %v1022, 0
      %v1278 = vsel %vm1271, %v1036, 0
      %v1280 = vsel %vm1271, %v1051, 0
      %v1282 = vsel %vm1271, %v1065, 0
      %v1284 = vsel %vm1271, %v1079, 0
      %v1286 = vsel %vm1271, %v1093, 0
      %v1288 = vsel %vm1271, %v1108, 0
      %v1290 = vsel %vm1271, %v1123, 0
      %v1292 = vsel %vm1271, %v1137, 0
      %v1294 = vsel %vm1271, %v1151, 0
      %v1296 = vsel %vm1271, %v1165, 0
      %v1298 = vsel %vm1271, %v1180, 0
      %v1300 = vsel %vm1271, %v1194, 0
      %v1302 = vsel %vm1271, %v1208, 0
      %v1304 = vsel %vm1271, %v1222, 0
      %v1306 = vsel %vm1271, %v1237, 0
      %v1308 = vsel %vm1271, %v1252, 0
      %v1310 = vsel %vm1271, %v1266, 0
      %v1312 = vsel %vm1271, %v1270, 0
      %vm1314 = vcmask 1041408
      %v1316 = vsel %vm1314, %v972, 0
      %1318 = vmatpush.bf16.msra.mxu0 0
      %1319 = vmatpush.bf16.msra.mxu0 0
      %1320 = vmatpush.bf16.msra.mxu0 0
      %1321 = vmatpush.bf16.msra.mxu0 0
      %1322 = vmatpush.bf16.msra.mxu0 0
      %1323 = vmatpush.bf16.msra.mxu0 0
      %1324 = vmatpush.bf16.msra.mxu0 0
      %1325 = vmatpush.bf16.msra.mxu0 %v1316
      %1326 = vmatmul.bf16.gmra.mxu0 %v1272
      %v1327 = vpop.f32.mrf.mxu0
      %v1328 = vadd.f32 0.0, %v1327
      %v1329 = vpop.f32.mrf.mxu0
      %v1330 = vadd.f32 0.0, %v1329
      %1331 = vmatmul.bf16.gmra.mxu0 %v1274
      %v1332 = vpop.f32.mrf.mxu0
      %v1333 = vadd.f32 0.0, %v1332
      %v1334 = vpop.f32.mrf.mxu0
      %v1335 = vadd.f32 0.0, %v1334
      %1336 = vmatmul.bf16.gmra.mxu0 %v1276
      %v1337 = vpop.f32.mrf.mxu0
      %v1338 = vadd.f32 0.0, %v1337
      %v1339 = vpop.f32.mrf.mxu0
      %v1340 = vadd.f32 0.0, %v1339
      %1341 = vmatmul.bf16.gmra.mxu0 %v1278
      %v1342 = vpop.f32.mrf.mxu0
      %v1343 = vadd.f32 0.0, %v1342
      %v1344 = vpop.f32.mrf.mxu0
      %v1345 = vadd.f32 0.0, %v1344
      %1346 = vmatmul.bf16.gmra.mxu0 %v1280
      %v1347 = vpop.f32.mrf.mxu0
      %v1348 = vadd.f32 0.0, %v1347
      %v1349 = vpop.f32.mrf.mxu0
      %v1350 = vadd.f32 0.0, %v1349
      %1351 = vmatmul.bf16.gmra.mxu0 %v1282
      %v1352 = vpop.f32.mrf.mxu0
      %v1353 = vadd.f32 0.0, %v1352
      %v1354 = vpop.f32.mrf.mxu0
      %v1355 = vadd.f32 0.0, %v1354
      %1356 = vmatmul.bf16.gmra.mxu0 %v1284
      %v1357 = vpop.f32.mrf.mxu0
      %v1358 = vadd.f32 0.0, %v1357
      %v1359 = vpop.f32.mrf.mxu0
      %v1360 = vadd.f32 0.0, %v1359
      %1361 = vmatmul.bf16.gmra.mxu0 %v1286
      %v1362 = vpop.f32.mrf.mxu0
      %v1363 = vadd.f32 0.0, %v1362
      %v1364 = vpop.f32.mrf.mxu0
      %v1365 = vadd.f32 0.0, %v1364
      %1366 = vmatmul.bf16.gmra.mxu0 %v1288
      %v1367 = vpop.f32.mrf.mxu0
      %v1368 = vadd.f32 0.0, %v1367
      %v1369 = vpop.f32.mrf.mxu0
      %v1370 = vadd.f32 0.0, %v1369
      %1371 = vmatmul.bf16.gmra.mxu0 %v1290
      %v1372 = vpop.f32.mrf.mxu0
      %v1373 = vadd.f32 0.0, %v1372
      %v1374 = vpop.f32.mrf.mxu0
      %v1375 = vadd.f32 0.0, %v1374
      %1376 = vmatmul.bf16.gmra.mxu0 %v1292
      %v1377 = vpop.f32.mrf.mxu0
      %v1378 = vadd.f32 0.0, %v1377
      %v1379 = vpop.f32.mrf.mxu0
      %v1380 = vadd.f32 0.0, %v1379
      %1381 = vmatmul.bf16.gmra.mxu0 %v1294
      %v1382 = vpop.f32.mrf.mxu0
      %v1383 = vadd.f32 0.0, %v1382
      %v1384 = vpop.f32.mrf.mxu0
      %v1385 = vadd.f32 0.0, %v1384
      %1386 = vmatmul.bf16.gmra.mxu0 %v1296
      %v1387 = vpop.f32.mrf.mxu0
      %v1388 = vadd.f32 0.0, %v1387
      %v1389 = vpop.f32.mrf.mxu0
      %v1390 = vadd.f32 0.0, %v1389
      %1391 = vmatmul.bf16.gmra.mxu0 %v1298
      %v1392 = vpop.f32.mrf.mxu0
      %v1393 = vadd.f32 0.0, %v1392
      %v1394 = vpop.f32.mrf.mxu0
      %v1395 = vadd.f32 0.0, %v1394
      %1396 = vmatmul.bf16.gmra.mxu0 %v1300
      %v1397 = vpop.f32.mrf.mxu0
      %v1398 = vadd.f32 0.0, %v1397
      %v1399 = vpop.f32.mrf.mxu0
      %v1400 = vadd.f32 0.0, %v1399
      %1401 = vmatmul.bf16.gmra.mxu0 %v1302
      %v1402 = vpop.f32.mrf.mxu0
      %v1403 = vadd.f32 0.0, %v1402
      %v1404 = vpop.f32.mrf.mxu0
      %v1405 = vadd.f32 0.0, %v1404
      %1406 = vmatmul.bf16.gmra.mxu0 %v1304
      %v1407 = vpop.f32.mrf.mxu0
      %v1408 = vadd.f32 0.0, %v1407
      %v1409 = vpop.f32.mrf.mxu0
      %v1410 = vadd.f32 0.0, %v1409
      %1411 = vmatmul.bf16.gmra.mxu0 %v1306
      %v1412 = vpop.f32.mrf.mxu0
      %v1413 = vadd.f32 0.0, %v1412
      %v1414 = vpop.f32.mrf.mxu0
      %v1415 = vadd.f32 0.0, %v1414
      %1416 = vmatmul.bf16.gmra.mxu0 %v1308
      %v1417 = vpop.f32.mrf.mxu0
      %v1418 = vadd.f32 0.0, %v1417
      %v1419 = vpop.f32.mrf.mxu0
      %v1420 = vadd.f32 0.0, %v1419
      %1421 = vmatmul.bf16.gmra.mxu0 %v1310
      %v1422 = vpop.f32.mrf.mxu0
      %v1423 = vadd.f32 0.0, %v1422
      %v1424 = vpop.f32.mrf.mxu0
      %v1425 = vadd.f32 0.0, %v1424
      %1426 = vmatmul.bf16.gmra.mxu0 %v1312
      %v1427 = vpop.f32.mrf.mxu0
      %v1428 = vadd.f32 0.0, %v1427
      %v1429 = vpop.f32.mrf.mxu0
      %1430 = vdwg.mxu0
      %v1431 = vld [vmem:[%s2] sm:$0x1]
      %v1433 = vperm.slane %v1431, 0
      %v1435 = vmul.f32 %v1328, %v1433
      %v1436 = vmul.f32 %v1330, %v1433
      %v1437 = vmul.f32 %v1333, %v1433
      %v1438 = vmul.f32 %v1335, %v1433
      %v1439 = vmul.f32 %v1338, %v1433
      %v1440 = vmul.f32 %v1340, %v1433
      %v1441 = vmul.f32 %v1343, %v1433
      %v1442 = vmul.f32 %v1345, %v1433
      %v1443 = vmul.f32 %v1348, %v1433
      %v1444 = vmul.f32 %v1350, %v1433
      %v1445 = vmul.f32 %v1353, %v1433
      %v1446 = vmul.f32 %v1355, %v1433
      %v1447 = vmul.f32 %v1358, %v1433
      %v1448 = vmul.f32 %v1360, %v1433
      %v1449 = vmul.f32 %v1363, %v1433
      %v1450 = vmul.f32 %v1365, %v1433
      %v1451 = vmul.f32 %v1368, %v1433
      %v1452 = vmul.f32 %v1370, %v1433
      %v1453 = vmul.f32 %v1373, %v1433
      %v1454 = vmul.f32 %v1375, %v1433
      %v1455 = vmul.f32 %v1378, %v1433
      %v1456 = vmul.f32 %v1380, %v1433
      %v1457 = vmul.f32 %v1383, %v1433
      %v1458 = vmul.f32 %v1385, %v1433
      %v1459 = vmul.f32 %v1388, %v1433
      %v1460 = vmul.f32 %v1390, %v1433
      %v1461 = vmul.f32 %v1393, %v1433
      %v1462 = vmul.f32 %v1395, %v1433
      %v1463 = vmul.f32 %v1398, %v1433
      %v1464 = vmul.f32 %v1400, %v1433
      %v1465 = vmul.f32 %v1403, %v1433
      %v1466 = vmul.f32 %v1405, %v1433
      %v1467 = vmul.f32 %v1408, %v1433
      %v1468 = vmul.f32 %v1410, %v1433
      %v1469 = vmul.f32 %v1413, %v1433
      %v1470 = vmul.f32 %v1415, %v1433
      %v1471 = vmul.f32 %v1418, %v1433
      %v1472 = vmul.f32 %v1420, %v1433
      %v1473 = vmul.f32 %v1423, %v1433
      %v1474 = vmul.f32 %v1425, %v1433
      %v1475 = vmul.f32 %v1428, %v1433
      %v1476 = vld [vmem:[%s3] sm:$0x1]
      %v1478 = vperm.slane %v1476, 0
      %v1480 = vadd.f32 %v1435, %v1478
      %v1481 = vadd.f32 %v1436, %v1478
      %v1482 = vadd.f32 %v1437, %v1478
      %v1483 = vadd.f32 %v1438, %v1478
      %v1484 = vadd.f32 %v1439, %v1478
      %v1485 = vadd.f32 %v1440, %v1478
      %v1486 = vadd.f32 %v1441, %v1478
      %v1487 = vadd.f32 %v1442, %v1478
      %v1488 = vadd.f32 %v1443, %v1478
      %v1489 = vadd.f32 %v1444, %v1478
      %v1490 = vadd.f32 %v1445, %v1478
      %v1491 = vadd.f32 %v1446, %v1478
      %v1492 = vadd.f32 %v1447, %v1478
      %v1493 = vadd.f32 %v1448, %v1478
      %v1494 = vadd.f32 %v1449, %v1478
      %v1495 = vadd.f32 %v1450, %v1478
      %v1496 = vadd.f32 %v1451, %v1478
      %v1497 = vadd.f32 %v1452, %v1478
      %v1498 = vadd.f32 %v1453, %v1478
      %v1499 = vadd.f32 %v1454, %v1478
      %v1500 = vadd.f32 %v1455, %v1478
      %v1501 = vadd.f32 %v1456, %v1478
      %v1502 = vadd.f32 %v1457, %v1478
      %v1503 = vadd.f32 %v1458, %v1478
      %v1504 = vadd.f32 %v1459, %v1478
      %v1505 = vadd.f32 %v1460, %v1478
      %v1506 = vadd.f32 %v1461, %v1478
      %v1507 = vadd.f32 %v1462, %v1478
      %v1508 = vadd.f32 %v1463, %v1478
      %v1509 = vadd.f32 %v1464, %v1478
      %v1510 = vadd.f32 %v1465, %v1478
      %v1511 = vadd.f32 %v1466, %v1478
      %v1512 = vadd.f32 %v1467, %v1478
      %v1513 = vadd.f32 %v1468, %v1478
      %v1514 = vadd.f32 %v1469, %v1478
      %v1515 = vadd.f32 %v1470, %v1478
      %v1516 = vadd.f32 %v1471, %v1478
      %v1517 = vadd.f32 %v1472, %v1478
      %v1518 = vadd.f32 %v1473, %v1478
      %v1519 = vadd.f32 %v1474, %v1478
      %v1520 = vadd.f32 %v1475, %v1478
      %v1521 = vxor.u32 %v1480, 2147483648
      %v1522 = vxor.u32 %v1481, 2147483648
      %v1523 = vxor.u32 %v1482, 2147483648
      %v1524 = vxor.u32 %v1483, 2147483648
      %v1525 = vxor.u32 %v1484, 2147483648
      %v1526 = vxor.u32 %v1485, 2147483648
      %v1527 = vxor.u32 %v1486, 2147483648
      %v1528 = vxor.u32 %v1487, 2147483648
      %v1529 = vxor.u32 %v1488, 2147483648
      %v1530 = vxor.u32 %v1489, 2147483648
      %v1531 = vxor.u32 %v1490, 2147483648
      %v1532 = vxor.u32 %v1491, 2147483648
      %v1533 = vxor.u32 %v1492, 2147483648
      %v1534 = vxor.u32 %v1493, 2147483648
      %v1535 = vxor.u32 %v1494, 2147483648
      %v1536 = vxor.u32 %v1495, 2147483648
      %v1537 = vxor.u32 %v1496, 2147483648
      %v1538 = vxor.u32 %v1497, 2147483648
      %v1539 = vxor.u32 %v1498, 2147483648
      %v1540 = vxor.u32 %v1499, 2147483648
      %v1541 = vxor.u32 %v1500, 2147483648
      %v1542 = vxor.u32 %v1501, 2147483648
      %v1543 = vxor.u32 %v1502, 2147483648
      %v1544 = vxor.u32 %v1503, 2147483648
      %v1545 = vxor.u32 %v1504, 2147483648
      %v1546 = vxor.u32 %v1505, 2147483648
      %v1547 = vxor.u32 %v1506, 2147483648
      %v1548 = vxor.u32 %v1507, 2147483648
      %v1549 = vxor.u32 %v1508, 2147483648
      %v1550 = vxor.u32 %v1509, 2147483648
      %v1551 = vxor.u32 %v1510, 2147483648
      %v1552 = vxor.u32 %v1511, 2147483648
      %v1553 = vxor.u32 %v1512, 2147483648
      %v1554 = vxor.u32 %v1513, 2147483648
      %v1555 = vxor.u32 %v1514, 2147483648
      %v1556 = vxor.u32 %v1515, 2147483648
      %v1557 = vxor.u32 %v1516, 2147483648
      %v1558 = vxor.u32 %v1517, 2147483648
      %v1559 = vxor.u32 %v1518, 2147483648
      %v1560 = vxor.u32 %v1519, 2147483648
      %v1561 = vxor.u32 %v1520, 2147483648
      %v1562 = vmul.f32 %v1521, 1.442695
      %v1563 = vpow.pop %v1562
      %v1564 = vmul.f32 %v1522, 1.442695
      %v1565 = vpow.pop %v1564
      %v1566 = vmul.f32 %v1523, 1.442695
      %v1567 = vpow.pop %v1566
      %v1568 = vmul.f32 %v1524, 1.442695
      %v1569 = vpow.pop %v1568
      %v1570 = vmul.f32 %v1525, 1.442695
      %v1571 = vpow.pop %v1570
      %v1572 = vmul.f32 %v1526, 1.442695
      %v1573 = vpow.pop %v1572
      %v1574 = vmul.f32 %v1527, 1.442695
      %v1575 = vpow.pop %v1574
      %v1576 = vmul.f32 %v1528, 1.442695
      %v1577 = vpow.pop %v1576
      %v1578 = vmul.f32 %v1529, 1.442695
      %v1579 = vpow.pop %v1578
      %v1580 = vmul.f32 %v1530, 1.442695
      %v1581 = vpow.pop %v1580
      %v1582 = vmul.f32 %v1531, 1.442695
      %v1583 = vpow.pop %v1582
      %v1584 = vmul.f32 %v1532, 1.442695
      %v1585 = vpow.pop %v1584
      %v1586 = vmul.f32 %v1533, 1.442695
      %v1587 = vpow.pop %v1586
      %v1588 = vmul.f32 %v1534, 1.442695
      %v1589 = vpow.pop %v1588
      %v1590 = vmul.f32 %v1535, 1.442695
      %v1591 = vpow.pop %v1590
      %v1592 = vmul.f32 %v1536, 1.442695
      %v1593 = vpow.pop %v1592
      %v1594 = vmul.f32 %v1537, 1.442695
      %v1595 = vpow.pop %v1594
      %v1596 = vmul.f32 %v1538, 1.442695
      %v1597 = vpow.pop %v1596
      %v1598 = vmul.f32 %v1539, 1.442695
      %v1599 = vpow.pop %v1598
      %v1600 = vmul.f32 %v1540, 1.442695
      %v1601 = vpow.pop %v1600
      %v1602 = vmul.f32 %v1541, 1.442695
      %v1603 = vpow.pop %v1602
      %v1604 = vmul.f32 %v1542, 1.442695
      %v1605 = vpow.pop %v1604
      %v1606 = vmul.f32 %v1543, 1.442695
      %v1607 = vpow.pop %v1606
      %v1608 = vmul.f32 %v1544, 1.442695
      %v1609 = vpow.pop %v1608
      %v1610 = vmul.f32 %v1545, 1.442695
      %v1611 = vpow.pop %v1610
      %v1612 = vmul.f32 %v1546, 1.442695
      %v1613 = vpow.pop %v1612
      %v1614 = vmul.f32 %v1547, 1.442695
      %v1615 = vpow.pop %v1614
      %v1616 = vmul.f32 %v1548, 1.442695
      %v1617 = vpow.pop %v1616
      %v1618 = vmul.f32 %v1549, 1.442695
      %v1619 = vpow.pop %v1618
      %v1620 = vmul.f32 %v1550, 1.442695
      %v1621 = vpow.pop %v1620
      %v1622 = vmul.f32 %v1551, 1.442695
      %v1623 = vpow.pop %v1622
      %v1624 = vmul.f32 %v1552, 1.442695
      %v1625 = vpow.pop %v1624
      %v1626 = vmul.f32 %v1553, 1.442695
      %v1627 = vpow.pop %v1626
      %v1628 = vmul.f32 %v1554, 1.442695
      %v1629 = vpow.pop %v1628
      %v1630 = vmul.f32 %v1555, 1.442695
      %v1631 = vpow.pop %v1630
      %v1632 = vmul.f32 %v1556, 1.442695
      %v1633 = vpow.pop %v1632
      %v1634 = vmul.f32 %v1557, 1.442695
      %v1635 = vpow.pop %v1634
      %v1636 = vmul.f32 %v1558, 1.442695
      %v1637 = vpow.pop %v1636
      %v1638 = vmul.f32 %v1559, 1.442695
      %v1639 = vpow.pop %v1638
      %v1640 = vmul.f32 %v1560, 1.442695
      %v1641 = vpow.pop %v1640
      %v1642 = vmul.f32 %v1561, 1.442695
      %v1643 = vpow.pop %v1642
      %v1644 = vadd.f32 %v1563, 1.0
      %v1645 = vadd.f32 %v1565, 1.0
      %v1646 = vadd.f32 %v1567, 1.0
      %v1647 = vadd.f32 %v1569, 1.0
      %v1648 = vadd.f32 %v1571, 1.0
      %v1649 = vadd.f32 %v1573, 1.0
      %v1650 = vadd.f32 %v1575, 1.0
      %v1651 = vadd.f32 %v1577, 1.0
      %v1652 = vadd.f32 %v1579, 1.0
      %v1653 = vadd.f32 %v1581, 1.0
      %v1654 = vadd.f32 %v1583, 1.0
      %v1655 = vadd.f32 %v1585, 1.0
      %v1656 = vadd.f32 %v1587, 1.0
      %v1657 = vadd.f32 %v1589, 1.0
      %v1658 = vadd.f32 %v1591, 1.0
      %v1659 = vadd.f32 %v1593, 1.0
      %v1660 = vadd.f32 %v1595, 1.0
      %v1661 = vadd.f32 %v1597, 1.0
      %v1662 = vadd.f32 %v1599, 1.0
      %v1663 = vadd.f32 %v1601, 1.0
      %v1664 = vadd.f32 %v1603, 1.0
      %v1665 = vadd.f32 %v1605, 1.0
      %v1666 = vadd.f32 %v1607, 1.0
      %v1667 = vadd.f32 %v1609, 1.0
      %v1668 = vadd.f32 %v1611, 1.0
      %v1669 = vadd.f32 %v1613, 1.0
      %v1670 = vadd.f32 %v1615, 1.0
      %v1671 = vadd.f32 %v1617, 1.0
      %v1672 = vadd.f32 %v1619, 1.0
      %v1673 = vadd.f32 %v1621, 1.0
      %v1674 = vadd.f32 %v1623, 1.0
      %v1675 = vadd.f32 %v1625, 1.0
      %v1676 = vadd.f32 %v1627, 1.0
      %v1677 = vadd.f32 %v1629, 1.0
      %v1678 = vadd.f32 %v1631, 1.0
      %v1679 = vadd.f32 %v1633, 1.0
      %v1680 = vadd.f32 %v1635, 1.0
      %v1681 = vadd.f32 %v1637, 1.0
      %v1682 = vadd.f32 %v1639, 1.0
      %v1683 = vadd.f32 %v1641, 1.0
      %v1684 = vadd.f32 %v1643, 1.0
      %v1685 = vrcp.pop %v1644
      %v1686 = vmul.f32 %v1644, %v1685
      %v1687 = vsub.f32 1.0, %v1686
      %v1688 = vmul.f32 %v1685, %v1687
      %v1689 = vadd.f32 %v1685, %v1688
      %vm1690 = vweird.f32 %v1644
      %vm1691 = vweird.f32 %v1685
      %vm1692 = vmor %vm1690, %vm1691
      %v1693 = vsel %vm1692, %v1685, %v1689
      %v1694 = vand.u32 2147483647, %v1644
      %vm1695 = vcmp.eq.f32.partialorder %v1694, 8.507059e+37
      %v1696 = vand.u32 %v1644, 2147483648
      %v1697 = vor.u32 1.1754944e-38, %v1696
      %v1698 = vsel %vm1695, %v1697, %v1693
      %v1699 = vmul.f32 1.0, %v1698
      %v1700 = vrcp.pop %v1645
      %v1701 = vmul.f32 %v1645, %v1700
      %v1702 = vsub.f32 1.0, %v1701
      %v1703 = vmul.f32 %v1700, %v1702
      %v1704 = vadd.f32 %v1700, %v1703
      %vm1705 = vweird.f32 %v1645
      %vm1706 = vweird.f32 %v1700
      %vm1707 = vmor %vm1705, %vm1706
      %v1708 = vsel %vm1707, %v1700, %v1704
      %v1709 = vand.u32 2147483647, %v1645
      %vm1710 = vcmp.eq.f32.partialorder %v1709, 8.507059e+37
      %v1711 = vand.u32 %v1645, 2147483648
      %v1712 = vor.u32 1.1754944e-38, %v1711
      %v1713 = vsel %vm1710, %v1712, %v1708
      %v1714 = vmul.f32 1.0, %v1713
      %v1715 = vrcp.pop %v1646
      %v1716 = vmul.f32 %v1646, %v1715
      %v1717 = vsub.f32 1.0, %v1716
      %v1718 = vmul.f32 %v1715, %v1717
      %v1719 = vadd.f32 %v1715, %v1718
      %vm1720 = vweird.f32 %v1646
      %vm1721 = vweird.f32 %v1715
      %vm1722 = vmor %vm1720, %vm1721
      %v1723 = vsel %vm1722, %v1715, %v1719
      %v1724 = vand.u32 2147483647, %v1646
      %vm1725 = vcmp.eq.f32.partialorder %v1724, 8.507059e+37
      %v1726 = vand.u32 %v1646, 2147483648
      %v1727 = vor.u32 1.1754944e-38, %v1726
      %v1728 = vsel %vm1725, %v1727, %v1723
      %v1729 = vmul.f32 1.0, %v1728
      %v1730 = vrcp.pop %v1647
      %v1731 = vmul.f32 %v1647, %v1730
      %v1732 = vsub.f32 1.0, %v1731
      %v1733 = vmul.f32 %v1730, %v1732
      %v1734 = vadd.f32 %v1730, %v1733
      %vm1735 = vweird.f32 %v1647
      %vm1736 = vweird.f32 %v1730
      %vm1737 = vmor %vm1735, %vm1736
      %v1738 = vsel %vm1737, %v1730, %v1734
      %v1739 = vand.u32 2147483647, %v1647
      %vm1740 = vcmp.eq.f32.partialorder %v1739, 8.507059e+37
      %v1741 = vand.u32 %v1647, 2147483648
      %v1742 = vor.u32 1.1754944e-38, %v1741
      %v1743 = vsel %vm1740, %v1742, %v1738
      %v1744 = vmul.f32 1.0, %v1743
      %v1745 = vrcp.pop %v1648
      %v1746 = vmul.f32 %v1648, %v1745
      %v1747 = vsub.f32 1.0, %v1746
      %v1748 = vmul.f32 %v1745, %v1747
      %v1749 = vadd.f32 %v1745, %v1748
      %vm1750 = vweird.f32 %v1648
      %vm1751 = vweird.f32 %v1745
      %vm1752 = vmor %vm1750, %vm1751
      %v1753 = vsel %vm1752, %v1745, %v1749
      %v1754 = vand.u32 2147483647, %v1648
      %vm1755 = vcmp.eq.f32.partialorder %v1754, 8.507059e+37
      %v1756 = vand.u32 %v1648, 2147483648
      %v1757 = vor.u32 1.1754944e-38, %v1756
      %v1758 = vsel %vm1755, %v1757, %v1753
      %v1759 = vmul.f32 1.0, %v1758
      %v1760 = vrcp.pop %v1649
      %v1761 = vmul.f32 %v1649, %v1760
      %v1762 = vsub.f32 1.0, %v1761
      %v1763 = vmul.f32 %v1760, %v1762
      %v1764 = vadd.f32 %v1760, %v1763
      %vm1765 = vweird.f32 %v1649
      %vm1766 = vweird.f32 %v1760
      %vm1767 = vmor %vm1765, %vm1766
      %v1768 = vsel %vm1767, %v1760, %v1764
      %v1769 = vand.u32 2147483647, %v1649
      %vm1770 = vcmp.eq.f32.partialorder %v1769, 8.507059e+37
      %v1771 = vand.u32 %v1649, 2147483648
      %v1772 = vor.u32 1.1754944e-38, %v1771
      %v1773 = vsel %vm1770, %v1772, %v1768
      %v1774 = vmul.f32 1.0, %v1773
      %v1775 = vrcp.pop %v1650
      %v1776 = vmul.f32 %v1650, %v1775
      %v1777 = vsub.f32 1.0, %v1776
      %v1778 = vmul.f32 %v1775, %v1777
      %v1779 = vadd.f32 %v1775, %v1778
      %vm1780 = vweird.f32 %v1650
      %vm1781 = vweird.f32 %v1775
      %vm1782 = vmor %vm1780, %vm1781
      %v1783 = vsel %vm1782, %v1775, %v1779
      %v1784 = vand.u32 2147483647, %v1650
      %vm1785 = vcmp.eq.f32.partialorder %v1784, 8.507059e+37
      %v1786 = vand.u32 %v1650, 2147483648
      %v1787 = vor.u32 1.1754944e-38, %v1786
      %v1788 = vsel %vm1785, %v1787, %v1783
      %v1789 = vmul.f32 1.0, %v1788
      %v1790 = vrcp.pop %v1651
      %v1791 = vmul.f32 %v1651, %v1790
      %v1792 = vsub.f32 1.0, %v1791
      %v1793 = vmul.f32 %v1790, %v1792
      %v1794 = vadd.f32 %v1790, %v1793
      %vm1795 = vweird.f32 %v1651
      %vm1796 = vweird.f32 %v1790
      %vm1797 = vmor %vm1795, %vm1796
      %v1798 = vsel %vm1797, %v1790, %v1794
      %v1799 = vand.u32 2147483647, %v1651
      %vm1800 = vcmp.eq.f32.partialorder %v1799, 8.507059e+37
      %v1801 = vand.u32 %v1651, 2147483648
      %v1802 = vor.u32 1.1754944e-38, %v1801
      %v1803 = vsel %vm1800, %v1802, %v1798
      %v1804 = vmul.f32 1.0, %v1803
      %v1805 = vrcp.pop %v1652
      %v1806 = vmul.f32 %v1652, %v1805
      %v1807 = vsub.f32 1.0, %v1806
      %v1808 = vmul.f32 %v1805, %v1807
      %v1809 = vadd.f32 %v1805, %v1808
      %vm1810 = vweird.f32 %v1652
      %vm1811 = vweird.f32 %v1805
      %vm1812 = vmor %vm1810, %vm1811
      %v1813 = vsel %vm1812, %v1805, %v1809
      %v1814 = vand.u32 2147483647, %v1652
      %vm1815 = vcmp.eq.f32.partialorder %v1814, 8.507059e+37
      %v1816 = vand.u32 %v1652, 2147483648
      %v1817 = vor.u32 1.1754944e-38, %v1816
      %v1818 = vsel %vm1815, %v1817, %v1813
      %v1819 = vmul.f32 1.0, %v1818
      %v1820 = vrcp.pop %v1653
      %v1821 = vmul.f32 %v1653, %v1820
      %v1822 = vsub.f32 1.0, %v1821
      %v1823 = vmul.f32 %v1820, %v1822
      %v1824 = vadd.f32 %v1820, %v1823
      %vm1825 = vweird.f32 %v1653
      %vm1826 = vweird.f32 %v1820
      %vm1827 = vmor %vm1825, %vm1826
      %v1828 = vsel %vm1827, %v1820, %v1824
      %v1829 = vand.u32 2147483647, %v1653
      %vm1830 = vcmp.eq.f32.partialorder %v1829, 8.507059e+37
      %v1831 = vand.u32 %v1653, 2147483648
      %v1832 = vor.u32 1.1754944e-38, %v1831
      %v1833 = vsel %vm1830, %v1832, %v1828
      %v1834 = vmul.f32 1.0, %v1833
      %v1835 = vrcp.pop %v1654
      %v1836 = vmul.f32 %v1654, %v1835
      %v1837 = vsub.f32 1.0, %v1836
      %v1838 = vmul.f32 %v1835, %v1837
      %v1839 = vadd.f32 %v1835, %v1838
      %vm1840 = vweird.f32 %v1654
      %vm1841 = vweird.f32 %v1835
      %vm1842 = vmor %vm1840, %vm1841
      %v1843 = vsel %vm1842, %v1835, %v1839
      %v1844 = vand.u32 2147483647, %v1654
      %vm1845 = vcmp.eq.f32.partialorder %v1844, 8.507059e+37
      %v1846 = vand.u32 %v1654, 2147483648
      %v1847 = vor.u32 1.1754944e-38, %v1846
      %v1848 = vsel %vm1845, %v1847, %v1843
      %v1849 = vmul.f32 1.0, %v1848
      %v1850 = vrcp.pop %v1655
      %v1851 = vmul.f32 %v1655, %v1850
      %v1852 = vsub.f32 1.0, %v1851
      %v1853 = vmul.f32 %v1850, %v1852
      %v1854 = vadd.f32 %v1850, %v1853
      %vm1855 = vweird.f32 %v1655
      %vm1856 = vweird.f32 %v1850
      %vm1857 = vmor %vm1855, %vm1856
      %v1858 = vsel %vm1857, %v1850, %v1854
      %v1859 = vand.u32 2147483647, %v1655
      %vm1860 = vcmp.eq.f32.partialorder %v1859, 8.507059e+37
      %v1861 = vand.u32 %v1655, 2147483648
      %v1862 = vor.u32 1.1754944e-38, %v1861
      %v1863 = vsel %vm1860, %v1862, %v1858
      %v1864 = vmul.f32 1.0, %v1863
      %v1865 = vrcp.pop %v1656
      %v1866 = vmul.f32 %v1656, %v1865
      %v1867 = vsub.f32 1.0, %v1866
      %v1868 = vmul.f32 %v1865, %v1867
      %v1869 = vadd.f32 %v1865, %v1868
      %vm1870 = vweird.f32 %v1656
      %vm1871 = vweird.f32 %v1865
      %vm1872 = vmor %vm1870, %vm1871
      %v1873 = vsel %vm1872, %v1865, %v1869
      %v1874 = vand.u32 2147483647, %v1656
      %vm1875 = vcmp.eq.f32.partialorder %v1874, 8.507059e+37
      %v1876 = vand.u32 %v1656, 2147483648
      %v1877 = vor.u32 1.1754944e-38, %v1876
      %v1878 = vsel %vm1875, %v1877, %v1873
      %v1879 = vmul.f32 1.0, %v1878
      %v1880 = vrcp.pop %v1657
      %v1881 = vmul.f32 %v1657, %v1880
      %v1882 = vsub.f32 1.0, %v1881
      %v1883 = vmul.f32 %v1880, %v1882
      %v1884 = vadd.f32 %v1880, %v1883
      %vm1885 = vweird.f32 %v1657
      %vm1886 = vweird.f32 %v1880
      %vm1887 = vmor %vm1885, %vm1886
      %v1888 = vsel %vm1887, %v1880, %v1884
      %v1889 = vand.u32 2147483647, %v1657
      %vm1890 = vcmp.eq.f32.partialorder %v1889, 8.507059e+37
      %v1891 = vand.u32 %v1657, 2147483648
      %v1892 = vor.u32 1.1754944e-38, %v1891
      %v1893 = vsel %vm1890, %v1892, %v1888
      %v1894 = vmul.f32 1.0, %v1893
      %v1895 = vrcp.pop %v1658
      %v1896 = vmul.f32 %v1658, %v1895
      %v1897 = vsub.f32 1.0, %v1896
      %v1898 = vmul.f32 %v1895, %v1897
      %v1899 = vadd.f32 %v1895, %v1898
      %vm1900 = vweird.f32 %v1658
      %vm1901 = vweird.f32 %v1895
      %vm1902 = vmor %vm1900, %vm1901
      %v1903 = vsel %vm1902, %v1895, %v1899
      %v1904 = vand.u32 2147483647, %v1658
      %vm1905 = vcmp.eq.f32.partialorder %v1904, 8.507059e+37
      %v1906 = vand.u32 %v1658, 2147483648
      %v1907 = vor.u32 1.1754944e-38, %v1906
      %v1908 = vsel %vm1905, %v1907, %v1903
      %v1909 = vmul.f32 1.0, %v1908
      %v1910 = vrcp.pop %v1659
      %v1911 = vmul.f32 %v1659, %v1910
      %v1912 = vsub.f32 1.0, %v1911
      %v1913 = vmul.f32 %v1910, %v1912
      %v1914 = vadd.f32 %v1910, %v1913
      %vm1915 = vweird.f32 %v1659
      %vm1916 = vweird.f32 %v1910
      %vm1917 = vmor %vm1915, %vm1916
      %v1918 = vsel %vm1917, %v1910, %v1914
      %v1919 = vand.u32 2147483647, %v1659
      %vm1920 = vcmp.eq.f32.partialorder %v1919, 8.507059e+37
      %v1921 = vand.u32 %v1659, 2147483648
      %v1922 = vor.u32 1.1754944e-38, %v1921
      %v1923 = vsel %vm1920, %v1922, %v1918
      %v1924 = vmul.f32 1.0, %v1923
      %v1925 = vrcp.pop %v1660
      %v1926 = vmul.f32 %v1660, %v1925
      %v1927 = vsub.f32 1.0, %v1926
      %v1928 = vmul.f32 %v1925, %v1927
      %v1929 = vadd.f32 %v1925, %v1928
      %vm1930 = vweird.f32 %v1660
      %vm1931 = vweird.f32 %v1925
      %vm1932 = vmor %vm1930, %vm1931
      %v1933 = vsel %vm1932, %v1925, %v1929
      %v1934 = vand.u32 2147483647, %v1660
      %vm1935 = vcmp.eq.f32.partialorder %v1934, 8.507059e+37
      %v1936 = vand.u32 %v1660, 2147483648
      %v1937 = vor.u32 1.1754944e-38, %v1936
      %v1938 = vsel %vm1935, %v1937, %v1933
      %v1939 = vmul.f32 1.0, %v1938
      %v1940 = vrcp.pop %v1661
      %v1941 = vmul.f32 %v1661, %v1940
      %v1942 = vsub.f32 1.0, %v1941
      %v1943 = vmul.f32 %v1940, %v1942
      %v1944 = vadd.f32 %v1940, %v1943
      %vm1945 = vweird.f32 %v1661
      %vm1946 = vweird.f32 %v1940
      %vm1947 = vmor %vm1945, %vm1946
      %v1948 = vsel %vm1947, %v1940, %v1944
      %v1949 = vand.u32 2147483647, %v1661
      %vm1950 = vcmp.eq.f32.partialorder %v1949, 8.507059e+37
      %v1951 = vand.u32 %v1661, 2147483648
      %v1952 = vor.u32 1.1754944e-38, %v1951
      %v1953 = vsel %vm1950, %v1952, %v1948
      %v1954 = vmul.f32 1.0, %v1953
      %v1955 = vrcp.pop %v1662
      %v1956 = vmul.f32 %v1662, %v1955
      %v1957 = vsub.f32 1.0, %v1956
      %v1958 = vmul.f32 %v1955, %v1957
      %v1959 = vadd.f32 %v1955, %v1958
      %vm1960 = vweird.f32 %v1662
      %vm1961 = vweird.f32 %v1955
      %vm1962 = vmor %vm1960, %vm1961
      %v1963 = vsel %vm1962, %v1955, %v1959
      %v1964 = vand.u32 2147483647, %v1662
      %vm1965 = vcmp.eq.f32.partialorder %v1964, 8.507059e+37
      %v1966 = vand.u32 %v1662, 2147483648
      %v1967 = vor.u32 1.1754944e-38, %v1966
      %v1968 = vsel %vm1965, %v1967, %v1963
      %v1969 = vmul.f32 1.0, %v1968
      %v1970 = vrcp.pop %v1663
      %v1971 = vmul.f32 %v1663, %v1970
      %v1972 = vsub.f32 1.0, %v1971
      %v1973 = vmul.f32 %v1970, %v1972
      %v1974 = vadd.f32 %v1970, %v1973
      %vm1975 = vweird.f32 %v1663
      %vm1976 = vweird.f32 %v1970
      %vm1977 = vmor %vm1975, %vm1976
      %v1978 = vsel %vm1977, %v1970, %v1974
      %v1979 = vand.u32 2147483647, %v1663
      %vm1980 = vcmp.eq.f32.partialorder %v1979, 8.507059e+37
      %v1981 = vand.u32 %v1663, 2147483648
      %v1982 = vor.u32 1.1754944e-38, %v1981
      %v1983 = vsel %vm1980, %v1982, %v1978
      %v1984 = vmul.f32 1.0, %v1983
      %v1985 = vrcp.pop %v1664
      %v1986 = vmul.f32 %v1664, %v1985
      %v1987 = vsub.f32 1.0, %v1986
      %v1988 = vmul.f32 %v1985, %v1987
      %v1989 = vadd.f32 %v1985, %v1988
      %vm1990 = vweird.f32 %v1664
      %vm1991 = vweird.f32 %v1985
      %vm1992 = vmor %vm1990, %vm1991
      %v1993 = vsel %vm1992, %v1985, %v1989
      %v1994 = vand.u32 2147483647, %v1664
      %vm1995 = vcmp.eq.f32.partialorder %v1994, 8.507059e+37
      %v1996 = vand.u32 %v1664, 2147483648
      %v1997 = vor.u32 1.1754944e-38, %v1996
      %v1998 = vsel %vm1995, %v1997, %v1993
      %v1999 = vmul.f32 1.0, %v1998
      %v2000 = vrcp.pop %v1665
      %v2001 = vmul.f32 %v1665, %v2000
      %v2002 = vsub.f32 1.0, %v2001
      %v2003 = vmul.f32 %v2000, %v2002
      %v2004 = vadd.f32 %v2000, %v2003
      %vm2005 = vweird.f32 %v1665
      %vm2006 = vweird.f32 %v2000
      %vm2007 = vmor %vm2005, %vm2006
      %v2008 = vsel %vm2007, %v2000, %v2004
      %v2009 = vand.u32 2147483647, %v1665
      %vm2010 = vcmp.eq.f32.partialorder %v2009, 8.507059e+37
      %v2011 = vand.u32 %v1665, 2147483648
      %v2012 = vor.u32 1.1754944e-38, %v2011
      %v2013 = vsel %vm2010, %v2012, %v2008
      %v2014 = vmul.f32 1.0, %v2013
      %v2015 = vrcp.pop %v1666
      %v2016 = vmul.f32 %v1666, %v2015
      %v2017 = vsub.f32 1.0, %v2016
      %v2018 = vmul.f32 %v2015, %v2017
      %v2019 = vadd.f32 %v2015, %v2018
      %vm2020 = vweird.f32 %v1666
      %vm2021 = vweird.f32 %v2015
      %vm2022 = vmor %vm2020, %vm2021
      %v2023 = vsel %vm2022, %v2015, %v2019
      %v2024 = vand.u32 2147483647, %v1666
      %vm2025 = vcmp.eq.f32.partialorder %v2024, 8.507059e+37
      %v2026 = vand.u32 %v1666, 2147483648
      %v2027 = vor.u32 1.1754944e-38, %v2026
      %v2028 = vsel %vm2025, %v2027, %v2023
      %v2029 = vmul.f32 1.0, %v2028
      %v2030 = vrcp.pop %v1667
      %v2031 = vmul.f32 %v1667, %v2030
      %v2032 = vsub.f32 1.0, %v2031
      %v2033 = vmul.f32 %v2030, %v2032
      %v2034 = vadd.f32 %v2030, %v2033
      %vm2035 = vweird.f32 %v1667
      %vm2036 = vweird.f32 %v2030
      %vm2037 = vmor %vm2035, %vm2036
      %v2038 = vsel %vm2037, %v2030, %v2034
      %v2039 = vand.u32 2147483647, %v1667
      %vm2040 = vcmp.eq.f32.partialorder %v2039, 8.507059e+37
      %v2041 = vand.u32 %v1667, 2147483648
      %v2042 = vor.u32 1.1754944e-38, %v2041
      %v2043 = vsel %vm2040, %v2042, %v2038
      %v2044 = vmul.f32 1.0, %v2043
      %v2045 = vrcp.pop %v1668
      %v2046 = vmul.f32 %v1668, %v2045
      %v2047 = vsub.f32 1.0, %v2046
      %v2048 = vmul.f32 %v2045, %v2047
      %v2049 = vadd.f32 %v2045, %v2048
      %vm2050 = vweird.f32 %v1668
      %vm2051 = vweird.f32 %v2045
      %vm2052 = vmor %vm2050, %vm2051
      %v2053 = vsel %vm2052, %v2045, %v2049
      %v2054 = vand.u32 2147483647, %v1668
      %vm2055 = vcmp.eq.f32.partialorder %v2054, 8.507059e+37
      %v2056 = vand.u32 %v1668, 2147483648
      %v2057 = vor.u32 1.1754944e-38, %v2056
      %v2058 = vsel %vm2055, %v2057, %v2053
      %v2059 = vmul.f32 1.0, %v2058
      %v2060 = vrcp.pop %v1669
      %v2061 = vmul.f32 %v1669, %v2060
      %v2062 = vsub.f32 1.0, %v2061
      %v2063 = vmul.f32 %v2060, %v2062
      %v2064 = vadd.f32 %v2060, %v2063
      %vm2065 = vweird.f32 %v1669
      %vm2066 = vweird.f32 %v2060
      %vm2067 = vmor %vm2065, %vm2066
      %v2068 = vsel %vm2067, %v2060, %v2064
      %v2069 = vand.u32 2147483647, %v1669
      %vm2070 = vcmp.eq.f32.partialorder %v2069, 8.507059e+37
      %v2071 = vand.u32 %v1669, 2147483648
      %v2072 = vor.u32 1.1754944e-38, %v2071
      %v2073 = vsel %vm2070, %v2072, %v2068
      %v2074 = vmul.f32 1.0, %v2073
      %v2075 = vrcp.pop %v1670
      %v2076 = vmul.f32 %v1670, %v2075
      %v2077 = vsub.f32 1.0, %v2076
      %v2078 = vmul.f32 %v2075, %v2077
      %v2079 = vadd.f32 %v2075, %v2078
      %vm2080 = vweird.f32 %v1670
      %vm2081 = vweird.f32 %v2075
      %vm2082 = vmor %vm2080, %vm2081
      %v2083 = vsel %vm2082, %v2075, %v2079
      %v2084 = vand.u32 2147483647, %v1670
      %vm2085 = vcmp.eq.f32.partialorder %v2084, 8.507059e+37
      %v2086 = vand.u32 %v1670, 2147483648
      %v2087 = vor.u32 1.1754944e-38, %v2086
      %v2088 = vsel %vm2085, %v2087, %v2083
      %v2089 = vmul.f32 1.0, %v2088
      %v2090 = vrcp.pop %v1671
      %v2091 = vmul.f32 %v1671, %v2090
      %v2092 = vsub.f32 1.0, %v2091
      %v2093 = vmul.f32 %v2090, %v2092
      %v2094 = vadd.f32 %v2090, %v2093
      %vm2095 = vweird.f32 %v1671
      %vm2096 = vweird.f32 %v2090
      %vm2097 = vmor %vm2095, %vm2096
      %v2098 = vsel %vm2097, %v2090, %v2094
      %v2099 = vand.u32 2147483647, %v1671
      %vm2100 = vcmp.eq.f32.partialorder %v2099, 8.507059e+37
      %v2101 = vand.u32 %v1671, 2147483648
      %v2102 = vor.u32 1.1754944e-38, %v2101
      %v2103 = vsel %vm2100, %v2102, %v2098
      %v2104 = vmul.f32 1.0, %v2103
      %v2105 = vrcp.pop %v1672
      %v2106 = vmul.f32 %v1672, %v2105
      %v2107 = vsub.f32 1.0, %v2106
      %v2108 = vmul.f32 %v2105, %v2107
      %v2109 = vadd.f32 %v2105, %v2108
      %vm2110 = vweird.f32 %v1672
      %vm2111 = vweird.f32 %v2105
      %vm2112 = vmor %vm2110, %vm2111
      %v2113 = vsel %vm2112, %v2105, %v2109
      %v2114 = vand.u32 2147483647, %v1672
      %vm2115 = vcmp.eq.f32.partialorder %v2114, 8.507059e+37
      %v2116 = vand.u32 %v1672, 2147483648
      %v2117 = vor.u32 1.1754944e-38, %v2116
      %v2118 = vsel %vm2115, %v2117, %v2113
      %v2119 = vmul.f32 1.0, %v2118
      %v2120 = vrcp.pop %v1673
      %v2121 = vmul.f32 %v1673, %v2120
      %v2122 = vsub.f32 1.0, %v2121
      %v2123 = vmul.f32 %v2120, %v2122
      %v2124 = vadd.f32 %v2120, %v2123
      %vm2125 = vweird.f32 %v1673
      %vm2126 = vweird.f32 %v2120
      %vm2127 = vmor %vm2125, %vm2126
      %v2128 = vsel %vm2127, %v2120, %v2124
      %v2129 = vand.u32 2147483647, %v1673
      %vm2130 = vcmp.eq.f32.partialorder %v2129, 8.507059e+37
      %v2131 = vand.u32 %v1673, 2147483648
      %v2132 = vor.u32 1.1754944e-38, %v2131
      %v2133 = vsel %vm2130, %v2132, %v2128
      %v2134 = vmul.f32 1.0, %v2133
      %v2135 = vrcp.pop %v1674
      %v2136 = vmul.f32 %v1674, %v2135
      %v2137 = vsub.f32 1.0, %v2136
      %v2138 = vmul.f32 %v2135, %v2137
      %v2139 = vadd.f32 %v2135, %v2138
      %vm2140 = vweird.f32 %v1674
      %vm2141 = vweird.f32 %v2135
      %vm2142 = vmor %vm2140, %vm2141
      %v2143 = vsel %vm2142, %v2135, %v2139
      %v2144 = vand.u32 2147483647, %v1674
      %vm2145 = vcmp.eq.f32.partialorder %v2144, 8.507059e+37
      %v2146 = vand.u32 %v1674, 2147483648
      %v2147 = vor.u32 1.1754944e-38, %v2146
      %v2148 = vsel %vm2145, %v2147, %v2143
      %v2149 = vmul.f32 1.0, %v2148
      %v2150 = vrcp.pop %v1675
      %v2151 = vmul.f32 %v1675, %v2150
      %v2152 = vsub.f32 1.0, %v2151
      %v2153 = vmul.f32 %v2150, %v2152
      %v2154 = vadd.f32 %v2150, %v2153
      %vm2155 = vweird.f32 %v1675
      %vm2156 = vweird.f32 %v2150
      %vm2157 = vmor %vm2155, %vm2156
      %v2158 = vsel %vm2157, %v2150, %v2154
      %v2159 = vand.u32 2147483647, %v1675
      %vm2160 = vcmp.eq.f32.partialorder %v2159, 8.507059e+37
      %v2161 = vand.u32 %v1675, 2147483648
      %v2162 = vor.u32 1.1754944e-38, %v2161
      %v2163 = vsel %vm2160, %v2162, %v2158
      %v2164 = vmul.f32 1.0, %v2163
      %v2165 = vrcp.pop %v1676
      %v2166 = vmul.f32 %v1676, %v2165
      %v2167 = vsub.f32 1.0, %v2166
      %v2168 = vmul.f32 %v2165, %v2167
      %v2169 = vadd.f32 %v2165, %v2168
      %vm2170 = vweird.f32 %v1676
      %vm2171 = vweird.f32 %v2165
      %vm2172 = vmor %vm2170, %vm2171
      %v2173 = vsel %vm2172, %v2165, %v2169
      %v2174 = vand.u32 2147483647, %v1676
      %vm2175 = vcmp.eq.f32.partialorder %v2174, 8.507059e+37
      %v2176 = vand.u32 %v1676, 2147483648
      %v2177 = vor.u32 1.1754944e-38, %v2176
      %v2178 = vsel %vm2175, %v2177, %v2173
      %v2179 = vmul.f32 1.0, %v2178
      %v2180 = vrcp.pop %v1677
      %v2181 = vmul.f32 %v1677, %v2180
      %v2182 = vsub.f32 1.0, %v2181
      %v2183 = vmul.f32 %v2180, %v2182
      %v2184 = vadd.f32 %v2180, %v2183
      %vm2185 = vweird.f32 %v1677
      %vm2186 = vweird.f32 %v2180
      %vm2187 = vmor %vm2185, %vm2186
      %v2188 = vsel %vm2187, %v2180, %v2184
      %v2189 = vand.u32 2147483647, %v1677
      %vm2190 = vcmp.eq.f32.partialorder %v2189, 8.507059e+37
      %v2191 = vand.u32 %v1677, 2147483648
      %v2192 = vor.u32 1.1754944e-38, %v2191
      %v2193 = vsel %vm2190, %v2192, %v2188
      %v2194 = vmul.f32 1.0, %v2193
      %v2195 = vrcp.pop %v1678
      %v2196 = vmul.f32 %v1678, %v2195
      %v2197 = vsub.f32 1.0, %v2196
      %v2198 = vmul.f32 %v2195, %v2197
      %v2199 = vadd.f32 %v2195, %v2198
      %vm2200 = vweird.f32 %v1678
      %vm2201 = vweird.f32 %v2195
      %vm2202 = vmor %vm2200, %vm2201
      %v2203 = vsel %vm2202, %v2195, %v2199
      %v2204 = vand.u32 2147483647, %v1678
      %vm2205 = vcmp.eq.f32.partialorder %v2204, 8.507059e+37
      %v2206 = vand.u32 %v1678, 2147483648
      %v2207 = vor.u32 1.1754944e-38, %v2206
      %v2208 = vsel %vm2205, %v2207, %v2203
      %v2209 = vmul.f32 1.0, %v2208
      %v2210 = vrcp.pop %v1679
      %v2211 = vmul.f32 %v1679, %v2210
      %v2212 = vsub.f32 1.0, %v2211
      %v2213 = vmul.f32 %v2210, %v2212
      %v2214 = vadd.f32 %v2210, %v2213
      %vm2215 = vweird.f32 %v1679
      %vm2216 = vweird.f32 %v2210
      %vm2217 = vmor %vm2215, %vm2216
      %v2218 = vsel %vm2217, %v2210, %v2214
      %v2219 = vand.u32 2147483647, %v1679
      %vm2220 = vcmp.eq.f32.partialorder %v2219, 8.507059e+37
      %v2221 = vand.u32 %v1679, 2147483648
      %v2222 = vor.u32 1.1754944e-38, %v2221
      %v2223 = vsel %vm2220, %v2222, %v2218
      %v2224 = vmul.f32 1.0, %v2223
      %v2225 = vrcp.pop %v1680
      %v2226 = vmul.f32 %v1680, %v2225
      %v2227 = vsub.f32 1.0, %v2226
      %v2228 = vmul.f32 %v2225, %v2227
      %v2229 = vadd.f32 %v2225, %v2228
      %vm2230 = vweird.f32 %v1680
      %vm2231 = vweird.f32 %v2225
      %vm2232 = vmor %vm2230, %vm2231
      %v2233 = vsel %vm2232, %v2225, %v2229
      %v2234 = vand.u32 2147483647, %v1680
      %vm2235 = vcmp.eq.f32.partialorder %v2234, 8.507059e+37
      %v2236 = vand.u32 %v1680, 2147483648
      %v2237 = vor.u32 1.1754944e-38, %v2236
      %v2238 = vsel %vm2235, %v2237, %v2233
      %v2239 = vmul.f32 1.0, %v2238
      %v2240 = vrcp.pop %v1681
      %v2241 = vmul.f32 %v1681, %v2240
      %v2242 = vsub.f32 1.0, %v2241
      %v2243 = vmul.f32 %v2240, %v2242
      %v2244 = vadd.f32 %v2240, %v2243
      %vm2245 = vweird.f32 %v1681
      %vm2246 = vweird.f32 %v2240
      %vm2247 = vmor %vm2245, %vm2246
      %v2248 = vsel %vm2247, %v2240, %v2244
      %v2249 = vand.u32 2147483647, %v1681
      %vm2250 = vcmp.eq.f32.partialorder %v2249, 8.507059e+37
      %v2251 = vand.u32 %v1681, 2147483648
      %v2252 = vor.u32 1.1754944e-38, %v2251
      %v2253 = vsel %vm2250, %v2252, %v2248
      %v2254 = vmul.f32 1.0, %v2253
      %v2255 = vrcp.pop %v1682
      %v2256 = vmul.f32 %v1682, %v2255
      %v2257 = vsub.f32 1.0, %v2256
      %v2258 = vmul.f32 %v2255, %v2257
      %v2259 = vadd.f32 %v2255, %v2258
      %vm2260 = vweird.f32 %v1682
      %vm2261 = vweird.f32 %v2255
      %vm2262 = vmor %vm2260, %vm2261
      %v2263 = vsel %vm2262, %v2255, %v2259
      %v2264 = vand.u32 2147483647, %v1682
      %vm2265 = vcmp.eq.f32.partialorder %v2264, 8.507059e+37
      %v2266 = vand.u32 %v1682, 2147483648
      %v2267 = vor.u32 1.1754944e-38, %v2266
      %v2268 = vsel %vm2265, %v2267, %v2263
      %v2269 = vmul.f32 1.0, %v2268
      %v2270 = vrcp.pop %v1683
      %v2271 = vmul.f32 %v1683, %v2270
      %v2272 = vsub.f32 1.0, %v2271
      %v2273 = vmul.f32 %v2270, %v2272
      %v2274 = vadd.f32 %v2270, %v2273
      %vm2275 = vweird.f32 %v1683
      %vm2276 = vweird.f32 %v2270
      %vm2277 = vmor %vm2275, %vm2276
      %v2278 = vsel %vm2277, %v2270, %v2274
      %v2279 = vand.u32 2147483647, %v1683
      %vm2280 = vcmp.eq.f32.partialorder %v2279, 8.507059e+37
      %v2281 = vand.u32 %v1683, 2147483648
      %v2282 = vor.u32 1.1754944e-38, %v2281
      %v2283 = vsel %vm2280, %v2282, %v2278
      %v2284 = vmul.f32 1.0, %v2283
      %v2285 = vrcp.pop %v1684
      %v2286 = vmul.f32 %v1684, %v2285
      %v2287 = vsub.f32 1.0, %v2286
      %v2288 = vmul.f32 %v2285, %v2287
      %v2289 = vadd.f32 %v2285, %v2288
      %vm2290 = vweird.f32 %v1684
      %vm2291 = vweird.f32 %v2285
      %vm2292 = vmor %vm2290, %vm2291
      %v2293 = vsel %vm2292, %v2285, %v2289
      %v2294 = vand.u32 2147483647, %v1684
      %vm2295 = vcmp.eq.f32.partialorder %v2294, 8.507059e+37
      %v2296 = vand.u32 %v1684, 2147483648
      %v2297 = vor.u32 1.1754944e-38, %v2296
      %v2298 = vsel %vm2295, %v2297, %v2293
      %v2299 = vmul.f32 1.0, %v2298
      %v2300 = vmul.f32 %v1480, %v1699
      %v2301 = vmul.f32 %v1481, %v1714
      %v2302 = vmul.f32 %v1482, %v1729
      %v2303 = vmul.f32 %v1483, %v1744
      %v2304 = vmul.f32 %v1484, %v1759
      %v2305 = vmul.f32 %v1485, %v1774
      %v2306 = vmul.f32 %v1486, %v1789
      %v2307 = vmul.f32 %v1487, %v1804
      %v2308 = vmul.f32 %v1488, %v1819
      %v2309 = vmul.f32 %v1489, %v1834
      %v2310 = vmul.f32 %v1490, %v1849
      %v2311 = vmul.f32 %v1491, %v1864
      %v2312 = vmul.f32 %v1492, %v1879
      %v2313 = vmul.f32 %v1493, %v1894
      %v2314 = vmul.f32 %v1494, %v1909
      %v2315 = vmul.f32 %v1495, %v1924
      %v2316 = vmul.f32 %v1496, %v1939
      %v2317 = vmul.f32 %v1497, %v1954
      %v2318 = vmul.f32 %v1498, %v1969
      %v2319 = vmul.f32 %v1499, %v1984
      %v2320 = vmul.f32 %v1500, %v1999
      %v2321 = vmul.f32 %v1501, %v2014
      %v2322 = vmul.f32 %v1502, %v2029
      %v2323 = vmul.f32 %v1503, %v2044
      %v2324 = vmul.f32 %v1504, %v2059
      %v2325 = vmul.f32 %v1505, %v2074
      %v2326 = vmul.f32 %v1506, %v2089
      %v2327 = vmul.f32 %v1507, %v2104
      %v2328 = vmul.f32 %v1508, %v2119
      %v2329 = vmul.f32 %v1509, %v2134
      %v2330 = vmul.f32 %v1510, %v2149
      %v2331 = vmul.f32 %v1511, %v2164
      %v2332 = vmul.f32 %v1512, %v2179
      %v2333 = vmul.f32 %v1513, %v2194
      %v2334 = vmul.f32 %v1514, %v2209
      %v2335 = vmul.f32 %v1515, %v2224
      %v2336 = vmul.f32 %v1516, %v2239
      %v2337 = vmul.f32 %v1517, %v2254
      %v2338 = vmul.f32 %v1518, %v2269
      %v2339 = vmul.f32 %v1519, %v2284
      %v2340 = vmul.f32 %v1520, %v2299
      %v2382 = vrot.slane %v2300, 2
      %v2383 = vrot.slane %v2300, 4
      %v2384 = vrot.slane %v2300, 6
      %v2385 = vrot.slane %v2301, 2
      %v2386 = vrot.slane %v2301, 4
      %v2387 = vrot.slane %v2301, 6
      %v2388 = vrot.slane %v2302, 2
      %v2389 = vrot.slane %v2302, 4
      %v2390 = vrot.slane %v2302, 6
      %v2391 = vrot.slane %v2303, 2
      %v2392 = vrot.slane %v2303, 4
      %v2393 = vrot.slane %v2303, 6
      %v2394 = vrot.slane %v2304, 2
      %v2395 = vrot.slane %v2304, 4
      %v2396 = vrot.slane %v2304, 6
      %v2397 = vrot.slane %v2305, 2
      %v2398 = vrot.slane %v2305, 4
      %v2399 = vrot.slane %v2305, 6
      %v2400 = vrot.slane %v2306, 2
      %v2401 = vrot.slane %v2306, 4
      %v2402 = vrot.slane %v2306, 6
      %v2403 = vrot.slane %v2307, 2
      %v2404 = vrot.slane %v2307, 4
      %v2405 = vrot.slane %v2307, 6
      %v2406 = vrot.slane %v2308, 2
      %v2407 = vrot.slane %v2308, 4
      %v2408 = vrot.slane %v2308, 6
      %v2409 = vrot.slane %v2309, 2
      %v2410 = vrot.slane %v2309, 4
      %v2411 = vrot.slane %v2309, 6
      %v2412 = vrot.slane %v2310, 2
      %v2413 = vrot.slane %v2310, 4
      %v2414 = vrot.slane %v2310, 6
      %v2415 = vrot.slane %v2311, 2
      %v2416 = vrot.slane %v2311, 4
      %v2417 = vrot.slane %v2311, 6
      %v2418 = vrot.slane %v2312, 2
      %v2419 = vrot.slane %v2312, 4
      %v2420 = vrot.slane %v2312, 6
      %v2421 = vrot.slane %v2313, 2
      %v2422 = vrot.slane %v2313, 4
      %v2423 = vrot.slane %v2313, 6
      %v2424 = vrot.slane %v2314, 2
      %v2425 = vrot.slane %v2314, 4
      %v2426 = vrot.slane %v2314, 6
      %v2427 = vrot.slane %v2315, 2
      %v2428 = vrot.slane %v2315, 4
      %v2429 = vrot.slane %v2315, 6
      %v2430 = vrot.slane %v2316, 2
      %v2431 = vrot.slane %v2316, 4
      %v2432 = vrot.slane %v2316, 6
      %v2433 = vrot.slane %v2317, 2
      %v2434 = vrot.slane %v2317, 4
      %v2435 = vrot.slane %v2317, 6
      %v2436 = vrot.slane %v2318, 2
      %v2437 = vrot.slane %v2318, 4
      %v2438 = vrot.slane %v2318, 6
      %v2439 = vrot.slane %v2319, 2
      %v2440 = vrot.slane %v2319, 4
      %v2441 = vrot.slane %v2319, 6
      %v2442 = vrot.slane %v2320, 2
      %v2443 = vrot.slane %v2320, 4
      %v2444 = vrot.slane %v2320, 6
      %v2445 = vrot.slane %v2321, 2
      %v2446 = vrot.slane %v2321, 4
      %v2447 = vrot.slane %v2321, 6
      %v2448 = vrot.slane %v2322, 2
      %v2449 = vrot.slane %v2322, 4
      %v2450 = vrot.slane %v2322, 6
      %v2451 = vrot.slane %v2323, 2
      %v2452 = vrot.slane %v2323, 4
      %v2453 = vrot.slane %v2323, 6
      %v2454 = vrot.slane %v2324, 2
      %v2455 = vrot.slane %v2324, 4
      %v2456 = vrot.slane %v2324, 6
      %v2457 = vrot.slane %v2325, 2
      %v2458 = vrot.slane %v2325, 4
      %v2459 = vrot.slane %v2325, 6
      %v2460 = vrot.slane %v2326, 2
      %v2461 = vrot.slane %v2326, 4
      %v2462 = vrot.slane %v2326, 6
      %v2463 = vrot.slane %v2327, 2
      %v2464 = vrot.slane %v2327, 4
      %v2465 = vrot.slane %v2327, 6
      %v2466 = vrot.slane %v2328, 2
      %v2467 = vrot.slane %v2328, 4
      %v2468 = vrot.slane %v2328, 6
      %v2469 = vrot.slane %v2329, 2
      %v2470 = vrot.slane %v2329, 4
      %v2471 = vrot.slane %v2329, 6
      %v2472 = vrot.slane %v2330, 2
      %v2473 = vrot.slane %v2330, 4
      %v2474 = vrot.slane %v2330, 6
      %v2475 = vrot.slane %v2331, 2
      %v2476 = vrot.slane %v2331, 4
      %v2477 = vrot.slane %v2331, 6
      %v2478 = vrot.slane %v2332, 2
      %v2479 = vrot.slane %v2332, 4
      %v2480 = vrot.slane %v2332, 6
      %v2481 = vrot.slane %v2333, 2
      %v2482 = vrot.slane %v2333, 4
      %v2483 = vrot.slane %v2333, 6
      %v2484 = vrot.slane %v2334, 2
      %v2485 = vrot.slane %v2334, 4
      %v2486 = vrot.slane %v2334, 6
      %v2487 = vrot.slane %v2335, 2
      %v2488 = vrot.slane %v2335, 4
      %v2489 = vrot.slane %v2335, 6
      %v2490 = vrot.slane %v2336, 2
      %v2491 = vrot.slane %v2336, 4
      %v2492 = vrot.slane %v2336, 6
      %v2493 = vrot.slane %v2337, 2
      %v2494 = vrot.slane %v2337, 4
      %v2495 = vrot.slane %v2337, 6
      %v2496 = vrot.slane %v2338, 2
      %v2497 = vrot.slane %v2338, 4
      %v2498 = vrot.slane %v2338, 6
      %v2499 = vrot.slane %v2339, 2
      %v2500 = vrot.slane %v2339, 4
      %v2501 = vrot.slane %v2339, 6
      %v2502 = vrot.slane %v2340, 2
      %v2503 = vlaneseq
      %v2504 = vshrl.u32 %v2503, 7
      %v2505 = vadd.s32 %v2504, 8
      %v2506 = vadd.s32 %v2504, 16
      %vm2507 = vcmp.ge.s32.totalorder %v2504, 1
      %vm2508 = vcmp.ge.s32.totalorder %v2505, 1
      %vm2509 = vcmp.ge.s32.totalorder %v2506, 1
      %vm2510 = vmand 0, %vm2507
      %vm2511 = vmand 0, %vm2508
      %vm2512 = vmand 0, %vm2509
      %vm2513 = vmand 1, %vm2507
      %vm2514 = vmand 1, %vm2508
      %vm2515 = vmand 1, %vm2509
      %vm2516 = vcmp.le.s32.totalorder %v2504, 16
      %vm2517 = vcmp.le.s32.totalorder %v2505, 16
      %vm2518 = vcmp.le.s32.totalorder %v2506, 16
      %vm2519 = vmand %vm2510, %vm2516
      %vm2520 = vmand %vm2511, %vm2517
      %vm2521 = vmand %vm2512, %vm2518
      %vm2522 = vmand %vm2513, %vm2516
      %vm2523 = vmand %vm2514, %vm2517
      %vm2524 = vmand %vm2515, %vm2518
      %v2525 = vsel %vm2519, 1, 0
      %v2526 = vsel %vm2520, 1, 0
      %v2527 = vsel %vm2521, 1, 0
      %v2528 = vsel %vm2522, 1, 0
      %v2529 = vsel %vm2523, 1, 0
      %v2530 = vsel %vm2524, 1, 0
      %vm2531 = vcmp.eq.s32.totalorder %v2525, 1
      %vm2532 = vcmp.eq.s32.totalorder %v2526, 1
      %vm2533 = vcmp.eq.s32.totalorder %v2527, 1
      %vm2534 = vcmp.eq.s32.totalorder %v2528, 1
      %vm2535 = vcmp.eq.s32.totalorder %v2529, 1
      %vm2536 = vcmp.eq.s32.totalorder %v2530, 1
      %2537 = vst [vmem:[#allocation1] ss:$4 sm:$0xff] %v2300
      %s2538 = scalar_lea.vmem [#allocation1], 1
      %2539 = vst [vmem:[%s2538] ss:$4 sm:$0xff] %v2382
      %s2540 = scalar_lea.vmem [#allocation1], 2
      %2541 = vst [vmem:[%s2540] ss:$4 sm:$0xff] %v2383
      %s2542 = scalar_lea.vmem [#allocation1], 3
      %2543 = vst [vmem:[%s2542] ss:$4 sm:$0xff] %v2384
      %s2544 = scalar_lea.vmem [#allocation1], 32
      %2545 = vst [vmem:[%s2544] ss:$4 sm:$0xff] %v2301
      %s2546 = scalar_lea.vmem [#allocation1], 33
      %2547 = vst [vmem:[%s2546] ss:$4 sm:$0xff] %v2385
      %s2548 = scalar_lea.vmem [#allocation1], 34
      %2549 = vst [vmem:[%s2548] ss:$4 sm:$0xff] %v2386
      %s2550 = scalar_lea.vmem [#allocation1], 35
      %2551 = vst [vmem:[%s2550] ss:$4 sm:$0xff] %v2387
      %v2552 = vld.sshfl [vmem:[#allocation1] sm:$0xff pattern:$0x73625140]
      %v2553 = vld.sshfl [vmem:[#allocation1 + $0x20] sm:$0xff pattern:$0x73625140]
      %2554 = vst [vmem:[#allocation1] ss:$4 sm:$0xff] %v2302
      %v2555 = vld.sshfl [vmem:[#allocation1] sm:$0xff pattern:$0x73625140]
      %2556 = vst [vmem:[%s2544] ss:$4 sm:$0xff] %v2388
      %2557 = vst [vmem:[%s2546] ss:$4 sm:$0xff] %v2389
      %2558 = vst [vmem:[%s2548] ss:$4 sm:$0xff] %v2390
      %2559 = vst [vmem:[%s2550] ss:$4 sm:$0xff] %v2303
      %v2560 = vld.sshfl [vmem:[#allocation1 + $0x20] sm:$0xff pattern:$0x73625140]
      %2561 = vst [vmem:[#allocation1] ss:$4 sm:$0xff] %v2391
      %2562 = vst [vmem:[%s2538] ss:$4 sm:$0xff] %v2392
      %2563 = vst [vmem:[%s2540] ss:$4 sm:$0xff] %v2393
      %2564 = vst [vmem:[%s2542] ss:$4 sm:$0xff] %v2304
      %2565 = vst [vmem:[%s2544] ss:$4 sm:$0xff] %v2394
      %v2566 = vld.sshfl [vmem:[#allocation1] sm:$0xff pattern:$0x73625140]
      %v2567 = vld.sshfl [vmem:[#allocation1 + $0x20] sm:$0xff pattern:$0x73625140]
      %2568 = vst [vmem:[#allocation1] ss:$4 sm:$0xff] %v2395
      %2569 = vst [vmem:[%s2538] ss:$4 sm:$0xff] %v2396
      %2570 = vst [vmem:[%s2540] ss:$4 sm:$0xff] %v2305
      %2571 = vst [vmem:[%s2542] ss:$4 sm:$0xff] %v2397
      %2572 = vst [vmem:[%s2544] ss:$4 sm:$0xff] %v2398
      %2573 = vst [vmem:[%s2546] ss:$4 sm:$0xff] %v2399
      %2574 = vst [vmem:[%s2548] ss:$4 sm:$0xff] %v2306
      %2575 = vst [vmem:[%s2550] ss:$4 sm:$0xff] %v2400
      %v2576 = vld.sshfl [vmem:[#allocation1] sm:$0xff pattern:$0x73625140]
      %v2577 = vld.sshfl [vmem:[#allocation1 + $0x20] sm:$0xff pattern:$0x73625140]
      %2578 = vst [vmem:[#allocation1] ss:$4 sm:$0xff] %v2401
      %v2579 = vld.sshfl [vmem:[#allocation1] sm:$0xff pattern:$0x73625140]
      %2580 = vst [vmem:[%s2544] ss:$4 sm:$0xff] %v2402
      %2581 = vst [vmem:[%s2546] ss:$4 sm:$0xff] %v2307
      %2582 = vst [vmem:[%s2548] ss:$4 sm:$0xff] %v2403
      %2583 = vst [vmem:[%s2550] ss:$4 sm:$0xff] %v2404
      %v2584 = vld.sshfl [vmem:[#allocation1 + $0x20] sm:$0xff pattern:$0x73625140]
      %2585 = vst [vmem:[#allocation1] ss:$4 sm:$0xff] %v2405
      %2586 = vst [vmem:[%s2538] ss:$4 sm:$0xff] %v2308
      %2587 = vst [vmem:[%s2540] ss:$4 sm:$0xff] %v2406
      %2588 = vst [vmem:[%s2542] ss:$4 sm:$0xff] %v2407
      %2589 = vst [vmem:[%s2544] ss:$4 sm:$0xff] %v2408
      %v2590 = vld.sshfl [vmem:[#allocation1] sm:$0xff pattern:$0x73625140]
      %v2591 = vld.sshfl [vmem:[#allocation1 + $0x20] sm:$0xff pattern:$0x73625140]
      %2592 = vst [vmem:[#allocation1] ss:$4 sm:$0xff] %v2309
      %2593 = vst [vmem:[%s2538] ss:$4 sm:$0xff] %v2409
      %2594 = vst [vmem:[%s2540] ss:$4 sm:$0xff] %v2410
      %2595 = vst [vmem:[%s2542] ss:$4 sm:$0xff] %v2411
      %2596 = vst [vmem:[%s2544] ss:$4 sm:$0xff] %v2310
      %2597 = vst [vmem:[%s2546] ss:$4 sm:$0xff] %v2412
      %2598 = vst [vmem:[%s2548] ss:$4 sm:$0xff] %v2413
      %2599 = vst [vmem:[%s2550] ss:$4 sm:$0xff] %v2414
      %v2600 = vld.sshfl [vmem:[#allocation1] sm:$0xff pattern:$0x73625140]
      %v2601 = vld.sshfl [vmem:[#allocation1 + $0x20] sm:$0xff pattern:$0x73625140]
      %2602 = vst [vmem:[#allocation1] ss:$4 sm:$0xff] %v2311
      %v2603 = vld.sshfl [vmem:[#allocation1] sm:$0xff pattern:$0x73625140]
      %2604 = vst [vmem:[%s2544] ss:$4 sm:$0xff] %v2415
      %2605 = vst [vmem:[%s2546] ss:$4 sm:$0xff] %v2416
      %2606 = vst [vmem:[%s2548] ss:$4 sm:$0xff] %v2417
      %2607 = vst [vmem:[%s2550] ss:$4 sm:$0xff] %v2312
      %v2608 = vld.sshfl [vmem:[#allocation1 + $0x20] sm:$0xff pattern:$0x73625140]
      %2609 = vst [vmem:[#allocation1] ss:$4 sm:$0xff] %v2418
      %2610 = vst [vmem:[%s2538] ss:$4 sm:$0xff] %v2419
      %2611 = vst [vmem:[%s2540] ss:$4 sm:$0xff] %v2420
      %2612 = vst [vmem:[%s2542] ss:$4 sm:$0xff] %v2313
      %2613 = vst [vmem:[%s2544] ss:$4 sm:$0xff] %v2421
      %v2614 = vld.sshfl [vmem:[#allocation1] sm:$0xff pattern:$0x73625140]
      %v2615 = vld.sshfl [vmem:[#allocation1 + $0x20] sm:$0xff pattern:$0x73625140]
      %2616 = vst [vmem:[#allocation1] ss:$4 sm:$0xff] %v2422
      %2617 = vst [vmem:[%s2538] ss:$4 sm:$0xff] %v2423
      %2618 = vst [vmem:[%s2540] ss:$4 sm:$0xff] %v2314
      %2619 = vst [vmem:[%s2542] ss:$4 sm:$0xff] %v2424
      %2620 = vst [vmem:[%s2544] ss:$4 sm:$0xff] %v2425
      %2621 = vst [vmem:[%s2546] ss:$4 sm:$0xff] %v2426
      %2622 = vst [vmem:[%s2548] ss:$4 sm:$0xff] %v2315
      %2623 = vst [vmem:[%s2550] ss:$4 sm:$0xff] %v2427
      %v2624 = vld.sshfl [vmem:[#allocation1] sm:$0xff pattern:$0x73625140]
      %v2625 = vld.sshfl [vmem:[#allocation1 + $0x20] sm:$0xff pattern:$0x73625140]
      %2626 = vst [vmem:[#allocation1] ss:$4 sm:$0xff] %v2428
      %v2627 = vld.sshfl [vmem:[#allocation1] sm:$0xff pattern:$0x73625140]
      %2628 = vst [vmem:[%s2544] ss:$4 sm:$0xff] %v2429
      %2629 = vst [vmem:[%s2546] ss:$4 sm:$0xff] %v2316
      %2630 = vst [vmem:[%s2548] ss:$4 sm:$0xff] %v2430
      %2631 = vst [vmem:[%s2550] ss:$4 sm:$0xff] %v2431
      %v2632 = vld.sshfl [vmem:[#allocation1 + $0x20] sm:$0xff pattern:$0x73625140]
      %2633 = vst [vmem:[#allocation1] ss:$4 sm:$0xff] %v2432
      %2634 = vst [vmem:[%s2538] ss:$4 sm:$0xff] %v2317
      %2635 = vst [vmem:[%s2540] ss:$4 sm:$0xff] %v2433
      %2636 = vst [vmem:[%s2542] ss:$4 sm:$0xff] %v2434
      %2637 = vst [vmem:[%s2544] ss:$4 sm:$0xff] %v2435
      %v2638 = vld.sshfl [vmem:[#allocation1] sm:$0xff pattern:$0x73625140]
      %v2639 = vld.sshfl [vmem:[#allocation1 + $0x20] sm:$0xff pattern:$0x73625140]
      %2640 = vst [vmem:[#allocation1] ss:$4 sm:$0xff] %v2318
      %2641 = vst [vmem:[%s2538] ss:$4 sm:$0xff] %v2436
      %2642 = vst [vmem:[%s2540] ss:$4 sm:$0xff] %v2437
      %2643 = vst [vmem:[%s2542] ss:$4 sm:$0xff] %v2438
      %2644 = vst [vmem:[%s2544] ss:$4 sm:$0xff] %v2319
      %2645 = vst [vmem:[%s2546] ss:$4 sm:$0xff] %v2439
      %2646 = vst [vmem:[%s2548] ss:$4 sm:$0xff] %v2440
      %2647 = vst [vmem:[%s2550] ss:$4 sm:$0xff] %v2441
      %v2648 = vld.sshfl [vmem:[#allocation1] sm:$0xff pattern:$0x73625140]
      %v2649 = vld.sshfl [vmem:[#allocation1 + $0x20] sm:$0xff pattern:$0x73625140]
      %2650 = vst [vmem:[#allocation1] ss:$4 sm:$0xff] %v2320
      %v2651 = vld.sshfl [vmem:[#allocation1] sm:$0xff pattern:$0x73625140]
      %2652 = vst [vmem:[%s2544] ss:$4 sm:$0xff] %v2442
      %2653 = vst [vmem:[%s2546] ss:$4 sm:$0xff] %v2443
      %2654 = vst [vmem:[%s2548] ss:$4 sm:$0xff] %v2444
      %2655 = vst [vmem:[%s2550] ss:$4 sm:$0xff] %v2321
      %v2656 = vld.sshfl [vmem:[#allocation1 + $0x20] sm:$0xff pattern:$0x73625140]
      %2657 = vst [vmem:[#allocation1] ss:$4 sm:$0xff] %v2445
      %2658 = vst [vmem:[%s2538] ss:$4 sm:$0xff] %v2446
      %2659 = vst [vmem:[%s2540] ss:$4 sm:$0xff] %v2447
      %2660 = vst [vmem:[%s2542] ss:$4 sm:$0xff] %v2322
      %2661 = vst [vmem:[%s2544] ss:$4 sm:$0xff] %v2448
      %v2662 = vld.sshfl [vmem:[#allocation1] sm:$0xff pattern:$0x73625140]
      %v2663 = vld.sshfl [vmem:[#allocation1 + $0x20] sm:$0xff pattern:$0x73625140]
      %2664 = vst [vmem:[#allocation1] ss:$4 sm:$0xff] %v2449
      %2665 = vst [vmem:[%s2538] ss:$4 sm:$0xff] %v2450
      %2666 = vst [vmem:[%s2540] ss:$4 sm:$0xff] %v2323
      %2667 = vst [vmem:[%s2542] ss:$4 sm:$0xff] %v2451
      %2668 = vst [vmem:[%s2544] ss:$4 sm:$0xff] %v2452
      %2669 = vst [vmem:[%s2546] ss:$4 sm:$0xff] %v2453
      %2670 = vst [vmem:[%s2548] ss:$4 sm:$0xff] %v2324
      %2671 = vst [vmem:[%s2550] ss:$4 sm:$0xff] %v2454
      %v2672 = vld.sshfl [vmem:[#allocation1] sm:$0xff pattern:$0x73625140]
      %v2673 = vld.sshfl [vmem:[#allocation1 + $0x20] sm:$0xff pattern:$0x73625140]
      %2674 = vst [vmem:[#allocation1] ss:$4 sm:$0xff] %v2455
      %v2675 = vld.sshfl [vmem:[#allocation1] sm:$0xff pattern:$0x73625140]
      %2676 = vst [vmem:[%s2544] ss:$4 sm:$0xff] %v2456
      %2677 = vst [vmem:[%s2546] ss:$4 sm:$0xff] %v2325
      %2678 = vst [vmem:[%s2548] ss:$4 sm:$0xff] %v2457
      %2679 = vst [vmem:[%s2550] ss:$4 sm:$0xff] %v2458
      %v2680 = vld.sshfl [vmem:[#allocation1 + $0x20] sm:$0xff pattern:$0x73625140]
      %2681 = vst [vmem:[#allocation1] ss:$4 sm:$0xff] %v2459
      %2682 = vst [vmem:[%s2538] ss:$4 sm:$0xff] %v2326
      %2683 = vst [vmem:[%s2540] ss:$4 sm:$0xff] %v2460
      %2684 = vst [vmem:[%s2542] ss:$4 sm:$0xff] %v2461
      %2685 = vst [vmem:[%s2544] ss:$4 sm:$0xff] %v2462
      %v2686 = vld.sshfl [vmem:[#allocation1] sm:$0xff pattern:$0x73625140]
      %v2687 = vld.sshfl [vmem:[#allocation1 + $0x20] sm:$0xff pattern:$0x73625140]
      %2688 = vst [vmem:[#allocation1] ss:$4 sm:$0xff] %v2327
      %2689 = vst [vmem:[%s2538] ss:$4 sm:$0xff] %v2463
      %2690 = vst [vmem:[%s2540] ss:$4 sm:$0xff] %v2464
      %2691 = vst [vmem:[%s2542] ss:$4 sm:$0xff] %v2465
      %2692 = vst [vmem:[%s2544] ss:$4 sm:$0xff] %v2328
      %2693 = vst [vmem:[%s2546] ss:$4 sm:$0xff] %v2466
      %2694 = vst [vmem:[%s2548] ss:$4 sm:$0xff] %v2467
      %2695 = vst [vmem:[%s2550] ss:$4 sm:$0xff] %v2468
      %v2696 = vld.sshfl [vmem:[#allocation1] sm:$0xff pattern:$0x73625140]
      %v2697 = vld.sshfl [vmem:[#allocation1 + $0x20] sm:$0xff pattern:$0x73625140]
      %2698 = vst [vmem:[#allocation1] ss:$4 sm:$0xff] %v2329
      %v2699 = vld.sshfl [vmem:[#allocation1] sm:$0xff pattern:$0x73625140]
      %2700 = vst [vmem:[%s2544] ss:$4 sm:$0xff] %v2469
      %2701 = vst [vmem:[%s2546] ss:$4 sm:$0xff] %v2470
      %2702 = vst [vmem:[%s2548] ss:$4 sm:$0xff] %v2471
      %2703 = vst [vmem:[%s2550] ss:$4 sm:$0xff] %v2330
      %v2704 = vld.sshfl [vmem:[#allocation1 + $0x20] sm:$0xff pattern:$0x73625140]
      %2705 = vst [vmem:[#allocation1] ss:$4 sm:$0xff] %v2472
      %2706 = vst [vmem:[%s2538] ss:$4 sm:$0xff] %v2473
      %2707 = vst [vmem:[%s2540] ss:$4 sm:$0xff] %v2474
      %2708 = vst [vmem:[%s2542] ss:$4 sm:$0xff] %v2331
      %2709 = vst [vmem:[%s2544] ss:$4 sm:$0xff] %v2475
      %v2710 = vld.sshfl [vmem:[#allocation1] sm:$0xff pattern:$0x73625140]
      %v2711 = vld.sshfl [vmem:[#allocation1 + $0x20] sm:$0xff pattern:$0x73625140]
      %2712 = vst [vmem:[#allocation1] ss:$4 sm:$0xff] %v2476
      %2713 = vst [vmem:[%s2538] ss:$4 sm:$0xff] %v2477
      %2714 = vst [vmem:[%s2540] ss:$4 sm:$0xff] %v2332
      %2715 = vst [vmem:[%s2542] ss:$4 sm:$0xff] %v2478
      %2716 = vst [vmem:[%s2544] ss:$4 sm:$0xff] %v2479
      %2717 = vst [vmem:[%s2546] ss:$4 sm:$0xff] %v2480
      %2718 = vst [vmem:[%s2548] ss:$4 sm:$0xff] %v2333
      %2719 = vst [vmem:[%s2550] ss:$4 sm:$0xff] %v2481
      %v2720 = vld.sshfl [vmem:[#allocation1] sm:$0xff pattern:$0x73625140]
      %v2721 = vld.sshfl [vmem:[#allocation1 + $0x20] sm:$0xff pattern:$0x73625140]
      %2722 = vst [vmem:[#allocation1] ss:$4 sm:$0xff] %v2482
      %v2723 = vld.sshfl [vmem:[#allocation1] sm:$0xff pattern:$0x73625140]
      %2724 = vst [vmem:[%s2544] ss:$4 sm:$0xff] %v2483
      %2725 = vst [vmem:[%s2546] ss:$4 sm:$0xff] %v2334
      %2726 = vst [vmem:[%s2548] ss:$4 sm:$0xff] %v2484
      %2727 = vst [vmem:[%s2550] ss:$4 sm:$0xff] %v2485
      %v2728 = vld.sshfl [vmem:[#allocation1 + $0x20] sm:$0xff pattern:$0x73625140]
      %2729 = vst [vmem:[#allocation1] ss:$4 sm:$0xff] %v2486
      %2730 = vst [vmem:[%s2538] ss:$4 sm:$0xff] %v2335
      %2731 = vst [vmem:[%s2540] ss:$4 sm:$0xff] %v2487
      %2732 = vst [vmem:[%s2542] ss:$4 sm:$0xff] %v2488
      %2733 = vst [vmem:[%s2544] ss:$4 sm:$0xff] %v2489
      %v2734 = vld.sshfl [vmem:[#allocation1] sm:$0xff pattern:$0x73625140]
      %v2735 = vld.sshfl [vmem:[#allocation1 + $0x20] sm:$0xff pattern:$0x73625140]
      %2736 = vst [vmem:[#allocation1] ss:$4 sm:$0xff] %v2336
      %2737 = vst [vmem:[%s2538] ss:$4 sm:$0xff] %v2490
      %2738 = vst [vmem:[%s2540] ss:$4 sm:$0xff] %v2491
      %2739 = vst [vmem:[%s2542] ss:$4 sm:$0xff] %v2492
      %2740 = vst [vmem:[%s2544] ss:$4 sm:$0xff] %v2337
      %2741 = vst [vmem:[%s2546] ss:$4 sm:$0xff] %v2493
      %2742 = vst [vmem:[%s2548] ss:$4 sm:$0xff] %v2494
      %2743 = vst [vmem:[%s2550] ss:$4 sm:$0xff] %v2495
      %v2744 = vld.sshfl [vmem:[#allocation1] sm:$0xff pattern:$0x73625140]
      %v2745 = vld.sshfl [vmem:[#allocation1 + $0x20] sm:$0xff pattern:$0x73625140]
      %2746 = vst [vmem:[#allocation1] ss:$4 sm:$0xff] %v2338
      %v2747 = vld.sshfl [vmem:[#allocation1] sm:$0xff pattern:$0x73625140]
      %2748 = vst [vmem:[%s2544] ss:$4 sm:$0xff] %v2496
      %2749 = vst [vmem:[%s2546] ss:$4 sm:$0xff] %v2497
      %2750 = vst [vmem:[%s2548] ss:$4 sm:$0xff] %v2498
      %2751 = vst [vmem:[%s2550] ss:$4 sm:$0xff] %v2339
      %v2752 = vld.sshfl [vmem:[#allocation1 + $0x20] sm:$0xff pattern:$0x73625140]
      %2753 = vst [vmem:[#allocation1] ss:$4 sm:$0xff] %v2499
      %2754 = vst [vmem:[%s2538] ss:$4 sm:$0xff] %v2500
      %2755 = vst [vmem:[%s2540] ss:$4 sm:$0xff] %v2501
      %2756 = vst [vmem:[%s2542] ss:$4 sm:$0xff] %v2340
      %2757 = vst [vmem:[%s2544] ss:$4 sm:$0xff] %v2502
      %v2758 = vld.sshfl [vmem:[#allocation1] sm:$0xff pattern:$0x73625140]
      %v2759 = vld.sshfl [vmem:[#allocation1 + $0x20] sm:$0xff pattern:$0x73625140]
      %v2814 = vsel %vm2531, %v2552, 0.0
      %v2815 = vsel %vm2532, %v2553, 0.0
      %v2816 = vsel %vm2533, %v2555, 0.0
      %v2817 = vsel %vm2534, %v2560, 0.0
      %v2818 = vsel %vm2535, %v2566, 0.0
      %v2819 = vsel %vm2536, %v2567, 0.0
      %v2820 = vsel %vm2534, %v2576, 0.0
      %v2821 = vsel %vm2535, %v2577, 0.0
      %v2822 = vsel %vm2536, %v2579, 0.0
      %v2823 = vsel %vm2534, %v2584, 0.0
      %v2824 = vsel %vm2535, %v2590, 0.0
      %v2825 = vsel %vm2536, %v2591, 0.0
      %v2826 = vsel %vm2534, %v2600, 0.0
      %v2827 = vsel %vm2535, %v2601, 0.0
      %v2828 = vsel %vm2536, %v2603, 0.0
      %v2829 = vsel %vm2534, %v2608, 0.0
      %v2830 = vsel %vm2535, %v2614, 0.0
      %v2831 = vsel %vm2536, %v2615, 0.0
      %v2832 = vsel %vm2534, %v2624, 0.0
      %v2833 = vsel %vm2535, %v2625, 0.0
      %v2834 = vsel %vm2536, %v2627, 0.0
      %v2835 = vsel %vm2534, %v2632, 0.0
      %v2836 = vsel %vm2535, %v2638, 0.0
      %v2837 = vsel %vm2536, %v2639, 0.0
      %v2838 = vsel %vm2534, %v2648, 0.0
      %v2839 = vsel %vm2535, %v2649, 0.0
      %v2840 = vsel %vm2536, %v2651, 0.0
      %v2841 = vsel %vm2534, %v2656, 0.0
      %v2842 = vsel %vm2535, %v2662, 0.0
      %v2843 = vsel %vm2536, %v2663, 0.0
      %v2844 = vsel %vm2534, %v2672, 0.0
      %v2845 = vsel %vm2535, %v2673, 0.0
      %v2846 = vsel %vm2536, %v2675, 0.0
      %v2847 = vsel %vm2534, %v2680, 0.0
      %v2848 = vsel %vm2535, %v2686, 0.0
      %v2849 = vsel %vm2536, %v2687, 0.0
      %v2850 = vsel %vm2534, %v2696, 0.0
      %v2851 = vsel %vm2535, %v2697, 0.0
      %v2852 = vsel %vm2536, %v2699, 0.0
      %v2853 = vsel %vm2534, %v2704, 0.0
      %v2854 = vsel %vm2535, %v2710, 0.0
      %v2855 = vsel %vm2536, %v2711, 0.0
      %v2856 = vsel %vm2534, %v2720, 0.0
      %v2857 = vsel %vm2535, %v2721, 0.0
      %v2858 = vsel %vm2536, %v2723, 0.0
      %v2859 = vsel %vm2534, %v2728, 0.0
      %v2860 = vsel %vm2535, %v2734, 0.0
      %v2861 = vsel %vm2536, %v2735, 0.0
      %v2862 = vsel %vm2534, %v2744, 0.0
      %v2863 = vsel %vm2535, %v2745, 0.0
      %v2864 = vsel %vm2536, %v2747, 0.0
      %v2865 = vsel %vm2531, %v2752, 0.0
      %v2866 = vsel %vm2532, %v2758, 0.0
      %v2867 = vsel %vm2533, %v2759, 0.0
      %vm2868 = vcmask 64512
      %2869 = vst.msk [vmem:[#allocation2] sm:$0xff] %vm2868, %v2814
      %2870 = vst.msk [vmem:[#allocation2 + $0x8] sm:$0xff] %vm2868, %v2815
      %vm2871 = vcmask 58368
      %2872 = vst.msk [vmem:[#allocation2 + $0x10] sm:$0x3] %vm2871, %v2816
      %2873 = vst.msk [vmem:[#allocation2 + $0x18] sm:$0xff] %vm2868, %v2817
      %2874 = vst.msk [vmem:[#allocation2 + $0x20] sm:$0xff] %vm2868, %v2818
      %2875 = vst.msk [vmem:[#allocation2 + $0x28] sm:$0x3] %vm2871, %v2819
      %2876 = vst.msk [vmem:[#allocation2 + $0x30] sm:$0xff] %vm2868, %v2820
      %2877 = vst.msk [vmem:[#allocation2 + $0x38] sm:$0xff] %vm2868, %v2821
      %2878 = vst.msk [vmem:[#allocation2 + $0x40] sm:$0x3] %vm2871, %v2822
      %2879 = vst.msk [vmem:[#allocation2 + $0x48] sm:$0xff] %vm2868, %v2823
      %2880 = vst.msk [vmem:[#allocation2 + $0x50] sm:$0xff] %vm2868, %v2824
      %2881 = vst.msk [vmem:[#allocation2 + $0x58] sm:$0x3] %vm2871, %v2825
      %2882 = vst.msk [vmem:[#allocation2 + $0x60] sm:$0xff] %vm2868, %v2826
      %2883 = vst.msk [vmem:[#allocation2 + $0x68] sm:$0xff] %vm2868, %v2827
      %2884 = vst.msk [vmem:[#allocation2 + $0x70] sm:$0x3] %vm2871, %v2828
      %2885 = vst.msk [vmem:[#allocation2 + $0x78] sm:$0xff] %vm2868, %v2829
      %2886 = vst.msk [vmem:[#allocation2 + $0x80] sm:$0xff] %vm2868, %v2830
      %2887 = vst.msk [vmem:[#allocation2 + $0x88] sm:$0x3] %vm2871, %v2831
      %2888 = vst.msk [vmem:[#allocation2 + $0x90] sm:$0xff] %vm2868, %v2832
      %2889 = vst.msk [vmem:[#allocation2 + $0x98] sm:$0xff] %vm2868, %v2833
      %2890 = vst.msk [vmem:[#allocation2 + $0xa0] sm:$0x3] %vm2871, %v2834
      %2891 = vst.msk [vmem:[#allocation2 + $0xa8] sm:$0xff] %vm2868, %v2835
      %2892 = vst.msk [vmem:[#allocation2 + $0xb0] sm:$0xff] %vm2868, %v2836
      %2893 = vst.msk [vmem:[#allocation2 + $0xb8] sm:$0x3] %vm2871, %v2837
      %2894 = vst.msk [vmem:[#allocation2 + $0xc0] sm:$0xff] %vm2868, %v2838
      %2895 = vst.msk [vmem:[#allocation2 + $0xc8] sm:$0xff] %vm2868, %v2839
      %2896 = vst.msk [vmem:[#allocation2 + $0xd0] sm:$0x3] %vm2871, %v2840
      %2897 = vst.msk [vmem:[#allocation2 + $0xd8] sm:$0xff] %vm2868, %v2841
      %2898 = vst.msk [vmem:[#allocation2 + $0xe0] sm:$0xff] %vm2868, %v2842
      %2899 = vst.msk [vmem:[#allocation2 + $0xe8] sm:$0x3] %vm2871, %v2843
      %2900 = vst.msk [vmem:[#allocation2 + $0xf0] sm:$0xff] %vm2868, %v2844
      %2901 = vst.msk [vmem:[#allocation2 + $0xf8] sm:$0xff] %vm2868, %v2845
      %2902 = vst.msk [vmem:[#allocation2 + $0x100] sm:$0x3] %vm2871, %v2846
      %2903 = vst.msk [vmem:[#allocation2 + $0x108] sm:$0xff] %vm2868, %v2847
      %2904 = vst.msk [vmem:[#allocation2 + $0x110] sm:$0xff] %vm2868, %v2848
      %2905 = vst.msk [vmem:[#allocation2 + $0x118] sm:$0x3] %vm2871, %v2849
      %2906 = vst.msk [vmem:[#allocation2 + $0x120] sm:$0xff] %vm2868, %v2850
      %2907 = vst.msk [vmem:[#allocation2 + $0x128] sm:$0xff] %vm2868, %v2851
      %2908 = vst.msk [vmem:[#allocation2 + $0x130] sm:$0x3] %vm2871, %v2852
      %2909 = vst.msk [vmem:[#allocation2 + $0x138] sm:$0xff] %vm2868, %v2853
      %2910 = vst.msk [vmem:[#allocation2 + $0x140] sm:$0xff] %vm2868, %v2854
      %2911 = vst.msk [vmem:[#allocation2 + $0x148] sm:$0x3] %vm2871, %v2855
      %2912 = vst.msk [vmem:[#allocation2 + $0x150] sm:$0xff] %vm2868, %v2856
      %2913 = vst.msk [vmem:[#allocation2 + $0x158] sm:$0xff] %vm2868, %v2857
      %2914 = vst.msk [vmem:[#allocation2 + $0x160] sm:$0x3] %vm2871, %v2858
      %2915 = vst.msk [vmem:[#allocation2 + $0x168] sm:$0xff] %vm2868, %v2859
      %2916 = vst.msk [vmem:[#allocation2 + $0x170] sm:$0xff] %vm2868, %v2860
      %2917 = vst.msk [vmem:[#allocation2 + $0x178] sm:$0x3] %vm2871, %v2861
      %2918 = vst.msk [vmem:[#allocation2 + $0x180] sm:$0xff] %vm2868, %v2862
      %2919 = vst.msk [vmem:[#allocation2 + $0x188] sm:$0xff] %vm2868, %v2863
      %2920 = vst.msk [vmem:[#allocation2 + $0x190] sm:$0x3] %vm2871, %v2864
      %2921 = vst.msk [vmem:[#allocation2 + $0x198] sm:$0xff] %vm2868, %v2865
      %2922 = vst.msk [vmem:[#allocation2 + $0x1a0] sm:$0xff] %vm2868, %v2866
      %2923 = vst.msk [vmem:[#allocation2 + $0x1a8] sm:$0x3] %vm2871, %v2867
      %s2924 = scalar_lea.vmem [#allocation2], 24
      %v2925 = vld [vmem:[%s2924 + $0x1] sm:$0xff]
      %v2926 = vld [vmem:[%s2924 + $0x9] sm:$0xff]
      %v2927 = vld [vmem:[%s2924 + $0x19] sm:$0xff]
      %v2928 = vld [vmem:[%s2924 + $0x21] sm:$0xff]
      %v2929 = vld [vmem:[%s2924 + $0x31] sm:$0xff]
      %v2930 = vld [vmem:[%s2924 + $0x39] sm:$0xff]
      %v2931 = vld [vmem:[%s2924 + $0x49] sm:$0xff]
      %v2932 = vld [vmem:[%s2924 + $0x51] sm:$0xff]
      %v2933 = vld [vmem:[%s2924 + $0x61] sm:$0xff]
      %v2934 = vld [vmem:[%s2924 + $0x69] sm:$0xff]
      %v2935 = vld [vmem:[%s2924 + $0x79] sm:$0xff]
      %v2936 = vld [vmem:[%s2924 + $0x81] sm:$0xff]
      %v2937 = vld [vmem:[%s2924 + $0x91] sm:$0xff]
      %v2938 = vld [vmem:[%s2924 + $0x99] sm:$0xff]
      %v2939 = vld [vmem:[%s2924 + $0xa9] sm:$0xff]
      %v2940 = vld [vmem:[%s2924 + $0xb1] sm:$0xff]
      %v2941 = vld [vmem:[%s2924 + $0xc1] sm:$0xff]
      %v2942 = vld [vmem:[%s2924 + $0xc9] sm:$0xff]
      %v2943 = vld [vmem:[%s2924 + $0xd9] sm:$0xff]
      %v2944 = vld [vmem:[%s2924 + $0xe1] sm:$0xff]
      %v2945 = vld [vmem:[%s2924 + $0xf1] sm:$0xff]
      %v2946 = vld [vmem:[%s2924 + $0xf9] sm:$0xff]
      %v2947 = vld [vmem:[%s2924 + $0x109] sm:$0xff]
      %v2948 = vld [vmem:[%s2924 + $0x111] sm:$0xff]
      %v2949 = vld [vmem:[%s2924 + $0x121] sm:$0xff]
      %v2950 = vld [vmem:[%s2924 + $0x129] sm:$0xff]
      %v2951 = vld [vmem:[%s2924 + $0x139] sm:$0xff]
      %v2952 = vld [vmem:[%s2924 + $0x141] sm:$0xff]
      %v2953 = vld [vmem:[%s2924 + $0x151] sm:$0xff]
      %v2954 = vld [vmem:[%s2924 + $0x159] sm:$0xff]
      %v2955 = vld [vmem:[%s2924 + $0x169] sm:$0xff]
      %v2956 = vld [vmem:[%s2924 + $0x171] sm:$0xff]
      %v2957 = vpack.c.bf16 %v2925, %v2925
      %v2958 = vpack.c.bf16 %v2926, %v2926
      %v2959 = vpack.c.bf16 %v2927, %v2927
      %v2960 = vpack.c.bf16 %v2928, %v2928
      %v2961 = vpack.c.bf16 %v2929, %v2929
      %v2962 = vpack.c.bf16 %v2930, %v2930
      %v2963 = vpack.c.bf16 %v2931, %v2931
      %v2964 = vpack.c.bf16 %v2932, %v2932
      %v2965 = vpack.c.bf16 %v2933, %v2933
      %v2966 = vpack.c.bf16 %v2934, %v2934
      %v2967 = vpack.c.bf16 %v2935, %v2935
      %v2968 = vpack.c.bf16 %v2936, %v2936
      %v2969 = vpack.c.bf16 %v2937, %v2937
      %v2970 = vpack.c.bf16 %v2938, %v2938
      %v2971 = vpack.c.bf16 %v2939, %v2939
      %v2972 = vpack.c.bf16 %v2940, %v2940
      %v2973 = vpack.c.bf16 %v2941, %v2941
      %v2974 = vpack.c.bf16 %v2942, %v2942
      %v2975 = vpack.c.bf16 %v2943, %v2943
      %v2976 = vpack.c.bf16 %v2944, %v2944
      %v2977 = vpack.c.bf16 %v2945, %v2945
      %v2978 = vpack.c.bf16 %v2946, %v2946
      %v2979 = vpack.c.bf16 %v2947, %v2947
      %v2980 = vpack.c.bf16 %v2948, %v2948
      %v2981 = vpack.c.bf16 %v2949, %v2949
      %v2982 = vpack.c.bf16 %v2950, %v2950
      %v2983 = vpack.c.bf16 %v2951, %v2951
      %v2984 = vpack.c.bf16 %v2952, %v2952
      %v2985 = vpack.c.bf16 %v2953, %v2953
      %v2986 = vpack.c.bf16 %v2954, %v2954
      %v2987 = vpack.c.bf16 %v2955, %v2955
      %v2988 = vpack.c.bf16 %v2956, %v2956
      %vm2989 = vcmask 60416
      %2990 = vst.msk [vmem:[%s313] sm:$0xf] %vm2989, %v2957
      %2991 = vst.msk [vmem:[%s313 + $0x4] sm:$0xf] %vm2989, %v2958
      %2992 = vst.msk [vmem:[%s313 + $0x8] sm:$0xf] %vm2989, %v2959
      %2993 = vst.msk [vmem:[%s313 + $0xc] sm:$0xf] %vm2989, %v2960
      %2994 = vst.msk [vmem:[%s313 + $0x10] sm:$0xf] %vm2989, %v2961
      %2995 = vst.msk [vmem:[%s313 + $0x14] sm:$0xf] %vm2989, %v2962
      %2996 = vst.msk [vmem:[%s313 + $0x18] sm:$0xf] %vm2989, %v2963
      %2997 = vst.msk [vmem:[%s313 + $0x1c] sm:$0xf] %vm2989, %v2964
      %2998 = vst.msk [vmem:[%s313 + $0x20] sm:$0xf] %vm2989, %v2965
      %2999 = vst.msk [vmem:[%s313 + $0x24] sm:$0xf] %vm2989, %v2966
      %3000 = vst.msk [vmem:[%s313 + $0x28] sm:$0xf] %vm2989, %v2967
      %3001 = vst.msk [vmem:[%s313 + $0x2c] sm:$0xf] %vm2989, %v2968
      %3002 = vst.msk [vmem:[%s313 + $0x30] sm:$0xf] %vm2989, %v2969
      %3003 = vst.msk [vmem:[%s313 + $0x34] sm:$0xf] %vm2989, %v2970
      %3004 = vst.msk [vmem:[%s313 + $0x38] sm:$0xf] %vm2989, %v2971
      %3005 = vst.msk [vmem:[%s313 + $0x3c] sm:$0xf] %vm2989, %v2972
      %3006 = vst.msk [vmem:[%s313 + $0x40] sm:$0xf] %vm2989, %v2973
      %3007 = vst.msk [vmem:[%s313 + $0x44] sm:$0xf] %vm2989, %v2974
      %3008 = vst.msk [vmem:[%s313 + $0x48] sm:$0xf] %vm2989, %v2975
      %3009 = vst.msk [vmem:[%s313 + $0x4c] sm:$0xf] %vm2989, %v2976
      %3010 = vst.msk [vmem:[%s313 + $0x50] sm:$0xf] %vm2989, %v2977
      %3011 = vst.msk [vmem:[%s313 + $0x54] sm:$0xf] %vm2989, %v2978
      %3012 = vst.msk [vmem:[%s313 + $0x58] sm:$0xf] %vm2989, %v2979
      %3013 = vst.msk [vmem:[%s313 + $0x5c] sm:$0xf] %vm2989, %v2980
      %3014 = vst.msk [vmem:[%s313 + $0x60] sm:$0xf] %vm2989, %v2981
      %3015 = vst.msk [vmem:[%s313 + $0x64] sm:$0xf] %vm2989, %v2982
      %3016 = vst.msk [vmem:[%s313 + $0x68] sm:$0xf] %vm2989, %v2983
      %3017 = vst.msk [vmem:[%s313 + $0x6c] sm:$0xf] %vm2989, %v2984
      %3018 = vst.msk [vmem:[%s313 + $0x70] sm:$0xf] %vm2989, %v2985
      %3019 = vst.msk [vmem:[%s313 + $0x74] sm:$0xf] %vm2989, %v2986
      %3020 = vst.msk [vmem:[%s313 + $0x78] sm:$0xf] %vm2989, %v2987
      %3021 = vst.msk [vmem:[%s313 + $0x7c] sm:$0xf] %vm2989, %v2988
      %v3022 = vld [vmem:[#allocation2] sm:$0xff]
      %v3023 = vld [vmem:[#allocation2 + $0x8] sm:$0xff]
      %v3024 = vld [vmem:[#allocation2 + $0x18] sm:$0xff]
      %v3025 = vld [vmem:[#allocation2 + $0x20] sm:$0xff]
      %v3026 = vld [vmem:[#allocation2 + $0x30] sm:$0xff]
      %v3027 = vld [vmem:[#allocation2 + $0x38] sm:$0xff]
      %v3028 = vld [vmem:[#allocation2 + $0x48] sm:$0xff]
      %v3029 = vld [vmem:[#allocation2 + $0x50] sm:$0xff]
      %v3030 = vld [vmem:[#allocation2 + $0x60] sm:$0xff]
      %v3031 = vld [vmem:[#allocation2 + $0x68] sm:$0xff]
      %v3032 = vld [vmem:[#allocation2 + $0x78] sm:$0xff]
      %v3033 = vld [vmem:[#allocation2 + $0x80] sm:$0xff]
      %v3034 = vld [vmem:[#allocation2 + $0x90] sm:$0xff]
      %v3035 = vld [vmem:[#allocation2 + $0x98] sm:$0xff]
      %v3036 = vld [vmem:[#allocation2 + $0xa8] sm:$0xff]
      %v3037 = vld [vmem:[#allocation2 + $0xb0] sm:$0xff]
      %v3038 = vld [vmem:[#allocation2 + $0xc0] sm:$0xff]
      %v3039 = vld [vmem:[#allocation2 + $0xc8] sm:$0xff]
      %v3040 = vld [vmem:[#allocation2 + $0xd8] sm:$0xff]
      %v3041 = vld [vmem:[#allocation2 + $0xe0] sm:$0xff]
      %v3042 = vld [vmem:[#allocation2 + $0xf0] sm:$0xff]
      %v3043 = vld [vmem:[#allocation2 + $0xf8] sm:$0xff]
      %v3044 = vld [vmem:[#allocation2 + $0x108] sm:$0xff]
      %v3045 = vld [vmem:[#allocation2 + $0x110] sm:$0xff]
      %v3046 = vld [vmem:[#allocation2 + $0x120] sm:$0xff]
      %v3047 = vld [vmem:[#allocation2 + $0x128] sm:$0xff]
      %v3048 = vld [vmem:[#allocation2 + $0x138] sm:$0xff]
      %v3049 = vld [vmem:[#allocation2 + $0x140] sm:$0xff]
      %v3050 = vld [vmem:[#allocation2 + $0x150] sm:$0xff]
      %v3051 = vld [vmem:[#allocation2 + $0x158] sm:$0xff]
      %v3052 = vld [vmem:[#allocation2 + $0x168] sm:$0xff]
      %v3053 = vld [vmem:[#allocation2 + $0x170] sm:$0xff]
      %v3054 = vld [vmem:[%s4] sm:$0xf]
      %v3055 = vld [vmem:[#allocation2 + $0x1] sm:$0xff]
      %v3056 = vld [vmem:[#allocation2 + $0x9] sm:$0xff]
      %v3057 = vld [vmem:[#allocation2 + $0x19] sm:$0xff]
      %v3058 = vld [vmem:[#allocation2 + $0x21] sm:$0xff]
      %v3059 = vld [vmem:[#allocation2 + $0x31] sm:$0xff]
      %v3060 = vld [vmem:[#allocation2 + $0x39] sm:$0xff]
      %v3061 = vld [vmem:[#allocation2 + $0x49] sm:$0xff]
      %v3062 = vld [vmem:[#allocation2 + $0x51] sm:$0xff]
      %v3063 = vld [vmem:[#allocation2 + $0x61] sm:$0xff]
      %v3064 = vld [vmem:[#allocation2 + $0x69] sm:$0xff]
      %v3065 = vld [vmem:[#allocation2 + $0x79] sm:$0xff]
      %v3066 = vld [vmem:[#allocation2 + $0x81] sm:$0xff]
      %v3067 = vld [vmem:[#allocation2 + $0x91] sm:$0xff]
      %v3068 = vld [vmem:[#allocation2 + $0x99] sm:$0xff]
      %v3069 = vld [vmem:[#allocation2 + $0xa9] sm:$0xff]
      %v3070 = vld [vmem:[#allocation2 + $0xb1] sm:$0xff]
      %v3071 = vld [vmem:[#allocation2 + $0xc1] sm:$0xff]
      %v3072 = vld [vmem:[#allocation2 + $0xc9] sm:$0xff]
      %v3073 = vld [vmem:[#allocation2 + $0xd9] sm:$0xff]
      %v3074 = vld [vmem:[#allocation2 + $0xe1] sm:$0xff]
      %v3075 = vld [vmem:[#allocation2 + $0xf1] sm:$0xff]
      %v3076 = vld [vmem:[#allocation2 + $0xf9] sm:$0xff]
      %v3077 = vld [vmem:[#allocation2 + $0x109] sm:$0xff]
      %v3078 = vld [vmem:[#allocation2 + $0x111] sm:$0xff]
      %v3079 = vld [vmem:[#allocation2 + $0x121] sm:$0xff]
      %v3080 = vld [vmem:[#allocation2 + $0x129] sm:$0xff]
      %v3081 = vld [vmem:[#allocation2 + $0x139] sm:$0xff]
      %v3082 = vld [vmem:[#allocation2 + $0x141] sm:$0xff]
      %v3083 = vld [vmem:[#allocation2 + $0x151] sm:$0xff]
      %v3084 = vld [vmem:[#allocation2 + $0x159] sm:$0xff]
      %v3085 = vld [vmem:[#allocation2 + $0x169] sm:$0xff]
      %v3086 = vld [vmem:[#allocation2 + $0x171] sm:$0xff]
      %s3087 = scalar_lea.vmem %s4, 4
      %v3088 = vld [vmem:[%s3087] sm:$0xf]
      %v3090 = vsel %vm2868, %v3055, 0
      %v3093 = vsel %vm2868, %v3056, 0
      %v3096 = vsel %vm2868, %v3057, 0
      %v3099 = vsel %vm2868, %v3058, 0
      %v3102 = vsel %vm2868, %v3059, 0
      %v3105 = vsel %vm2868, %v3060, 0
      %v3108 = vsel %vm2868, %v3061, 0
      %v3111 = vsel %vm2868, %v3062, 0
      %v3114 = vsel %vm2868, %v3063, 0
      %v3117 = vsel %vm2868, %v3064, 0
      %v3120 = vsel %vm2868, %v3065, 0
      %v3123 = vsel %vm2868, %v3066, 0
      %v3126 = vsel %vm2868, %v3067, 0
      %v3129 = vsel %vm2868, %v3068, 0
      %v3132 = vsel %vm2868, %v3069, 0
      %v3135 = vsel %vm2868, %v3070, 0
      %v3138 = vsel %vm2868, %v3071, 0
      %v3141 = vsel %vm2868, %v3072, 0
      %v3144 = vsel %vm2868, %v3073, 0
      %v3147 = vsel %vm2868, %v3074, 0
      %v3150 = vsel %vm2868, %v3075, 0
      %v3153 = vsel %vm2868, %v3076, 0
      %v3156 = vsel %vm2868, %v3077, 0
      %v3159 = vsel %vm2868, %v3078, 0
      %v3162 = vsel %vm2868, %v3079, 0
      %v3165 = vsel %vm2868, %v3080, 0
      %v3168 = vsel %vm2868, %v3081, 0
      %v3171 = vsel %vm2868, %v3082, 0
      %v3174 = vsel %vm2868, %v3083, 0
      %v3177 = vsel %vm2868, %v3084, 0
      %v3180 = vsel %vm2868, %v3085, 0
      %v3183 = vsel %vm2868, %v3086, 0
      %vm3185 = vcmask 1043456
      %v3187 = vsel %vm3185, %v3088, 0
      %3189 = vmatpush.bf16.msra.mxu0 0
      %3190 = vmatpush.bf16.msra.mxu0 0
      %3191 = vmatpush.bf16.msra.mxu0 0
      %3192 = vmatpush.bf16.msra.mxu0 0
      %3193 = vmatpush.bf16.msra.mxu0 0
      %3194 = vmatpush.bf16.msra.mxu0 0
      %3195 = vmatpush.bf16.msra.mxu0 0
      %3196 = vmatpush.bf16.msra.mxu0 %v3187
      %3197 = vmatmul.f32.gmra.mxu0 %v3090
      %v3198 = vpop.f32.mrf.mxu0
      %v3199 = vadd.f32 0.0, %v3198
      %3200 = vmatmul.f32.gmra.mxu0 %v3093
      %v3201 = vpop.f32.mrf.mxu0
      %v3202 = vadd.f32 0.0, %v3201
      %3203 = vmatmul.f32.gmra.mxu0 %v3096
      %v3204 = vpop.f32.mrf.mxu0
      %v3205 = vadd.f32 0.0, %v3204
      %3206 = vmatmul.f32.gmra.mxu0 %v3099
      %v3207 = vpop.f32.mrf.mxu0
      %v3208 = vadd.f32 0.0, %v3207
      %3209 = vmatmul.f32.gmra.mxu0 %v3102
      %v3210 = vpop.f32.mrf.mxu0
      %v3211 = vadd.f32 0.0, %v3210
      %3212 = vmatmul.f32.gmra.mxu0 %v3105
      %v3213 = vpop.f32.mrf.mxu0
      %v3214 = vadd.f32 0.0, %v3213
      %3215 = vmatmul.f32.gmra.mxu0 %v3108
      %v3216 = vpop.f32.mrf.mxu0
      %v3217 = vadd.f32 0.0, %v3216
      %3218 = vmatmul.f32.gmra.mxu0 %v3111
      %v3219 = vpop.f32.mrf.mxu0
      %v3220 = vadd.f32 0.0, %v3219
      %3221 = vmatmul.f32.gmra.mxu0 %v3114
      %v3222 = vpop.f32.mrf.mxu0
      %v3223 = vadd.f32 0.0, %v3222
      %3224 = vmatmul.f32.gmra.mxu0 %v3117
      %v3225 = vpop.f32.mrf.mxu0
      %v3226 = vadd.f32 0.0, %v3225
      %3227 = vmatmul.f32.gmra.mxu0 %v3120
      %v3228 = vpop.f32.mrf.mxu0
      %v3229 = vadd.f32 0.0, %v3228
      %3230 = vmatmul.f32.gmra.mxu0 %v3123
      %v3231 = vpop.f32.mrf.mxu0
      %v3232 = vadd.f32 0.0, %v3231
      %3233 = vmatmul.f32.gmra.mxu0 %v3126
      %v3234 = vpop.f32.mrf.mxu0
      %v3235 = vadd.f32 0.0, %v3234
      %3236 = vmatmul.f32.gmra.mxu0 %v3129
      %v3237 = vpop.f32.mrf.mxu0
      %v3238 = vadd.f32 0.0, %v3237
      %3239 = vmatmul.f32.gmra.mxu0 %v3132
      %v3240 = vpop.f32.mrf.mxu0
      %v3241 = vadd.f32 0.0, %v3240
      %3242 = vmatmul.f32.gmra.mxu0 %v3135
      %v3243 = vpop.f32.mrf.mxu0
      %v3244 = vadd.f32 0.0, %v3243
      %3245 = vmatmul.f32.gmra.mxu0 %v3138
      %v3246 = vpop.f32.mrf.mxu0
      %v3247 = vadd.f32 0.0, %v3246
      %3248 = vmatmul.f32.gmra.mxu0 %v3141
      %v3249 = vpop.f32.mrf.mxu0
      %v3250 = vadd.f32 0.0, %v3249
      %3251 = vmatmul.f32.gmra.mxu0 %v3144
      %v3252 = vpop.f32.mrf.mxu0
      %v3253 = vadd.f32 0.0, %v3252
      %3254 = vmatmul.f32.gmra.mxu0 %v3147
      %v3255 = vpop.f32.mrf.mxu0
      %v3256 = vadd.f32 0.0, %v3255
      %3257 = vmatmul.f32.gmra.mxu0 %v3150
      %v3258 = vpop.f32.mrf.mxu0
      %v3259 = vadd.f32 0.0, %v3258
      %3260 = vmatmul.f32.gmra.mxu0 %v3153
      %v3261 = vpop.f32.mrf.mxu0
      %v3262 = vadd.f32 0.0, %v3261
      %3263 = vmatmul.f32.gmra.mxu0 %v3156
      %v3264 = vpop.f32.mrf.mxu0
      %v3265 = vadd.f32 0.0, %v3264
      %3266 = vmatmul.f32.gmra.mxu0 %v3159
      %v3267 = vpop.f32.mrf.mxu0
      %v3268 = vadd.f32 0.0, %v3267
      %3269 = vmatmul.f32.gmra.mxu0 %v3162
      %v3270 = vpop.f32.mrf.mxu0
      %v3271 = vadd.f32 0.0, %v3270
      %3272 = vmatmul.f32.gmra.mxu0 %v3165
      %v3273 = vpop.f32.mrf.mxu0
      %v3274 = vadd.f32 0.0, %v3273
      %3275 = vmatmul.f32.gmra.mxu0 %v3168
      %v3276 = vpop.f32.mrf.mxu0
      %v3277 = vadd.f32 0.0, %v3276
      %3278 = vmatmul.f32.gmra.mxu0 %v3171
      %v3279 = vpop.f32.mrf.mxu0
      %v3280 = vadd.f32 0.0, %v3279
      %3281 = vmatmul.f32.gmra.mxu0 %v3174
      %v3282 = vpop.f32.mrf.mxu0
      %v3283 = vadd.f32 0.0, %v3282
      %3284 = vmatmul.f32.gmra.mxu0 %v3177
      %v3285 = vpop.f32.mrf.mxu0
      %v3286 = vadd.f32 0.0, %v3285
      %3287 = vmatmul.f32.gmra.mxu0 %v3180
      %v3288 = vpop.f32.mrf.mxu0
      %v3289 = vadd.f32 0.0, %v3288
      %3290 = vmatmul.f32.gmra.mxu0 %v3183
      %v3291 = vpop.f32.mrf.mxu0
      %v3292 = vadd.f32 0.0, %v3291
      %3293 = vdwg.mxu0
      %v3295 = vsel %vm2868, %v3022, 0
      %v3298 = vsel %vm2868, %v3023, 0
      %v3301 = vsel %vm2868, %v3024, 0
      %v3304 = vsel %vm2868, %v3025, 0
      %v3307 = vsel %vm2868, %v3026, 0
      %v3310 = vsel %vm2868, %v3027, 0
      %v3313 = vsel %vm2868, %v3028, 0
      %v3316 = vsel %vm2868, %v3029, 0
      %v3319 = vsel %vm2868, %v3030, 0
      %v3322 = vsel %vm2868, %v3031, 0
      %v3325 = vsel %vm2868, %v3032, 0
      %v3328 = vsel %vm2868, %v3033, 0
      %v3331 = vsel %vm2868, %v3034, 0
      %v3334 = vsel %vm2868, %v3035, 0
      %v3337 = vsel %vm2868, %v3036, 0
      %v3340 = vsel %vm2868, %v3037, 0
      %v3343 = vsel %vm2868, %v3038, 0
      %v3346 = vsel %vm2868, %v3039, 0
      %v3349 = vsel %vm2868, %v3040, 0
      %v3352 = vsel %vm2868, %v3041, 0
      %v3355 = vsel %vm2868, %v3042, 0
      %v3358 = vsel %vm2868, %v3043, 0
      %v3361 = vsel %vm2868, %v3044, 0
      %v3364 = vsel %vm2868, %v3045, 0
      %v3367 = vsel %vm2868, %v3046, 0
      %v3370 = vsel %vm2868, %v3047, 0
      %v3373 = vsel %vm2868, %v3048, 0
      %v3376 = vsel %vm2868, %v3049, 0
      %v3379 = vsel %vm2868, %v3050, 0
      %v3382 = vsel %vm2868, %v3051, 0
      %v3385 = vsel %vm2868, %v3052, 0
      %v3388 = vsel %vm2868, %v3053, 0
      %v3391 = vsel %vm3185, %v3054, 0
      %3393 = vmatpush.bf16.msra.mxu0 0
      %3394 = vmatpush.bf16.msra.mxu0 0
      %3395 = vmatpush.bf16.msra.mxu0 0
      %3396 = vmatpush.bf16.msra.mxu0 0
      %3397 = vmatpush.bf16.msra.mxu0 0
      %3398 = vmatpush.bf16.msra.mxu0 0
      %3399 = vmatpush.bf16.msra.mxu0 0
      %3400 = vmatpush.bf16.msra.mxu0 %v3391
      %3401 = vmatmul.f32.gmra.mxu0 %v3295
      %v3402 = vpop.f32.mrf.mxu0
      %v3403 = vadd.f32 %v3199, %v3402
      %3404 = vmatmul.f32.gmra.mxu0 %v3298
      %v3405 = vpop.f32.mrf.mxu0
      %v3406 = vadd.f32 %v3202, %v3405
      %3407 = vmatmul.f32.gmra.mxu0 %v3301
      %v3408 = vpop.f32.mrf.mxu0
      %v3409 = vadd.f32 %v3205, %v3408
      %3410 = vmatmul.f32.gmra.mxu0 %v3304
      %v3411 = vpop.f32.mrf.mxu0
      %v3412 = vadd.f32 %v3208, %v3411
      %3413 = vmatmul.f32.gmra.mxu0 %v3307
      %v3414 = vpop.f32.mrf.mxu0
      %v3415 = vadd.f32 %v3211, %v3414
      %3416 = vmatmul.f32.gmra.mxu0 %v3310
      %v3417 = vpop.f32.mrf.mxu0
      %v3418 = vadd.f32 %v3214, %v3417
      %3419 = vmatmul.f32.gmra.mxu0 %v3313
      %v3420 = vpop.f32.mrf.mxu0
      %v3421 = vadd.f32 %v3217, %v3420
      %3422 = vmatmul.f32.gmra.mxu0 %v3316
      %v3423 = vpop.f32.mrf.mxu0
      %v3424 = vadd.f32 %v3220, %v3423
      %3425 = vmatmul.f32.gmra.mxu0 %v3319
      %v3426 = vpop.f32.mrf.mxu0
      %v3427 = vadd.f32 %v3223, %v3426
      %3428 = vmatmul.f32.gmra.mxu0 %v3322
      %v3429 = vpop.f32.mrf.mxu0
      %v3430 = vadd.f32 %v3226, %v3429
      %3431 = vmatmul.f32.gmra.mxu0 %v3325
      %v3432 = vpop.f32.mrf.mxu0
      %v3433 = vadd.f32 %v3229, %v3432
      %3434 = vmatmul.f32.gmra.mxu0 %v3328
      %v3435 = vpop.f32.mrf.mxu0
      %v3436 = vadd.f32 %v3232, %v3435
      %3437 = vmatmul.f32.gmra.mxu0 %v3331
      %v3438 = vpop.f32.mrf.mxu0
      %v3439 = vadd.f32 %v3235, %v3438
      %3440 = vmatmul.f32.gmra.mxu0 %v3334
      %v3441 = vpop.f32.mrf.mxu0
      %v3442 = vadd.f32 %v3238, %v3441
      %3443 = vmatmul.f32.gmra.mxu0 %v3337
      %v3444 = vpop.f32.mrf.mxu0
      %v3445 = vadd.f32 %v3241, %v3444
      %3446 = vmatmul.f32.gmra.mxu0 %v3340
      %v3447 = vpop.f32.mrf.mxu0
      %v3448 = vadd.f32 %v3244, %v3447
      %3449 = vmatmul.f32.gmra.mxu0 %v3343
      %v3450 = vpop.f32.mrf.mxu0
      %v3451 = vadd.f32 %v3247, %v3450
      %3452 = vmatmul.f32.gmra.mxu0 %v3346
      %v3453 = vpop.f32.mrf.mxu0
      %v3454 = vadd.f32 %v3250, %v3453
      %3455 = vmatmul.f32.gmra.mxu0 %v3349
      %v3456 = vpop.f32.mrf.mxu0
      %v3457 = vadd.f32 %v3253, %v3456
      %3458 = vmatmul.f32.gmra.mxu0 %v3352
      %v3459 = vpop.f32.mrf.mxu0
      %v3460 = vadd.f32 %v3256, %v3459
      %3461 = vmatmul.f32.gmra.mxu0 %v3355
      %v3462 = vpop.f32.mrf.mxu0
      %v3463 = vadd.f32 %v3259, %v3462
      %3464 = vmatmul.f32.gmra.mxu0 %v3358
      %v3465 = vpop.f32.mrf.mxu0
      %v3466 = vadd.f32 %v3262, %v3465
      %3467 = vmatmul.f32.gmra.mxu0 %v3361
      %v3468 = vpop.f32.mrf.mxu0
      %v3469 = vadd.f32 %v3265, %v3468
      %3470 = vmatmul.f32.gmra.mxu0 %v3364
      %v3471 = vpop.f32.mrf.mxu0
      %v3472 = vadd.f32 %v3268, %v3471
      %3473 = vmatmul.f32.gmra.mxu0 %v3367
      %v3474 = vpop.f32.mrf.mxu0
      %v3475 = vadd.f32 %v3271, %v3474
      %3476 = vmatmul.f32.gmra.mxu0 %v3370
      %v3477 = vpop.f32.mrf.mxu0
      %v3478 = vadd.f32 %v3274, %v3477
      %3479 = vmatmul.f32.gmra.mxu0 %v3373
      %v3480 = vpop.f32.mrf.mxu0
      %v3481 = vadd.f32 %v3277, %v3480
      %3482 = vmatmul.f32.gmra.mxu0 %v3376
      %v3483 = vpop.f32.mrf.mxu0
      %v3484 = vadd.f32 %v3280, %v3483
      %3485 = vmatmul.f32.gmra.mxu0 %v3379
      %v3486 = vpop.f32.mrf.mxu0
      %v3487 = vadd.f32 %v3283, %v3486
      %3488 = vmatmul.f32.gmra.mxu0 %v3382
      %v3489 = vpop.f32.mrf.mxu0
      %v3490 = vadd.f32 %v3286, %v3489
      %3491 = vmatmul.f32.gmra.mxu0 %v3385
      %v3492 = vpop.f32.mrf.mxu0
      %v3493 = vadd.f32 %v3289, %v3492
      %3494 = vmatmul.f32.gmra.mxu0 %v3388
      %v3495 = vpop.f32.mrf.mxu0
      %v3496 = vadd.f32 %v3292, %v3495
      %3497 = vdwg.mxu0
      %v3498 = vld [vmem:[#allocation2 + $0x2] sm:$0xff]
      %v3499 = vld [vmem:[#allocation2 + $0xa] sm:$0xff]
      %v3500 = vld [vmem:[#allocation2 + $0x1a] sm:$0xff]
      %v3501 = vld [vmem:[#allocation2 + $0x22] sm:$0xff]
      %v3502 = vld [vmem:[#allocation2 + $0x32] sm:$0xff]
      %v3503 = vld [vmem:[#allocation2 + $0x3a] sm:$0xff]
      %v3504 = vld [vmem:[#allocation2 + $0x4a] sm:$0xff]
      %v3505 = vld [vmem:[#allocation2 + $0x52] sm:$0xff]
      %v3506 = vld [vmem:[#allocation2 + $0x62] sm:$0xff]
      %v3507 = vld [vmem:[#allocation2 + $0x6a] sm:$0xff]
      %v3508 = vld [vmem:[#allocation2 + $0x7a] sm:$0xff]
      %v3509 = vld [vmem:[#allocation2 + $0x82] sm:$0xff]
      %v3510 = vld [vmem:[#allocation2 + $0x92] sm:$0xff]
      %v3511 = vld [vmem:[#allocation2 + $0x9a] sm:$0xff]
      %v3512 = vld [vmem:[#allocation2 + $0xaa] sm:$0xff]
      %v3513 = vld [vmem:[#allocation2 + $0xb2] sm:$0xff]
      %v3514 = vld [vmem:[#allocation2 + $0xc2] sm:$0xff]
      %v3515 = vld [vmem:[#allocation2 + $0xca] sm:$0xff]
      %v3516 = vld [vmem:[#allocation2 + $0xda] sm:$0xff]
      %v3517 = vld [vmem:[#allocation2 + $0xe2] sm:$0xff]
      %v3518 = vld [vmem:[#allocation2 + $0xf2] sm:$0xff]
      %v3519 = vld [vmem:[#allocation2 + $0xfa] sm:$0xff]
      %v3520 = vld [vmem:[#allocation2 + $0x10a] sm:$0xff]
      %v3521 = vld [vmem:[#allocation2 + $0x112] sm:$0xff]
      %v3522 = vld [vmem:[#allocation2 + $0x122] sm:$0xff]
      %v3523 = vld [vmem:[#allocation2 + $0x12a] sm:$0xff]
      %v3524 = vld [vmem:[#allocation2 + $0x13a] sm:$0xff]
      %v3525 = vld [vmem:[#allocation2 + $0x142] sm:$0xff]
      %v3526 = vld [vmem:[#allocation2 + $0x152] sm:$0xff]
      %v3527 = vld [vmem:[#allocation2 + $0x15a] sm:$0xff]
      %v3528 = vld [vmem:[#allocation2 + $0x16a] sm:$0xff]
      %v3529 = vld [vmem:[#allocation2 + $0x172] sm:$0xff]
      %s3530 = scalar_lea.vmem %s4, 8
      %v3531 = vld [vmem:[%s3530] sm:$0xf]
      %v3533 = vsel %vm2868, %v3498, 0
      %v3536 = vsel %vm2868, %v3499, 0
      %v3539 = vsel %vm2868, %v3500, 0
      %v3542 = vsel %vm2868, %v3501, 0
      %v3545 = vsel %vm2868, %v3502, 0
      %v3548 = vsel %vm2868, %v3503, 0
      %v3551 = vsel %vm2868, %v3504, 0
      %v3554 = vsel %vm2868, %v3505, 0
      %v3557 = vsel %vm2868, %v3506, 0
      %v3560 = vsel %vm2868, %v3507, 0
      %v3563 = vsel %vm2868, %v3508, 0
      %v3566 = vsel %vm2868, %v3509, 0
      %v3569 = vsel %vm2868, %v3510, 0
      %v3572 = vsel %vm2868, %v3511, 0
      %v3575 = vsel %vm2868, %v3512, 0
      %v3578 = vsel %vm2868, %v3513, 0
      %v3581 = vsel %vm2868, %v3514, 0
      %v3584 = vsel %vm2868, %v3515, 0
      %v3587 = vsel %vm2868, %v3516, 0
      %v3590 = vsel %vm2868, %v3517, 0
      %v3593 = vsel %vm2868, %v3518, 0
      %v3596 = vsel %vm2868, %v3519, 0
      %v3599 = vsel %vm2868, %v3520, 0
      %v3602 = vsel %vm2868, %v3521, 0
      %v3605 = vsel %vm2868, %v3522, 0
      %v3608 = vsel %vm2868, %v3523, 0
      %v3611 = vsel %vm2868, %v3524, 0
      %v3614 = vsel %vm2868, %v3525, 0
      %v3617 = vsel %vm2868, %v3526, 0
      %v3620 = vsel %vm2868, %v3527, 0
      %v3623 = vsel %vm2868, %v3528, 0
      %v3626 = vsel %vm2868, %v3529, 0
      %v3629 = vsel %vm3185, %v3531, 0
      %3631 = vmatpush.bf16.msra.mxu0 0
      %3632 = vmatpush.bf16.msra.mxu0 0
      %3633 = vmatpush.bf16.msra.mxu0 0
      %3634 = vmatpush.bf16.msra.mxu0 0
      %3635 = vmatpush.bf16.msra.mxu0 0
      %3636 = vmatpush.bf16.msra.mxu0 0
      %3637 = vmatpush.bf16.msra.mxu0 0
      %3638 = vmatpush.bf16.msra.mxu0 %v3629
      %3639 = vmatmul.f32.gmra.mxu0 %v3533
      %v3640 = vpop.f32.mrf.mxu0
      %v3641 = vadd.f32 0.0, %v3640
      %3642 = vmatmul.f32.gmra.mxu0 %v3536
      %v3643 = vpop.f32.mrf.mxu0
      %v3644 = vadd.f32 0.0, %v3643
      %3645 = vmatmul.f32.gmra.mxu0 %v3539
      %v3646 = vpop.f32.mrf.mxu0
      %v3647 = vadd.f32 0.0, %v3646
      %3648 = vmatmul.f32.gmra.mxu0 %v3542
      %v3649 = vpop.f32.mrf.mxu0
      %v3650 = vadd.f32 0.0, %v3649
      %3651 = vmatmul.f32.gmra.mxu0 %v3545
      %v3652 = vpop.f32.mrf.mxu0
      %v3653 = vadd.f32 0.0, %v3652
      %3654 = vmatmul.f32.gmra.mxu0 %v3548
      %v3655 = vpop.f32.mrf.mxu0
      %v3656 = vadd.f32 0.0, %v3655
      %3657 = vmatmul.f32.gmra.mxu0 %v3551
      %v3658 = vpop.f32.mrf.mxu0
      %v3659 = vadd.f32 0.0, %v3658
      %3660 = vmatmul.f32.gmra.mxu0 %v3554
      %v3661 = vpop.f32.mrf.mxu0
      %v3662 = vadd.f32 0.0, %v3661
      %3663 = vmatmul.f32.gmra.mxu0 %v3557
      %v3664 = vpop.f32.mrf.mxu0
      %v3665 = vadd.f32 0.0, %v3664
      %3666 = vmatmul.f32.gmra.mxu0 %v3560
      %v3667 = vpop.f32.mrf.mxu0
      %v3668 = vadd.f32 0.0, %v3667
      %3669 = vmatmul.f32.gmra.mxu0 %v3563
      %v3670 = vpop.f32.mrf.mxu0
      %v3671 = vadd.f32 0.0, %v3670
      %3672 = vmatmul.f32.gmra.mxu0 %v3566
      %v3673 = vpop.f32.mrf.mxu0
      %v3674 = vadd.f32 0.0, %v3673
      %3675 = vmatmul.f32.gmra.mxu0 %v3569
      %v3676 = vpop.f32.mrf.mxu0
      %v3677 = vadd.f32 0.0, %v3676
      %3678 = vmatmul.f32.gmra.mxu0 %v3572
      %v3679 = vpop.f32.mrf.mxu0
      %v3680 = vadd.f32 0.0, %v3679
      %3681 = vmatmul.f32.gmra.mxu0 %v3575
      %v3682 = vpop.f32.mrf.mxu0
      %v3683 = vadd.f32 0.0, %v3682
      %3684 = vmatmul.f32.gmra.mxu0 %v3578
      %v3685 = vpop.f32.mrf.mxu0
      %v3686 = vadd.f32 0.0, %v3685
      %3687 = vmatmul.f32.gmra.mxu0 %v3581
      %v3688 = vpop.f32.mrf.mxu0
      %v3689 = vadd.f32 0.0, %v3688
      %3690 = vmatmul.f32.gmra.mxu0 %v3584
      %v3691 = vpop.f32.mrf.mxu0
      %v3692 = vadd.f32 0.0, %v3691
      %3693 = vmatmul.f32.gmra.mxu0 %v3587
      %v3694 = vpop.f32.mrf.mxu0
      %v3695 = vadd.f32 0.0, %v3694
      %3696 = vmatmul.f32.gmra.mxu0 %v3590
      %v3697 = vpop.f32.mrf.mxu0
      %v3698 = vadd.f32 0.0, %v3697
      %3699 = vmatmul.f32.gmra.mxu0 %v3593
      %v3700 = vpop.f32.mrf.mxu0
      %v3701 = vadd.f32 0.0, %v3700
      %3702 = vmatmul.f32.gmra.mxu0 %v3596
      %v3703 = vpop.f32.mrf.mxu0
      %v3704 = vadd.f32 0.0, %v3703
      %3705 = vmatmul.f32.gmra.mxu0 %v3599
      %v3706 = vpop.f32.mrf.mxu0
      %v3707 = vadd.f32 0.0, %v3706
      %3708 = vmatmul.f32.gmra.mxu0 %v3602
      %v3709 = vpop.f32.mrf.mxu0
      %v3710 = vadd.f32 0.0, %v3709
      %3711 = vmatmul.f32.gmra.mxu0 %v3605
      %v3712 = vpop.f32.mrf.mxu0
      %v3713 = vadd.f32 0.0, %v3712
      %3714 = vmatmul.f32.gmra.mxu0 %v3608
      %v3715 = vpop.f32.mrf.mxu0
      %v3716 = vadd.f32 0.0, %v3715
      %3717 = vmatmul.f32.gmra.mxu0 %v3611
      %v3718 = vpop.f32.mrf.mxu0
      %v3719 = vadd.f32 0.0, %v3718
      %3720 = vmatmul.f32.gmra.mxu0 %v3614
      %v3721 = vpop.f32.mrf.mxu0
      %v3722 = vadd.f32 0.0, %v3721
      %3723 = vmatmul.f32.gmra.mxu0 %v3617
      %v3724 = vpop.f32.mrf.mxu0
      %v3725 = vadd.f32 0.0, %v3724
      %3726 = vmatmul.f32.gmra.mxu0 %v3620
      %v3727 = vpop.f32.mrf.mxu0
      %v3728 = vadd.f32 0.0, %v3727
      %3729 = vmatmul.f32.gmra.mxu0 %v3623
      %v3730 = vpop.f32.mrf.mxu0
      %v3731 = vadd.f32 0.0, %v3730
      %3732 = vmatmul.f32.gmra.mxu0 %v3626
      %v3733 = vpop.f32.mrf.mxu0
      %v3734 = vadd.f32 0.0, %v3733
      %3735 = vdwg.mxu0
      %v3736 = vadd.f32 %v3403, %v3641
      %v3737 = vadd.f32 %v3406, %v3644
      %v3738 = vadd.f32 %v3409, %v3647
      %v3739 = vadd.f32 %v3412, %v3650
      %v3740 = vadd.f32 %v3415, %v3653
      %v3741 = vadd.f32 %v3418, %v3656
      %v3742 = vadd.f32 %v3421, %v3659
      %v3743 = vadd.f32 %v3424, %v3662
      %v3744 = vadd.f32 %v3427, %v3665
      %v3745 = vadd.f32 %v3430, %v3668
      %v3746 = vadd.f32 %v3433, %v3671
      %v3747 = vadd.f32 %v3436, %v3674
      %v3748 = vadd.f32 %v3439, %v3677
      %v3749 = vadd.f32 %v3442, %v3680
      %v3750 = vadd.f32 %v3445, %v3683
      %v3751 = vadd.f32 %v3448, %v3686
      %v3752 = vadd.f32 %v3451, %v3689
      %v3753 = vadd.f32 %v3454, %v3692
      %v3754 = vadd.f32 %v3457, %v3695
      %v3755 = vadd.f32 %v3460, %v3698
      %v3756 = vadd.f32 %v3463, %v3701
      %v3757 = vadd.f32 %v3466, %v3704
      %v3758 = vadd.f32 %v3469, %v3707
      %v3759 = vadd.f32 %v3472, %v3710
      %v3760 = vadd.f32 %v3475, %v3713
      %v3761 = vadd.f32 %v3478, %v3716
      %v3762 = vadd.f32 %v3481, %v3719
      %v3763 = vadd.f32 %v3484, %v3722
      %v3764 = vadd.f32 %v3487, %v3725
      %v3765 = vadd.f32 %v3490, %v3728
      %v3766 = vadd.f32 %v3493, %v3731
      %v3767 = vadd.f32 %v3496, %v3734
      %v3768 = vld [vmem:[%s2924] sm:$0xff]
      %v3769 = vld [vmem:[%s2924 + $0x8] sm:$0xff]
      %v3770 = vld [vmem:[%s2924 + $0x18] sm:$0xff]
      %v3771 = vld [vmem:[%s2924 + $0x20] sm:$0xff]
      %v3772 = vld [vmem:[%s2924 + $0x30] sm:$0xff]
      %v3773 = vld [vmem:[%s2924 + $0x38] sm:$0xff]
      %v3774 = vld [vmem:[%s2924 + $0x48] sm:$0xff]
      %v3775 = vld [vmem:[%s2924 + $0x50] sm:$0xff]
      %v3776 = vld [vmem:[%s2924 + $0x60] sm:$0xff]
      %v3777 = vld [vmem:[%s2924 + $0x68] sm:$0xff]
      %v3778 = vld [vmem:[%s2924 + $0x78] sm:$0xff]
      %v3779 = vld [vmem:[%s2924 + $0x80] sm:$0xff]
      %v3780 = vld [vmem:[%s2924 + $0x90] sm:$0xff]
      %v3781 = vld [vmem:[%s2924 + $0x98] sm:$0xff]
      %v3782 = vld [vmem:[%s2924 + $0xa8] sm:$0xff]
      %v3783 = vld [vmem:[%s2924 + $0xb0] sm:$0xff]
      %v3784 = vld [vmem:[%s2924 + $0xc0] sm:$0xff]
      %v3785 = vld [vmem:[%s2924 + $0xc8] sm:$0xff]
      %v3786 = vld [vmem:[%s2924 + $0xd8] sm:$0xff]
      %v3787 = vld [vmem:[%s2924 + $0xe0] sm:$0xff]
      %v3788 = vld [vmem:[%s2924 + $0xf0] sm:$0xff]
      %v3789 = vld [vmem:[%s2924 + $0xf8] sm:$0xff]
      %v3790 = vld [vmem:[%s2924 + $0x108] sm:$0xff]
      %v3791 = vld [vmem:[%s2924 + $0x110] sm:$0xff]
      %v3792 = vld [vmem:[%s2924 + $0x120] sm:$0xff]
      %v3793 = vld [vmem:[%s2924 + $0x128] sm:$0xff]
      %v3794 = vld [vmem:[%s2924 + $0x138] sm:$0xff]
      %v3795 = vld [vmem:[%s2924 + $0x140] sm:$0xff]
      %v3796 = vld [vmem:[%s2924 + $0x150] sm:$0xff]
      %v3797 = vld [vmem:[%s2924 + $0x158] sm:$0xff]
      %v3798 = vld [vmem:[%s2924 + $0x168] sm:$0xff]
      %v3799 = vld [vmem:[%s2924 + $0x170] sm:$0xff]
      %s3800 = scalar_lea.vmem %s4, 12
      %v3801 = vld [vmem:[%s3800] sm:$0xf]
      %v3803 = vsel %vm2868, %v3768, 0
      %v3806 = vsel %vm2868, %v3769, 0
      %v3809 = vsel %vm2868, %v3770, 0
      %v3812 = vsel %vm2868, %v3771, 0
      %v3815 = vsel %vm2868, %v3772, 0
      %v3818 = vsel %vm2868, %v3773, 0
      %v3821 = vsel %vm2868, %v3774, 0
      %v3824 = vsel %vm2868, %v3775, 0
      %v3827 = vsel %vm2868, %v3776, 0
      %v3830 = vsel %vm2868, %v3777, 0
      %v3833 = vsel %vm2868, %v3778, 0
      %v3836 = vsel %vm2868, %v3779, 0
      %v3839 = vsel %vm2868, %v3780, 0
      %v3842 = vsel %vm2868, %v3781, 0
      %v3845 = vsel %vm2868, %v3782, 0
      %v3848 = vsel %vm2868, %v3783, 0
      %v3851 = vsel %vm2868, %v3784, 0
      %v3854 = vsel %vm2868, %v3785, 0
      %v3857 = vsel %vm2868, %v3786, 0
      %v3860 = vsel %vm2868, %v3787, 0
      %v3863 = vsel %vm2868, %v3788, 0
      %v3866 = vsel %vm2868, %v3789, 0
      %v3869 = vsel %vm2868, %v3790, 0
      %v3872 = vsel %vm2868, %v3791, 0
      %v3875 = vsel %vm2868, %v3792, 0
      %v3878 = vsel %vm2868, %v3793, 0
      %v3881 = vsel %vm2868, %v3794, 0
      %v3884 = vsel %vm2868, %v3795, 0
      %v3887 = vsel %vm2868, %v3796, 0
      %v3890 = vsel %vm2868, %v3797, 0
      %v3893 = vsel %vm2868, %v3798, 0
      %v3896 = vsel %vm2868, %v3799, 0
      %v3899 = vsel %vm3185, %v3801, 0
      %3901 = vmatpush.bf16.msra.mxu0 0
      %3902 = vmatpush.bf16.msra.mxu0 0
      %3903 = vmatpush.bf16.msra.mxu0 0
      %3904 = vmatpush.bf16.msra.mxu0 0
      %3905 = vmatpush.bf16.msra.mxu0 0
      %3906 = vmatpush.bf16.msra.mxu0 0
      %3907 = vmatpush.bf16.msra.mxu0 0
      %3908 = vmatpush.bf16.msra.mxu0 %v3899
      %3909 = vmatmul.f32.gmra.mxu0 %v3803
      %v3910 = vpop.f32.mrf.mxu0
      %v3911 = vadd.f32 0.0, %v3910
      %3912 = vmatmul.f32.gmra.mxu0 %v3806
      %v3913 = vpop.f32.mrf.mxu0
      %v3914 = vadd.f32 0.0, %v3913
      %3915 = vmatmul.f32.gmra.mxu0 %v3809
      %v3916 = vpop.f32.mrf.mxu0
      %v3917 = vadd.f32 0.0, %v3916
      %3918 = vmatmul.f32.gmra.mxu0 %v3812
      %v3919 = vpop.f32.mrf.mxu0
      %v3920 = vadd.f32 0.0, %v3919
      %3921 = vmatmul.f32.gmra.mxu0 %v3815
      %v3922 = vpop.f32.mrf.mxu0
      %v3923 = vadd.f32 0.0, %v3922
      %3924 = vmatmul.f32.gmra.mxu0 %v3818
      %v3925 = vpop.f32.mrf.mxu0
      %v3926 = vadd.f32 0.0, %v3925
      %3927 = vmatmul.f32.gmra.mxu0 %v3821
      %v3928 = vpop.f32.mrf.mxu0
      %v3929 = vadd.f32 0.0, %v3928
      %3930 = vmatmul.f32.gmra.mxu0 %v3824
      %v3931 = vpop.f32.mrf.mxu0
      %v3932 = vadd.f32 0.0, %v3931
      %3933 = vmatmul.f32.gmra.mxu0 %v3827
      %v3934 = vpop.f32.mrf.mxu0
      %v3935 = vadd.f32 0.0, %v3934
      %3936 = vmatmul.f32.gmra.mxu0 %v3830
      %v3937 = vpop.f32.mrf.mxu0
      %v3938 = vadd.f32 0.0, %v3937
      %3939 = vmatmul.f32.gmra.mxu0 %v3833
      %v3940 = vpop.f32.mrf.mxu0
      %v3941 = vadd.f32 0.0, %v3940
      %3942 = vmatmul.f32.gmra.mxu0 %v3836
      %v3943 = vpop.f32.mrf.mxu0
      %v3944 = vadd.f32 0.0, %v3943
      %3945 = vmatmul.f32.gmra.mxu0 %v3839
      %v3946 = vpop.f32.mrf.mxu0
      %v3947 = vadd.f32 0.0, %v3946
      %3948 = vmatmul.f32.gmra.mxu0 %v3842
      %v3949 = vpop.f32.mrf.mxu0
      %v3950 = vadd.f32 0.0, %v3949
      %3951 = vmatmul.f32.gmra.mxu0 %v3845
      %v3952 = vpop.f32.mrf.mxu0
      %v3953 = vadd.f32 0.0, %v3952
      %3954 = vmatmul.f32.gmra.mxu0 %v3848
      %v3955 = vpop.f32.mrf.mxu0
      %v3956 = vadd.f32 0.0, %v3955
      %3957 = vmatmul.f32.gmra.mxu0 %v3851
      %v3958 = vpop.f32.mrf.mxu0
      %v3959 = vadd.f32 0.0, %v3958
      %3960 = vmatmul.f32.gmra.mxu0 %v3854
      %v3961 = vpop.f32.mrf.mxu0
      %v3962 = vadd.f32 0.0, %v3961
      %3963 = vmatmul.f32.gmra.mxu0 %v3857
      %v3964 = vpop.f32.mrf.mxu0
      %v3965 = vadd.f32 0.0, %v3964
      %3966 = vmatmul.f32.gmra.mxu0 %v3860
      %v3967 = vpop.f32.mrf.mxu0
      %v3968 = vadd.f32 0.0, %v3967
      %3969 = vmatmul.f32.gmra.mxu0 %v3863
      %v3970 = vpop.f32.mrf.mxu0
      %v3971 = vadd.f32 0.0, %v3970
      %3972 = vmatmul.f32.gmra.mxu0 %v3866
      %v3973 = vpop.f32.mrf.mxu0
      %v3974 = vadd.f32 0.0, %v3973
      %3975 = vmatmul.f32.gmra.mxu0 %v3869
      %v3976 = vpop.f32.mrf.mxu0
      %v3977 = vadd.f32 0.0, %v3976
      %3978 = vmatmul.f32.gmra.mxu0 %v3872
      %v3979 = vpop.f32.mrf.mxu0
      %v3980 = vadd.f32 0.0, %v3979
      %3981 = vmatmul.f32.gmra.mxu0 %v3875
      %v3982 = vpop.f32.mrf.mxu0
      %v3983 = vadd.f32 0.0, %v3982
      %3984 = vmatmul.f32.gmra.mxu0 %v3878
      %v3985 = vpop.f32.mrf.mxu0
      %v3986 = vadd.f32 0.0, %v3985
      %3987 = vmatmul.f32.gmra.mxu0 %v3881
      %v3988 = vpop.f32.mrf.mxu0
      %v3989 = vadd.f32 0.0, %v3988
      %3990 = vmatmul.f32.gmra.mxu0 %v3884
      %v3991 = vpop.f32.mrf.mxu0
      %v3992 = vadd.f32 0.0, %v3991
      %3993 = vmatmul.f32.gmra.mxu0 %v3887
      %v3994 = vpop.f32.mrf.mxu0
      %v3995 = vadd.f32 0.0, %v3994
      %3996 = vmatmul.f32.gmra.mxu0 %v3890
      %v3997 = vpop.f32.mrf.mxu0
      %v3998 = vadd.f32 0.0, %v3997
      %3999 = vmatmul.f32.gmra.mxu0 %v3893
      %v4000 = vpop.f32.mrf.mxu0
      %v4001 = vadd.f32 0.0, %v4000
      %4002 = vmatmul.f32.gmra.mxu0 %v3896
      %v4003 = vpop.f32.mrf.mxu0
      %v4004 = vadd.f32 0.0, %v4003
      %4005 = vdwg.mxu0
      %v4006 = vadd.f32 %v3736, %v3911
      %v4007 = vadd.f32 %v3737, %v3914
      %v4008 = vadd.f32 %v3738, %v3917
      %v4009 = vadd.f32 %v3739, %v3920
      %v4010 = vadd.f32 %v3740, %v3923
      %v4011 = vadd.f32 %v3741, %v3926
      %v4012 = vadd.f32 %v3742, %v3929
      %v4013 = vadd.f32 %v3743, %v3932
      %v4014 = vadd.f32 %v3744, %v3935
      %v4015 = vadd.f32 %v3745, %v3938
      %v4016 = vadd.f32 %v3746, %v3941
      %v4017 = vadd.f32 %v3747, %v3944
      %v4018 = vadd.f32 %v3748, %v3947
      %v4019 = vadd.f32 %v3749, %v3950
      %v4020 = vadd.f32 %v3750, %v3953
      %v4021 = vadd.f32 %v3751, %v3956
      %v4022 = vadd.f32 %v3752, %v3959
      %v4023 = vadd.f32 %v3753, %v3962
      %v4024 = vadd.f32 %v3754, %v3965
      %v4025 = vadd.f32 %v3755, %v3968
      %v4026 = vadd.f32 %v3756, %v3971
      %v4027 = vadd.f32 %v3757, %v3974
      %v4028 = vadd.f32 %v3758, %v3977
      %v4029 = vadd.f32 %v3759, %v3980
      %v4030 = vadd.f32 %v3760, %v3983
      %v4031 = vadd.f32 %v3761, %v3986
      %v4032 = vadd.f32 %v3762, %v3989
      %v4033 = vadd.f32 %v3763, %v3992
      %v4034 = vadd.f32 %v3764, %v3995
      %v4035 = vadd.f32 %v3765, %v3998
      %v4036 = vadd.f32 %v3766, %v4001
      %v4037 = vadd.f32 %v3767, %v4004
      %v4038 = vld [vmem:[%s2924 + $0x1] sm:$0xff]
      %v4039 = vld [vmem:[%s2924 + $0x9] sm:$0xff]
      %v4040 = vld [vmem:[%s2924 + $0x19] sm:$0xff]
      %v4041 = vld [vmem:[%s2924 + $0x21] sm:$0xff]
      %v4042 = vld [vmem:[%s2924 + $0x31] sm:$0xff]
      %v4043 = vld [vmem:[%s2924 + $0x39] sm:$0xff]
      %v4044 = vld [vmem:[%s2924 + $0x49] sm:$0xff]
      %v4045 = vld [vmem:[%s2924 + $0x51] sm:$0xff]
      %v4046 = vld [vmem:[%s2924 + $0x61] sm:$0xff]
      %v4047 = vld [vmem:[%s2924 + $0x69] sm:$0xff]
      %v4048 = vld [vmem:[%s2924 + $0x79] sm:$0xff]
      %v4049 = vld [vmem:[%s2924 + $0x81] sm:$0xff]
      %v4050 = vld [vmem:[%s2924 + $0x91] sm:$0xff]
      %v4051 = vld [vmem:[%s2924 + $0x99] sm:$0xff]
      %v4052 = vld [vmem:[%s2924 + $0xa9] sm:$0xff]
      %v4053 = vld [vmem:[%s2924 + $0xb1] sm:$0xff]
      %v4054 = vld [vmem:[%s2924 + $0xc1] sm:$0xff]
      %v4055 = vld [vmem:[%s2924 + $0xc9] sm:$0xff]
      %v4056 = vld [vmem:[%s2924 + $0xd9] sm:$0xff]
      %v4057 = vld [vmem:[%s2924 + $0xe1] sm:$0xff]
      %v4058 = vld [vmem:[%s2924 + $0xf1] sm:$0xff]
      %v4059 = vld [vmem:[%s2924 + $0xf9] sm:$0xff]
      %v4060 = vld [vmem:[%s2924 + $0x109] sm:$0xff]
      %v4061 = vld [vmem:[%s2924 + $0x111] sm:$0xff]
      %v4062 = vld [vmem:[%s2924 + $0x121] sm:$0xff]
      %v4063 = vld [vmem:[%s2924 + $0x129] sm:$0xff]
      %v4064 = vld [vmem:[%s2924 + $0x139] sm:$0xff]
      %v4065 = vld [vmem:[%s2924 + $0x141] sm:$0xff]
      %v4066 = vld [vmem:[%s2924 + $0x151] sm:$0xff]
      %v4067 = vld [vmem:[%s2924 + $0x159] sm:$0xff]
      %v4068 = vld [vmem:[%s2924 + $0x169] sm:$0xff]
      %v4069 = vld [vmem:[%s2924 + $0x171] sm:$0xff]
      %s4070 = scalar_lea.vmem %s4, 16
      %v4071 = vld [vmem:[%s4070] sm:$0xf]
      %v4073 = vsel %vm2868, %v4038, 0
      %v4076 = vsel %vm2868, %v4039, 0
      %v4079 = vsel %vm2868, %v4040, 0
      %v4082 = vsel %vm2868, %v4041, 0
      %v4085 = vsel %vm2868, %v4042, 0
      %v4088 = vsel %vm2868, %v4043, 0
      %v4091 = vsel %vm2868, %v4044, 0
      %v4094 = vsel %vm2868, %v4045, 0
      %v4097 = vsel %vm2868, %v4046, 0
      %v4100 = vsel %vm2868, %v4047, 0
      %v4103 = vsel %vm2868, %v4048, 0
      %v4106 = vsel %vm2868, %v4049, 0
      %v4109 = vsel %vm2868, %v4050, 0
      %v4112 = vsel %vm2868, %v4051, 0
      %v4115 = vsel %vm2868, %v4052, 0
      %v4118 = vsel %vm2868, %v4053, 0
      %v4121 = vsel %vm2868, %v4054, 0
      %v4124 = vsel %vm2868, %v4055, 0
      %v4127 = vsel %vm2868, %v4056, 0
      %v4130 = vsel %vm2868, %v4057, 0
      %v4133 = vsel %vm2868, %v4058, 0
      %v4136 = vsel %vm2868, %v4059, 0
      %v4139 = vsel %vm2868, %v4060, 0
      %v4142 = vsel %vm2868, %v4061, 0
      %v4145 = vsel %vm2868, %v4062, 0
      %v4148 = vsel %vm2868, %v4063, 0
      %v4151 = vsel %vm2868, %v4064, 0
      %v4154 = vsel %vm2868, %v4065, 0
      %v4157 = vsel %vm2868, %v4066, 0
      %v4160 = vsel %vm2868, %v4067, 0
      %v4163 = vsel %vm2868, %v4068, 0
      %v4166 = vsel %vm2868, %v4069, 0
      %v4169 = vsel %vm3185, %v4071, 0
      %4171 = vmatpush.bf16.msra.mxu0 0
      %4172 = vmatpush.bf16.msra.mxu0 0
      %4173 = vmatpush.bf16.msra.mxu0 0
      %4174 = vmatpush.bf16.msra.mxu0 0
      %4175 = vmatpush.bf16.msra.mxu0 0
      %4176 = vmatpush.bf16.msra.mxu0 0
      %4177 = vmatpush.bf16.msra.mxu0 0
      %4178 = vmatpush.bf16.msra.mxu0 %v4169
      %4179 = vmatmul.f32.gmra.mxu0 %v4073
      %v4180 = vpop.f32.mrf.mxu0
      %v4181 = vadd.f32 0.0, %v4180
      %4182 = vmatmul.f32.gmra.mxu0 %v4076
      %v4183 = vpop.f32.mrf.mxu0
      %v4184 = vadd.f32 0.0, %v4183
      %4185 = vmatmul.f32.gmra.mxu0 %v4079
      %v4186 = vpop.f32.mrf.mxu0
      %v4187 = vadd.f32 0.0, %v4186
      %4188 = vmatmul.f32.gmra.mxu0 %v4082
      %v4189 = vpop.f32.mrf.mxu0
      %v4190 = vadd.f32 0.0, %v4189
      %4191 = vmatmul.f32.gmra.mxu0 %v4085
      %v4192 = vpop.f32.mrf.mxu0
      %v4193 = vadd.f32 0.0, %v4192
      %4194 = vmatmul.f32.gmra.mxu0 %v4088
      %v4195 = vpop.f32.mrf.mxu0
      %v4196 = vadd.f32 0.0, %v4195
      %4197 = vmatmul.f32.gmra.mxu0 %v4091
      %v4198 = vpop.f32.mrf.mxu0
      %v4199 = vadd.f32 0.0, %v4198
      %4200 = vmatmul.f32.gmra.mxu0 %v4094
      %v4201 = vpop.f32.mrf.mxu0
      %v4202 = vadd.f32 0.0, %v4201
      %4203 = vmatmul.f32.gmra.mxu0 %v4097
      %v4204 = vpop.f32.mrf.mxu0
      %v4205 = vadd.f32 0.0, %v4204
      %4206 = vmatmul.f32.gmra.mxu0 %v4100
      %v4207 = vpop.f32.mrf.mxu0
      %v4208 = vadd.f32 0.0, %v4207
      %4209 = vmatmul.f32.gmra.mxu0 %v4103
      %v4210 = vpop.f32.mrf.mxu0
      %v4211 = vadd.f32 0.0, %v4210
      %4212 = vmatmul.f32.gmra.mxu0 %v4106
      %v4213 = vpop.f32.mrf.mxu0
      %v4214 = vadd.f32 0.0, %v4213
      %4215 = vmatmul.f32.gmra.mxu0 %v4109
      %v4216 = vpop.f32.mrf.mxu0
      %v4217 = vadd.f32 0.0, %v4216
      %4218 = vmatmul.f32.gmra.mxu0 %v4112
      %v4219 = vpop.f32.mrf.mxu0
      %v4220 = vadd.f32 0.0, %v4219
      %4221 = vmatmul.f32.gmra.mxu0 %v4115
      %v4222 = vpop.f32.mrf.mxu0
      %v4223 = vadd.f32 0.0, %v4222
      %4224 = vmatmul.f32.gmra.mxu0 %v4118
      %v4225 = vpop.f32.mrf.mxu0
      %v4226 = vadd.f32 0.0, %v4225
      %4227 = vmatmul.f32.gmra.mxu0 %v4121
      %v4228 = vpop.f32.mrf.mxu0
      %v4229 = vadd.f32 0.0, %v4228
      %4230 = vmatmul.f32.gmra.mxu0 %v4124
      %v4231 = vpop.f32.mrf.mxu0
      %v4232 = vadd.f32 0.0, %v4231
      %4233 = vmatmul.f32.gmra.mxu0 %v4127
      %v4234 = vpop.f32.mrf.mxu0
      %v4235 = vadd.f32 0.0, %v4234
      %4236 = vmatmul.f32.gmra.mxu0 %v4130
      %v4237 = vpop.f32.mrf.mxu0
      %v4238 = vadd.f32 0.0, %v4237
      %4239 = vmatmul.f32.gmra.mxu0 %v4133
      %v4240 = vpop.f32.mrf.mxu0
      %v4241 = vadd.f32 0.0, %v4240
      %4242 = vmatmul.f32.gmra.mxu0 %v4136
      %v4243 = vpop.f32.mrf.mxu0
      %v4244 = vadd.f32 0.0, %v4243
      %4245 = vmatmul.f32.gmra.mxu0 %v4139
      %v4246 = vpop.f32.mrf.mxu0
      %v4247 = vadd.f32 0.0, %v4246
      %4248 = vmatmul.f32.gmra.mxu0 %v4142
      %v4249 = vpop.f32.mrf.mxu0
      %v4250 = vadd.f32 0.0, %v4249
      %4251 = vmatmul.f32.gmra.mxu0 %v4145
      %v4252 = vpop.f32.mrf.mxu0
      %v4253 = vadd.f32 0.0, %v4252
      %4254 = vmatmul.f32.gmra.mxu0 %v4148
      %v4255 = vpop.f32.mrf.mxu0
      %v4256 = vadd.f32 0.0, %v4255
      %4257 = vmatmul.f32.gmra.mxu0 %v4151
      %v4258 = vpop.f32.mrf.mxu0
      %v4259 = vadd.f32 0.0, %v4258
      %4260 = vmatmul.f32.gmra.mxu0 %v4154
      %v4261 = vpop.f32.mrf.mxu0
      %v4262 = vadd.f32 0.0, %v4261
      %4263 = vmatmul.f32.gmra.mxu0 %v4157
      %v4264 = vpop.f32.mrf.mxu0
      %v4265 = vadd.f32 0.0, %v4264
      %4266 = vmatmul.f32.gmra.mxu0 %v4160
      %v4267 = vpop.f32.mrf.mxu0
      %v4268 = vadd.f32 0.0, %v4267
      %4269 = vmatmul.f32.gmra.mxu0 %v4163
      %v4270 = vpop.f32.mrf.mxu0
      %v4271 = vadd.f32 0.0, %v4270
      %4272 = vmatmul.f32.gmra.mxu0 %v4166
      %v4273 = vpop.f32.mrf.mxu0
      %v4274 = vadd.f32 0.0, %v4273
      %4275 = vdwg.mxu0
      %v4276 = vadd.f32 %v4006, %v4181
      %v4277 = vadd.f32 %v4007, %v4184
      %v4278 = vadd.f32 %v4008, %v4187
      %v4279 = vadd.f32 %v4009, %v4190
      %v4280 = vadd.f32 %v4010, %v4193
      %v4281 = vadd.f32 %v4011, %v4196
      %v4282 = vadd.f32 %v4012, %v4199
      %v4283 = vadd.f32 %v4013, %v4202
      %v4284 = vadd.f32 %v4014, %v4205
      %v4285 = vadd.f32 %v4015, %v4208
      %v4286 = vadd.f32 %v4016, %v4211
      %v4287 = vadd.f32 %v4017, %v4214
      %v4288 = vadd.f32 %v4018, %v4217
      %v4289 = vadd.f32 %v4019, %v4220
      %v4290 = vadd.f32 %v4020, %v4223
      %v4291 = vadd.f32 %v4021, %v4226
      %v4292 = vadd.f32 %v4022, %v4229
      %v4293 = vadd.f32 %v4023, %v4232
      %v4294 = vadd.f32 %v4024, %v4235
      %v4295 = vadd.f32 %v4025, %v4238
      %v4296 = vadd.f32 %v4026, %v4241
      %v4297 = vadd.f32 %v4027, %v4244
      %v4298 = vadd.f32 %v4028, %v4247
      %v4299 = vadd.f32 %v4029, %v4250
      %v4300 = vadd.f32 %v4030, %v4253
      %v4301 = vadd.f32 %v4031, %v4256
      %v4302 = vadd.f32 %v4032, %v4259
      %v4303 = vadd.f32 %v4033, %v4262
      %v4304 = vadd.f32 %v4034, %v4265
      %v4305 = vadd.f32 %v4035, %v4268
      %v4306 = vadd.f32 %v4036, %v4271
      %v4307 = vadd.f32 %v4037, %v4274
      %v4308 = vld [vmem:[%s2924 + $0x2] sm:$0xff]
      %v4309 = vld [vmem:[%s2924 + $0xa] sm:$0xff]
      %v4310 = vld [vmem:[%s2924 + $0x1a] sm:$0xff]
      %v4311 = vld [vmem:[%s2924 + $0x22] sm:$0xff]
      %v4312 = vld [vmem:[%s2924 + $0x32] sm:$0xff]
      %v4313 = vld [vmem:[%s2924 + $0x3a] sm:$0xff]
      %v4314 = vld [vmem:[%s2924 + $0x4a] sm:$0xff]
      %v4315 = vld [vmem:[%s2924 + $0x52] sm:$0xff]
      %v4316 = vld [vmem:[%s2924 + $0x62] sm:$0xff]
      %v4317 = vld [vmem:[%s2924 + $0x6a] sm:$0xff]
      %v4318 = vld [vmem:[%s2924 + $0x7a] sm:$0xff]
      %v4319 = vld [vmem:[%s2924 + $0x82] sm:$0xff]
      %v4320 = vld [vmem:[%s2924 + $0x92] sm:$0xff]
      %v4321 = vld [vmem:[%s2924 + $0x9a] sm:$0xff]
      %v4322 = vld [vmem:[%s2924 + $0xaa] sm:$0xff]
      %v4323 = vld [vmem:[%s2924 + $0xb2] sm:$0xff]
      %v4324 = vld [vmem:[%s2924 + $0xc2] sm:$0xff]
      %v4325 = vld [vmem:[%s2924 + $0xca] sm:$0xff]
      %v4326 = vld [vmem:[%s2924 + $0xda] sm:$0xff]
      %v4327 = vld [vmem:[%s2924 + $0xe2] sm:$0xff]
      %v4328 = vld [vmem:[%s2924 + $0xf2] sm:$0xff]
      %v4329 = vld [vmem:[%s2924 + $0xfa] sm:$0xff]
      %v4330 = vld [vmem:[%s2924 + $0x10a] sm:$0xff]
      %v4331 = vld [vmem:[%s2924 + $0x112] sm:$0xff]
      %v4332 = vld [vmem:[%s2924 + $0x122] sm:$0xff]
      %v4333 = vld [vmem:[%s2924 + $0x12a] sm:$0xff]
      %v4334 = vld [vmem:[%s2924 + $0x13a] sm:$0xff]
      %v4335 = vld [vmem:[%s2924 + $0x142] sm:$0xff]
      %v4336 = vld [vmem:[%s2924 + $0x152] sm:$0xff]
      %v4337 = vld [vmem:[%s2924 + $0x15a] sm:$0xff]
      %v4338 = vld [vmem:[%s2924 + $0x16a] sm:$0xff]
      %v4339 = vld [vmem:[%s2924 + $0x172] sm:$0xff]
      %s4340 = scalar_lea.vmem %s4, 20
      %v4341 = vld [vmem:[%s4340] sm:$0xf]
      %v4343 = vsel %vm2868, %v4308, 0
      %v4346 = vsel %vm2868, %v4309, 0
      %v4349 = vsel %vm2868, %v4310, 0
      %v4352 = vsel %vm2868, %v4311, 0
      %v4355 = vsel %vm2868, %v4312, 0
      %v4358 = vsel %vm2868, %v4313, 0
      %v4361 = vsel %vm2868, %v4314, 0
      %v4364 = vsel %vm2868, %v4315, 0
      %v4367 = vsel %vm2868, %v4316, 0
      %v4370 = vsel %vm2868, %v4317, 0
      %v4373 = vsel %vm2868, %v4318, 0
      %v4376 = vsel %vm2868, %v4319, 0
      %v4379 = vsel %vm2868, %v4320, 0
      %v4382 = vsel %vm2868, %v4321, 0
      %v4385 = vsel %vm2868, %v4322, 0
      %v4388 = vsel %vm2868, %v4323, 0
      %v4391 = vsel %vm2868, %v4324, 0
      %v4394 = vsel %vm2868, %v4325, 0
      %v4397 = vsel %vm2868, %v4326, 0
      %v4400 = vsel %vm2868, %v4327, 0
      %v4403 = vsel %vm2868, %v4328, 0
      %v4406 = vsel %vm2868, %v4329, 0
      %v4409 = vsel %vm2868, %v4330, 0
      %v4412 = vsel %vm2868, %v4331, 0
      %v4415 = vsel %vm2868, %v4332, 0
      %v4418 = vsel %vm2868, %v4333, 0
      %v4421 = vsel %vm2868, %v4334, 0
      %v4424 = vsel %vm2868, %v4335, 0
      %v4427 = vsel %vm2868, %v4336, 0
      %v4430 = vsel %vm2868, %v4337, 0
      %v4433 = vsel %vm2868, %v4338, 0
      %v4436 = vsel %vm2868, %v4339, 0
      %v4439 = vsel %vm3185, %v4341, 0
      %4441 = vmatpush.bf16.msra.mxu0 0
      %4442 = vmatpush.bf16.msra.mxu0 0
      %4443 = vmatpush.bf16.msra.mxu0 0
      %4444 = vmatpush.bf16.msra.mxu0 0
      %4445 = vmatpush.bf16.msra.mxu0 0
      %4446 = vmatpush.bf16.msra.mxu0 0
      %4447 = vmatpush.bf16.msra.mxu0 0
      %4448 = vmatpush.bf16.msra.mxu0 %v4439
      %4449 = vmatmul.f32.gmra.mxu0 %v4343
      %v4450 = vpop.f32.mrf.mxu0
      %v4451 = vadd.f32 0.0, %v4450
      %4452 = vmatmul.f32.gmra.mxu0 %v4346
      %v4453 = vpop.f32.mrf.mxu0
      %v4454 = vadd.f32 0.0, %v4453
      %4455 = vmatmul.f32.gmra.mxu0 %v4349
      %v4456 = vpop.f32.mrf.mxu0
      %v4457 = vadd.f32 0.0, %v4456
      %4458 = vmatmul.f32.gmra.mxu0 %v4352
      %v4459 = vpop.f32.mrf.mxu0
      %v4460 = vadd.f32 0.0, %v4459
      %4461 = vmatmul.f32.gmra.mxu0 %v4355
      %v4462 = vpop.f32.mrf.mxu0
      %v4463 = vadd.f32 0.0, %v4462
      %4464 = vmatmul.f32.gmra.mxu0 %v4358
      %v4465 = vpop.f32.mrf.mxu0
      %v4466 = vadd.f32 0.0, %v4465
      %4467 = vmatmul.f32.gmra.mxu0 %v4361
      %v4468 = vpop.f32.mrf.mxu0
      %v4469 = vadd.f32 0.0, %v4468
      %4470 = vmatmul.f32.gmra.mxu0 %v4364
      %v4471 = vpop.f32.mrf.mxu0
      %v4472 = vadd.f32 0.0, %v4471
      %4473 = vmatmul.f32.gmra.mxu0 %v4367
      %v4474 = vpop.f32.mrf.mxu0
      %v4475 = vadd.f32 0.0, %v4474
      %4476 = vmatmul.f32.gmra.mxu0 %v4370
      %v4477 = vpop.f32.mrf.mxu0
      %v4478 = vadd.f32 0.0, %v4477
      %4479 = vmatmul.f32.gmra.mxu0 %v4373
      %v4480 = vpop.f32.mrf.mxu0
      %v4481 = vadd.f32 0.0, %v4480
      %4482 = vmatmul.f32.gmra.mxu0 %v4376
      %v4483 = vpop.f32.mrf.mxu0
      %v4484 = vadd.f32 0.0, %v4483
      %4485 = vmatmul.f32.gmra.mxu0 %v4379
      %v4486 = vpop.f32.mrf.mxu0
      %v4487 = vadd.f32 0.0, %v4486
      %4488 = vmatmul.f32.gmra.mxu0 %v4382
      %v4489 = vpop.f32.mrf.mxu0
      %v4490 = vadd.f32 0.0, %v4489
      %4491 = vmatmul.f32.gmra.mxu0 %v4385
      %v4492 = vpop.f32.mrf.mxu0
      %v4493 = vadd.f32 0.0, %v4492
      %4494 = vmatmul.f32.gmra.mxu0 %v4388
      %v4495 = vpop.f32.mrf.mxu0
      %v4496 = vadd.f32 0.0, %v4495
      %4497 = vmatmul.f32.gmra.mxu0 %v4391
      %v4498 = vpop.f32.mrf.mxu0
      %v4499 = vadd.f32 0.0, %v4498
      %4500 = vmatmul.f32.gmra.mxu0 %v4394
      %v4501 = vpop.f32.mrf.mxu0
      %v4502 = vadd.f32 0.0, %v4501
      %4503 = vmatmul.f32.gmra.mxu0 %v4397
      %v4504 = vpop.f32.mrf.mxu0
      %v4505 = vadd.f32 0.0, %v4504
      %4506 = vmatmul.f32.gmra.mxu0 %v4400
      %v4507 = vpop.f32.mrf.mxu0
      %v4508 = vadd.f32 0.0, %v4507
      %4509 = vmatmul.f32.gmra.mxu0 %v4403
      %v4510 = vpop.f32.mrf.mxu0
      %v4511 = vadd.f32 0.0, %v4510
      %4512 = vmatmul.f32.gmra.mxu0 %v4406
      %v4513 = vpop.f32.mrf.mxu0
      %v4514 = vadd.f32 0.0, %v4513
      %4515 = vmatmul.f32.gmra.mxu0 %v4409
      %v4516 = vpop.f32.mrf.mxu0
      %v4517 = vadd.f32 0.0, %v4516
      %4518 = vmatmul.f32.gmra.mxu0 %v4412
      %v4519 = vpop.f32.mrf.mxu0
      %v4520 = vadd.f32 0.0, %v4519
      %4521 = vmatmul.f32.gmra.mxu0 %v4415
      %v4522 = vpop.f32.mrf.mxu0
      %v4523 = vadd.f32 0.0, %v4522
      %4524 = vmatmul.f32.gmra.mxu0 %v4418
      %v4525 = vpop.f32.mrf.mxu0
      %v4526 = vadd.f32 0.0, %v4525
      %4527 = vmatmul.f32.gmra.mxu0 %v4421
      %v4528 = vpop.f32.mrf.mxu0
      %v4529 = vadd.f32 0.0, %v4528
      %4530 = vmatmul.f32.gmra.mxu0 %v4424
      %v4531 = vpop.f32.mrf.mxu0
      %v4532 = vadd.f32 0.0, %v4531
      %4533 = vmatmul.f32.gmra.mxu0 %v4427
      %v4534 = vpop.f32.mrf.mxu0
      %v4535 = vadd.f32 0.0, %v4534
      %4536 = vmatmul.f32.gmra.mxu0 %v4430
      %v4537 = vpop.f32.mrf.mxu0
      %v4538 = vadd.f32 0.0, %v4537
      %4539 = vmatmul.f32.gmra.mxu0 %v4433
      %v4540 = vpop.f32.mrf.mxu0
      %v4541 = vadd.f32 0.0, %v4540
      %4542 = vmatmul.f32.gmra.mxu0 %v4436
      %v4543 = vpop.f32.mrf.mxu0
      %v4544 = vadd.f32 0.0, %v4543
      %4545 = vdwg.mxu0
      %v4546 = vadd.f32 %v4276, %v4451
      %v4547 = vadd.f32 %v4277, %v4454
      %v4548 = vadd.f32 %v4278, %v4457
      %v4549 = vadd.f32 %v4279, %v4460
      %v4550 = vadd.f32 %v4280, %v4463
      %v4551 = vadd.f32 %v4281, %v4466
      %v4552 = vadd.f32 %v4282, %v4469
      %v4553 = vadd.f32 %v4283, %v4472
      %v4554 = vadd.f32 %v4284, %v4475
      %v4555 = vadd.f32 %v4285, %v4478
      %v4556 = vadd.f32 %v4286, %v4481
      %v4557 = vadd.f32 %v4287, %v4484
      %v4558 = vadd.f32 %v4288, %v4487
      %v4559 = vadd.f32 %v4289, %v4490
      %v4560 = vadd.f32 %v4290, %v4493
      %v4561 = vadd.f32 %v4291, %v4496
      %v4562 = vadd.f32 %v4292, %v4499
      %v4563 = vadd.f32 %v4293, %v4502
      %v4564 = vadd.f32 %v4294, %v4505
      %v4565 = vadd.f32 %v4295, %v4508
      %v4566 = vadd.f32 %v4296, %v4511
      %v4567 = vadd.f32 %v4297, %v4514
      %v4568 = vadd.f32 %v4298, %v4517
      %v4569 = vadd.f32 %v4299, %v4520
      %v4570 = vadd.f32 %v4300, %v4523
      %v4571 = vadd.f32 %v4301, %v4526
      %v4572 = vadd.f32 %v4302, %v4529
      %v4573 = vadd.f32 %v4303, %v4532
      %v4574 = vadd.f32 %v4304, %v4535
      %v4575 = vadd.f32 %v4305, %v4538
      %v4576 = vadd.f32 %v4306, %v4541
      %v4577 = vadd.f32 %v4307, %v4544
      %s4578 = scalar_lea.vmem [#allocation2], 48
      %v4579 = vld [vmem:[%s4578] sm:$0xff]
      %v4580 = vld [vmem:[%s4578 + $0x8] sm:$0xff]
      %v4581 = vld [vmem:[%s4578 + $0x18] sm:$0xff]
      %v4582 = vld [vmem:[%s4578 + $0x20] sm:$0xff]
      %v4583 = vld [vmem:[%s4578 + $0x30] sm:$0xff]
      %v4584 = vld [vmem:[%s4578 + $0x38] sm:$0xff]
      %v4585 = vld [vmem:[%s4578 + $0x48] sm:$0xff]
      %v4586 = vld [vmem:[%s4578 + $0x50] sm:$0xff]
      %v4587 = vld [vmem:[%s4578 + $0x60] sm:$0xff]
      %v4588 = vld [vmem:[%s4578 + $0x68] sm:$0xff]
      %v4589 = vld [vmem:[%s4578 + $0x78] sm:$0xff]
      %v4590 = vld [vmem:[%s4578 + $0x80] sm:$0xff]
      %v4591 = vld [vmem:[%s4578 + $0x90] sm:$0xff]
      %v4592 = vld [vmem:[%s4578 + $0x98] sm:$0xff]
      %v4593 = vld [vmem:[%s4578 + $0xa8] sm:$0xff]
      %v4594 = vld [vmem:[%s4578 + $0xb0] sm:$0xff]
      %v4595 = vld [vmem:[%s4578 + $0xc0] sm:$0xff]
      %v4596 = vld [vmem:[%s4578 + $0xc8] sm:$0xff]
      %v4597 = vld [vmem:[%s4578 + $0xd8] sm:$0xff]
      %v4598 = vld [vmem:[%s4578 + $0xe0] sm:$0xff]
      %v4599 = vld [vmem:[%s4578 + $0xf0] sm:$0xff]
      %v4600 = vld [vmem:[%s4578 + $0xf8] sm:$0xff]
      %v4601 = vld [vmem:[%s4578 + $0x108] sm:$0xff]
      %v4602 = vld [vmem:[%s4578 + $0x110] sm:$0xff]
      %v4603 = vld [vmem:[%s4578 + $0x120] sm:$0xff]
      %v4604 = vld [vmem:[%s4578 + $0x128] sm:$0xff]
      %v4605 = vld [vmem:[%s4578 + $0x138] sm:$0xff]
      %v4606 = vld [vmem:[%s4578 + $0x140] sm:$0xff]
      %v4607 = vld [vmem:[%s4578 + $0x150] sm:$0xff]
      %v4608 = vld [vmem:[%s4578 + $0x158] sm:$0xff]
      %v4609 = vld [vmem:[%s4578 + $0x168] sm:$0xff]
      %v4610 = vld [vmem:[%s4578 + $0x170] sm:$0xff]
      %s4611 = scalar_lea.vmem %s4, 24
      %v4612 = vld [vmem:[%s4611] sm:$0xf]
      %v4614 = vsel %vm2868, %v4579, 0
      %v4617 = vsel %vm2868, %v4580, 0
      %v4620 = vsel %vm2868, %v4581, 0
      %v4623 = vsel %vm2868, %v4582, 0
      %v4626 = vsel %vm2868, %v4583, 0
      %v4629 = vsel %vm2868, %v4584, 0
      %v4632 = vsel %vm2868, %v4585, 0
      %v4635 = vsel %vm2868, %v4586, 0
      %v4638 = vsel %vm2868, %v4587, 0
      %v4641 = vsel %vm2868, %v4588, 0
      %v4644 = vsel %vm2868, %v4589, 0
      %v4647 = vsel %vm2868, %v4590, 0
      %v4650 = vsel %vm2868, %v4591, 0
      %v4653 = vsel %vm2868, %v4592, 0
      %v4656 = vsel %vm2868, %v4593, 0
      %v4659 = vsel %vm2868, %v4594, 0
      %v4662 = vsel %vm2868, %v4595, 0
      %v4665 = vsel %vm2868, %v4596, 0
      %v4668 = vsel %vm2868, %v4597, 0
      %v4671 = vsel %vm2868, %v4598, 0
      %v4674 = vsel %vm2868, %v4599, 0
      %v4677 = vsel %vm2868, %v4600, 0
      %v4680 = vsel %vm2868, %v4601, 0
      %v4683 = vsel %vm2868, %v4602, 0
      %v4686 = vsel %vm2868, %v4603, 0
      %v4689 = vsel %vm2868, %v4604, 0
      %v4692 = vsel %vm2868, %v4605, 0
      %v4695 = vsel %vm2868, %v4606, 0
      %v4698 = vsel %vm2868, %v4607, 0
      %v4701 = vsel %vm2868, %v4608, 0
      %v4704 = vsel %vm2868, %v4609, 0
      %v4707 = vsel %vm2868, %v4610, 0
      %v4710 = vsel %vm3185, %v4612, 0
      %4712 = vmatpush.bf16.msra.mxu0 0
      %4713 = vmatpush.bf16.msra.mxu0 0
      %4714 = vmatpush.bf16.msra.mxu0 0
      %4715 = vmatpush.bf16.msra.mxu0 0
      %4716 = vmatpush.bf16.msra.mxu0 0
      %4717 = vmatpush.bf16.msra.mxu0 0
      %4718 = vmatpush.bf16.msra.mxu0 0
      %4719 = vmatpush.bf16.msra.mxu0 %v4710
      %4720 = vmatmul.f32.gmra.mxu0 %v4614
      %v4721 = vpop.f32.mrf.mxu0
      %v4722 = vadd.f32 0.0, %v4721
      %4723 = vmatmul.f32.gmra.mxu0 %v4617
      %v4724 = vpop.f32.mrf.mxu0
      %v4725 = vadd.f32 0.0, %v4724
      %4726 = vmatmul.f32.gmra.mxu0 %v4620
      %v4727 = vpop.f32.mrf.mxu0
      %v4728 = vadd.f32 0.0, %v4727
      %4729 = vmatmul.f32.gmra.mxu0 %v4623
      %v4730 = vpop.f32.mrf.mxu0
      %v4731 = vadd.f32 0.0, %v4730
      %4732 = vmatmul.f32.gmra.mxu0 %v4626
      %v4733 = vpop.f32.mrf.mxu0
      %v4734 = vadd.f32 0.0, %v4733
      %4735 = vmatmul.f32.gmra.mxu0 %v4629
      %v4736 = vpop.f32.mrf.mxu0
      %v4737 = vadd.f32 0.0, %v4736
      %4738 = vmatmul.f32.gmra.mxu0 %v4632
      %v4739 = vpop.f32.mrf.mxu0
      %v4740 = vadd.f32 0.0, %v4739
      %4741 = vmatmul.f32.gmra.mxu0 %v4635
      %v4742 = vpop.f32.mrf.mxu0
      %v4743 = vadd.f32 0.0, %v4742
      %4744 = vmatmul.f32.gmra.mxu0 %v4638
      %v4745 = vpop.f32.mrf.mxu0
      %v4746 = vadd.f32 0.0, %v4745
      %4747 = vmatmul.f32.gmra.mxu0 %v4641
      %v4748 = vpop.f32.mrf.mxu0
      %v4749 = vadd.f32 0.0, %v4748
      %4750 = vmatmul.f32.gmra.mxu0 %v4644
      %v4751 = vpop.f32.mrf.mxu0
      %v4752 = vadd.f32 0.0, %v4751
      %4753 = vmatmul.f32.gmra.mxu0 %v4647
      %v4754 = vpop.f32.mrf.mxu0
      %v4755 = vadd.f32 0.0, %v4754
      %4756 = vmatmul.f32.gmra.mxu0 %v4650
      %v4757 = vpop.f32.mrf.mxu0
      %v4758 = vadd.f32 0.0, %v4757
      %4759 = vmatmul.f32.gmra.mxu0 %v4653
      %v4760 = vpop.f32.mrf.mxu0
      %v4761 = vadd.f32 0.0, %v4760
      %4762 = vmatmul.f32.gmra.mxu0 %v4656
      %v4763 = vpop.f32.mrf.mxu0
      %v4764 = vadd.f32 0.0, %v4763
      %4765 = vmatmul.f32.gmra.mxu0 %v4659
      %v4766 = vpop.f32.mrf.mxu0
      %v4767 = vadd.f32 0.0, %v4766
      %4768 = vmatmul.f32.gmra.mxu0 %v4662
      %v4769 = vpop.f32.mrf.mxu0
      %v4770 = vadd.f32 0.0, %v4769
      %4771 = vmatmul.f32.gmra.mxu0 %v4665
      %v4772 = vpop.f32.mrf.mxu0
      %v4773 = vadd.f32 0.0, %v4772
      %4774 = vmatmul.f32.gmra.mxu0 %v4668
      %v4775 = vpop.f32.mrf.mxu0
      %v4776 = vadd.f32 0.0, %v4775
      %4777 = vmatmul.f32.gmra.mxu0 %v4671
      %v4778 = vpop.f32.mrf.mxu0
      %v4779 = vadd.f32 0.0, %v4778
      %4780 = vmatmul.f32.gmra.mxu0 %v4674
      %v4781 = vpop.f32.mrf.mxu0
      %v4782 = vadd.f32 0.0, %v4781
      %4783 = vmatmul.f32.gmra.mxu0 %v4677
      %v4784 = vpop.f32.mrf.mxu0
      %v4785 = vadd.f32 0.0, %v4784
      %4786 = vmatmul.f32.gmra.mxu0 %v4680
      %v4787 = vpop.f32.mrf.mxu0
      %v4788 = vadd.f32 0.0, %v4787
      %4789 = vmatmul.f32.gmra.mxu0 %v4683
      %v4790 = vpop.f32.mrf.mxu0
      %v4791 = vadd.f32 0.0, %v4790
      %4792 = vmatmul.f32.gmra.mxu0 %v4686
      %v4793 = vpop.f32.mrf.mxu0
      %v4794 = vadd.f32 0.0, %v4793
      %4795 = vmatmul.f32.gmra.mxu0 %v4689
      %v4796 = vpop.f32.mrf.mxu0
      %v4797 = vadd.f32 0.0, %v4796
      %4798 = vmatmul.f32.gmra.mxu0 %v4692
      %v4799 = vpop.f32.mrf.mxu0
      %v4800 = vadd.f32 0.0, %v4799
      %4801 = vmatmul.f32.gmra.mxu0 %v4695
      %v4802 = vpop.f32.mrf.mxu0
      %v4803 = vadd.f32 0.0, %v4802
      %4804 = vmatmul.f32.gmra.mxu0 %v4698
      %v4805 = vpop.f32.mrf.mxu0
      %v4806 = vadd.f32 0.0, %v4805
      %4807 = vmatmul.f32.gmra.mxu0 %v4701
      %v4808 = vpop.f32.mrf.mxu0
      %v4809 = vadd.f32 0.0, %v4808
      %4810 = vmatmul.f32.gmra.mxu0 %v4704
      %v4811 = vpop.f32.mrf.mxu0
      %v4812 = vadd.f32 0.0, %v4811
      %4813 = vmatmul.f32.gmra.mxu0 %v4707
      %v4814 = vpop.f32.mrf.mxu0
      %v4815 = vadd.f32 0.0, %v4814
      %4816 = vdwg.mxu0
      %v4817 = vadd.f32 %v4546, %v4722
      %v4818 = vadd.f32 %v4547, %v4725
      %v4819 = vadd.f32 %v4548, %v4728
      %v4820 = vadd.f32 %v4549, %v4731
      %v4821 = vadd.f32 %v4550, %v4734
      %v4822 = vadd.f32 %v4551, %v4737
      %v4823 = vadd.f32 %v4552, %v4740
      %v4824 = vadd.f32 %v4553, %v4743
      %v4825 = vadd.f32 %v4554, %v4746
      %v4826 = vadd.f32 %v4555, %v4749
      %v4827 = vadd.f32 %v4556, %v4752
      %v4828 = vadd.f32 %v4557, %v4755
      %v4829 = vadd.f32 %v4558, %v4758
      %v4830 = vadd.f32 %v4559, %v4761
      %v4831 = vadd.f32 %v4560, %v4764
      %v4832 = vadd.f32 %v4561, %v4767
      %v4833 = vadd.f32 %v4562, %v4770
      %v4834 = vadd.f32 %v4563, %v4773
      %v4835 = vadd.f32 %v4564, %v4776
      %v4836 = vadd.f32 %v4565, %v4779
      %v4837 = vadd.f32 %v4566, %v4782
      %v4838 = vadd.f32 %v4567, %v4785
      %v4839 = vadd.f32 %v4568, %v4788
      %v4840 = vadd.f32 %v4569, %v4791
      %v4841 = vadd.f32 %v4570, %v4794
      %v4842 = vadd.f32 %v4571, %v4797
      %v4843 = vadd.f32 %v4572, %v4800
      %v4844 = vadd.f32 %v4573, %v4803
      %v4845 = vadd.f32 %v4574, %v4806
      %v4846 = vadd.f32 %v4575, %v4809
      %v4847 = vadd.f32 %v4576, %v4812
      %v4848 = vadd.f32 %v4577, %v4815
      %v4849 = vld [vmem:[%s4578 + $0x1] sm:$0xff]
      %v4850 = vld [vmem:[%s4578 + $0x9] sm:$0xff]
      %v4851 = vld [vmem:[%s4578 + $0x19] sm:$0xff]
      %v4852 = vld [vmem:[%s4578 + $0x21] sm:$0xff]
      %v4853 = vld [vmem:[%s4578 + $0x31] sm:$0xff]
      %v4854 = vld [vmem:[%s4578 + $0x39] sm:$0xff]
      %v4855 = vld [vmem:[%s4578 + $0x49] sm:$0xff]
      %v4856 = vld [vmem:[%s4578 + $0x51] sm:$0xff]
      %v4857 = vld [vmem:[%s4578 + $0x61] sm:$0xff]
      %v4858 = vld [vmem:[%s4578 + $0x69] sm:$0xff]
      %v4859 = vld [vmem:[%s4578 + $0x79] sm:$0xff]
      %v4860 = vld [vmem:[%s4578 + $0x81] sm:$0xff]
      %v4861 = vld [vmem:[%s4578 + $0x91] sm:$0xff]
      %v4862 = vld [vmem:[%s4578 + $0x99] sm:$0xff]
      %v4863 = vld [vmem:[%s4578 + $0xa9] sm:$0xff]
      %v4864 = vld [vmem:[%s4578 + $0xb1] sm:$0xff]
      %v4865 = vld [vmem:[%s4578 + $0xc1] sm:$0xff]
      %v4866 = vld [vmem:[%s4578 + $0xc9] sm:$0xff]
      %v4867 = vld [vmem:[%s4578 + $0xd9] sm:$0xff]
      %v4868 = vld [vmem:[%s4578 + $0xe1] sm:$0xff]
      %v4869 = vld [vmem:[%s4578 + $0xf1] sm:$0xff]
      %v4870 = vld [vmem:[%s4578 + $0xf9] sm:$0xff]
      %v4871 = vld [vmem:[%s4578 + $0x109] sm:$0xff]
      %v4872 = vld [vmem:[%s4578 + $0x111] sm:$0xff]
      %v4873 = vld [vmem:[%s4578 + $0x121] sm:$0xff]
      %v4874 = vld [vmem:[%s4578 + $0x129] sm:$0xff]
      %v4875 = vld [vmem:[%s4578 + $0x139] sm:$0xff]
      %v4876 = vld [vmem:[%s4578 + $0x141] sm:$0xff]
      %v4877 = vld [vmem:[%s4578 + $0x151] sm:$0xff]
      %v4878 = vld [vmem:[%s4578 + $0x159] sm:$0xff]
      %v4879 = vld [vmem:[%s4578 + $0x169] sm:$0xff]
      %v4880 = vld [vmem:[%s4578 + $0x171] sm:$0xff]
      %s4881 = scalar_lea.vmem %s4, 28
      %v4882 = vld [vmem:[%s4881] sm:$0xf]
      %v4884 = vsel %vm2868, %v4849, 0
      %v4887 = vsel %vm2868, %v4850, 0
      %v4890 = vsel %vm2868, %v4851, 0
      %v4893 = vsel %vm2868, %v4852, 0
      %v4896 = vsel %vm2868, %v4853, 0
      %v4899 = vsel %vm2868, %v4854, 0
      %v4902 = vsel %vm2868, %v4855, 0
      %v4905 = vsel %vm2868, %v4856, 0
      %v4908 = vsel %vm2868, %v4857, 0
      %v4911 = vsel %vm2868, %v4858, 0
      %v4914 = vsel %vm2868, %v4859, 0
      %v4917 = vsel %vm2868, %v4860, 0
      %v4920 = vsel %vm2868, %v4861, 0
      %v4923 = vsel %vm2868, %v4862, 0
      %v4926 = vsel %vm2868, %v4863, 0
      %v4929 = vsel %vm2868, %v4864, 0
      %v4932 = vsel %vm2868, %v4865, 0
      %v4935 = vsel %vm2868, %v4866, 0
      %v4938 = vsel %vm2868, %v4867, 0
      %v4941 = vsel %vm2868, %v4868, 0
      %v4944 = vsel %vm2868, %v4869, 0
      %v4947 = vsel %vm2868, %v4870, 0
      %v4950 = vsel %vm2868, %v4871, 0
      %v4953 = vsel %vm2868, %v4872, 0
      %v4956 = vsel %vm2868, %v4873, 0
      %v4959 = vsel %vm2868, %v4874, 0
      %v4962 = vsel %vm2868, %v4875, 0
      %v4965 = vsel %vm2868, %v4876, 0
      %v4968 = vsel %vm2868, %v4877, 0
      %v4971 = vsel %vm2868, %v4878, 0
      %v4974 = vsel %vm2868, %v4879, 0
      %v4977 = vsel %vm2868, %v4880, 0
      %v4980 = vsel %vm3185, %v4882, 0
      %4982 = vmatpush.bf16.msra.mxu0 0
      %4983 = vmatpush.bf16.msra.mxu0 0
      %4984 = vmatpush.bf16.msra.mxu0 0
      %4985 = vmatpush.bf16.msra.mxu0 0
      %4986 = vmatpush.bf16.msra.mxu0 0
      %4987 = vmatpush.bf16.msra.mxu0 0
      %4988 = vmatpush.bf16.msra.mxu0 0
      %4989 = vmatpush.bf16.msra.mxu0 %v4980
      %4990 = vmatmul.f32.gmra.mxu0 %v4884
      %v4991 = vpop.f32.mrf.mxu0
      %v4992 = vadd.f32 0.0, %v4991
      %4993 = vmatmul.f32.gmra.mxu0 %v4887
      %v4994 = vpop.f32.mrf.mxu0
      %v4995 = vadd.f32 0.0, %v4994
      %4996 = vmatmul.f32.gmra.mxu0 %v4890
      %v4997 = vpop.f32.mrf.mxu0
      %v4998 = vadd.f32 0.0, %v4997
      %4999 = vmatmul.f32.gmra.mxu0 %v4893
      %v5000 = vpop.f32.mrf.mxu0
      %v5001 = vadd.f32 0.0, %v5000
      %5002 = vmatmul.f32.gmra.mxu0 %v4896
      %v5003 = vpop.f32.mrf.mxu0
      %v5004 = vadd.f32 0.0, %v5003
      %5005 = vmatmul.f32.gmra.mxu0 %v4899
      %v5006 = vpop.f32.mrf.mxu0
      %v5007 = vadd.f32 0.0, %v5006
      %5008 = vmatmul.f32.gmra.mxu0 %v4902
      %v5009 = vpop.f32.mrf.mxu0
      %v5010 = vadd.f32 0.0, %v5009
      %5011 = vmatmul.f32.gmra.mxu0 %v4905
      %v5012 = vpop.f32.mrf.mxu0
      %v5013 = vadd.f32 0.0, %v5012
      %5014 = vmatmul.f32.gmra.mxu0 %v4908
      %v5015 = vpop.f32.mrf.mxu0
      %v5016 = vadd.f32 0.0, %v5015
      %5017 = vmatmul.f32.gmra.mxu0 %v4911
      %v5018 = vpop.f32.mrf.mxu0
      %v5019 = vadd.f32 0.0, %v5018
      %5020 = vmatmul.f32.gmra.mxu0 %v4914
      %v5021 = vpop.f32.mrf.mxu0
      %v5022 = vadd.f32 0.0, %v5021
      %5023 = vmatmul.f32.gmra.mxu0 %v4917
      %v5024 = vpop.f32.mrf.mxu0
      %v5025 = vadd.f32 0.0, %v5024
      %5026 = vmatmul.f32.gmra.mxu0 %v4920
      %v5027 = vpop.f32.mrf.mxu0
      %v5028 = vadd.f32 0.0, %v5027
      %5029 = vmatmul.f32.gmra.mxu0 %v4923
      %v5030 = vpop.f32.mrf.mxu0
      %v5031 = vadd.f32 0.0, %v5030
      %5032 = vmatmul.f32.gmra.mxu0 %v4926
      %v5033 = vpop.f32.mrf.mxu0
      %v5034 = vadd.f32 0.0, %v5033
      %5035 = vmatmul.f32.gmra.mxu0 %v4929
      %v5036 = vpop.f32.mrf.mxu0
      %v5037 = vadd.f32 0.0, %v5036
      %5038 = vmatmul.f32.gmra.mxu0 %v4932
      %v5039 = vpop.f32.mrf.mxu0
      %v5040 = vadd.f32 0.0, %v5039
      %5041 = vmatmul.f32.gmra.mxu0 %v4935
      %v5042 = vpop.f32.mrf.mxu0
      %v5043 = vadd.f32 0.0, %v5042
      %5044 = vmatmul.f32.gmra.mxu0 %v4938
      %v5045 = vpop.f32.mrf.mxu0
      %v5046 = vadd.f32 0.0, %v5045
      %5047 = vmatmul.f32.gmra.mxu0 %v4941
      %v5048 = vpop.f32.mrf.mxu0
      %v5049 = vadd.f32 0.0, %v5048
      %5050 = vmatmul.f32.gmra.mxu0 %v4944
      %v5051 = vpop.f32.mrf.mxu0
      %v5052 = vadd.f32 0.0, %v5051
      %5053 = vmatmul.f32.gmra.mxu0 %v4947
      %v5054 = vpop.f32.mrf.mxu0
      %v5055 = vadd.f32 0.0, %v5054
      %5056 = vmatmul.f32.gmra.mxu0 %v4950
      %v5057 = vpop.f32.mrf.mxu0
      %v5058 = vadd.f32 0.0, %v5057
      %5059 = vmatmul.f32.gmra.mxu0 %v4953
      %v5060 = vpop.f32.mrf.mxu0
      %v5061 = vadd.f32 0.0, %v5060
      %5062 = vmatmul.f32.gmra.mxu0 %v4956
      %v5063 = vpop.f32.mrf.mxu0
      %v5064 = vadd.f32 0.0, %v5063
      %5065 = vmatmul.f32.gmra.mxu0 %v4959
      %v5066 = vpop.f32.mrf.mxu0
      %v5067 = vadd.f32 0.0, %v5066
      %5068 = vmatmul.f32.gmra.mxu0 %v4962
      %v5069 = vpop.f32.mrf.mxu0
      %v5070 = vadd.f32 0.0, %v5069
      %5071 = vmatmul.f32.gmra.mxu0 %v4965
      %v5072 = vpop.f32.mrf.mxu0
      %v5073 = vadd.f32 0.0, %v5072
      %5074 = vmatmul.f32.gmra.mxu0 %v4968
      %v5075 = vpop.f32.mrf.mxu0
      %v5076 = vadd.f32 0.0, %v5075
      %5077 = vmatmul.f32.gmra.mxu0 %v4971
      %v5078 = vpop.f32.mrf.mxu0
      %v5079 = vadd.f32 0.0, %v5078
      %5080 = vmatmul.f32.gmra.mxu0 %v4974
      %v5081 = vpop.f32.mrf.mxu0
      %v5082 = vadd.f32 0.0, %v5081
      %5083 = vmatmul.f32.gmra.mxu0 %v4977
      %v5084 = vpop.f32.mrf.mxu0
      %v5085 = vadd.f32 0.0, %v5084
      %5086 = vdwg.mxu0
      %v5087 = vadd.f32 %v4817, %v4992
      %v5088 = vadd.f32 %v4818, %v4995
      %v5089 = vadd.f32 %v4819, %v4998
      %v5090 = vadd.f32 %v4820, %v5001
      %v5091 = vadd.f32 %v4821, %v5004
      %v5092 = vadd.f32 %v4822, %v5007
      %v5093 = vadd.f32 %v4823, %v5010
      %v5094 = vadd.f32 %v4824, %v5013
      %v5095 = vadd.f32 %v4825, %v5016
      %v5096 = vadd.f32 %v4826, %v5019
      %v5097 = vadd.f32 %v4827, %v5022
      %v5098 = vadd.f32 %v4828, %v5025
      %v5099 = vadd.f32 %v4829, %v5028
      %v5100 = vadd.f32 %v4830, %v5031
      %v5101 = vadd.f32 %v4831, %v5034
      %v5102 = vadd.f32 %v4832, %v5037
      %v5103 = vadd.f32 %v4833, %v5040
      %v5104 = vadd.f32 %v4834, %v5043
      %v5105 = vadd.f32 %v4835, %v5046
      %v5106 = vadd.f32 %v4836, %v5049
      %v5107 = vadd.f32 %v4837, %v5052
      %v5108 = vadd.f32 %v4838, %v5055
      %v5109 = vadd.f32 %v4839, %v5058
      %v5110 = vadd.f32 %v4840, %v5061
      %v5111 = vadd.f32 %v4841, %v5064
      %v5112 = vadd.f32 %v4842, %v5067
      %v5113 = vadd.f32 %v4843, %v5070
      %v5114 = vadd.f32 %v4844, %v5073
      %v5115 = vadd.f32 %v4845, %v5076
      %v5116 = vadd.f32 %v4846, %v5079
      %v5117 = vadd.f32 %v4847, %v5082
      %v5118 = vadd.f32 %v4848, %v5085
      %v5119 = vld [vmem:[%s4578 + $0x2] sm:$0xff]
      %v5120 = vld [vmem:[%s4578 + $0xa] sm:$0xff]
      %v5121 = vld [vmem:[%s4578 + $0x1a] sm:$0xff]
      %v5122 = vld [vmem:[%s4578 + $0x22] sm:$0xff]
      %v5123 = vld [vmem:[%s4578 + $0x32] sm:$0xff]
      %v5124 = vld [vmem:[%s4578 + $0x3a] sm:$0xff]
      %v5125 = vld [vmem:[%s4578 + $0x4a] sm:$0xff]
      %v5126 = vld [vmem:[%s4578 + $0x52] sm:$0xff]
      %v5127 = vld [vmem:[%s4578 + $0x62] sm:$0xff]
      %v5128 = vld [vmem:[%s4578 + $0x6a] sm:$0xff]
      %v5129 = vld [vmem:[%s4578 + $0x7a] sm:$0xff]
      %v5130 = vld [vmem:[%s4578 + $0x82] sm:$0xff]
      %v5131 = vld [vmem:[%s4578 + $0x92] sm:$0xff]
      %v5132 = vld [vmem:[%s4578 + $0x9a] sm:$0xff]
      %v5133 = vld [vmem:[%s4578 + $0xaa] sm:$0xff]
      %v5134 = vld [vmem:[%s4578 + $0xb2] sm:$0xff]
      %v5135 = vld [vmem:[%s4578 + $0xc2] sm:$0xff]
      %v5136 = vld [vmem:[%s4578 + $0xca] sm:$0xff]
      %v5137 = vld [vmem:[%s4578 + $0xda] sm:$0xff]
      %v5138 = vld [vmem:[%s4578 + $0xe2] sm:$0xff]
      %v5139 = vld [vmem:[%s4578 + $0xf2] sm:$0xff]
      %v5140 = vld [vmem:[%s4578 + $0xfa] sm:$0xff]
      %v5141 = vld [vmem:[%s4578 + $0x10a] sm:$0xff]
      %v5142 = vld [vmem:[%s4578 + $0x112] sm:$0xff]
      %v5143 = vld [vmem:[%s4578 + $0x122] sm:$0xff]
      %v5144 = vld [vmem:[%s4578 + $0x12a] sm:$0xff]
      %v5145 = vld [vmem:[%s4578 + $0x13a] sm:$0xff]
      %v5146 = vld [vmem:[%s4578 + $0x142] sm:$0xff]
      %v5147 = vld [vmem:[%s4578 + $0x152] sm:$0xff]
      %v5148 = vld [vmem:[%s4578 + $0x15a] sm:$0xff]
      %v5149 = vld [vmem:[%s4578 + $0x16a] sm:$0xff]
      %v5150 = vld [vmem:[%s4578 + $0x172] sm:$0xff]
      %s5151 = scalar_lea.vmem %s4, 32
      %v5152 = vld [vmem:[%s5151] sm:$0xf]
      %v5154 = vsel %vm2868, %v5119, 0
      %v5157 = vsel %vm2868, %v5120, 0
      %v5160 = vsel %vm2868, %v5121, 0
      %v5163 = vsel %vm2868, %v5122, 0
      %v5166 = vsel %vm2868, %v5123, 0
      %v5169 = vsel %vm2868, %v5124, 0
      %v5172 = vsel %vm2868, %v5125, 0
      %v5175 = vsel %vm2868, %v5126, 0
      %v5178 = vsel %vm2868, %v5127, 0
      %v5181 = vsel %vm2868, %v5128, 0
      %v5184 = vsel %vm2868, %v5129, 0
      %v5187 = vsel %vm2868, %v5130, 0
      %v5190 = vsel %vm2868, %v5131, 0
      %v5193 = vsel %vm2868, %v5132, 0
      %v5196 = vsel %vm2868, %v5133, 0
      %v5199 = vsel %vm2868, %v5134, 0
      %v5202 = vsel %vm2868, %v5135, 0
      %v5205 = vsel %vm2868, %v5136, 0
      %v5208 = vsel %vm2868, %v5137, 0
      %v5211 = vsel %vm2868, %v5138, 0
      %v5214 = vsel %vm2868, %v5139, 0
      %v5217 = vsel %vm2868, %v5140, 0
      %v5220 = vsel %vm2868, %v5141, 0
      %v5223 = vsel %vm2868, %v5142, 0
      %v5226 = vsel %vm2868, %v5143, 0
      %v5229 = vsel %vm2868, %v5144, 0
      %v5232 = vsel %vm2868, %v5145, 0
      %v5235 = vsel %vm2868, %v5146, 0
      %v5238 = vsel %vm2868, %v5147, 0
      %v5241 = vsel %vm2868, %v5148, 0
      %v5244 = vsel %vm2868, %v5149, 0
      %v5247 = vsel %vm2868, %v5150, 0
      %v5250 = vsel %vm3185, %v5152, 0
      %5252 = vmatpush.bf16.msra.mxu0 0
      %5253 = vmatpush.bf16.msra.mxu0 0
      %5254 = vmatpush.bf16.msra.mxu0 0
      %5255 = vmatpush.bf16.msra.mxu0 0
      %5256 = vmatpush.bf16.msra.mxu0 0
      %5257 = vmatpush.bf16.msra.mxu0 0
      %5258 = vmatpush.bf16.msra.mxu0 0
      %5259 = vmatpush.bf16.msra.mxu0 %v5250
      %5260 = vmatmul.f32.gmra.mxu0 %v5154
      %v5261 = vpop.f32.mrf.mxu0
      %v5262 = vadd.f32 0.0, %v5261
      %5263 = vmatmul.f32.gmra.mxu0 %v5157
      %v5264 = vpop.f32.mrf.mxu0
      %v5265 = vadd.f32 0.0, %v5264
      %5266 = vmatmul.f32.gmra.mxu0 %v5160
      %v5267 = vpop.f32.mrf.mxu0
      %v5268 = vadd.f32 0.0, %v5267
      %5269 = vmatmul.f32.gmra.mxu0 %v5163
      %v5270 = vpop.f32.mrf.mxu0
      %v5271 = vadd.f32 0.0, %v5270
      %5272 = vmatmul.f32.gmra.mxu0 %v5166
      %v5273 = vpop.f32.mrf.mxu0
      %v5274 = vadd.f32 0.0, %v5273
      %5275 = vmatmul.f32.gmra.mxu0 %v5169
      %v5276 = vpop.f32.mrf.mxu0
      %v5277 = vadd.f32 0.0, %v5276
      %5278 = vmatmul.f32.gmra.mxu0 %v5172
      %v5279 = vpop.f32.mrf.mxu0
      %v5280 = vadd.f32 0.0, %v5279
      %5281 = vmatmul.f32.gmra.mxu0 %v5175
      %v5282 = vpop.f32.mrf.mxu0
      %v5283 = vadd.f32 0.0, %v5282
      %5284 = vmatmul.f32.gmra.mxu0 %v5178
      %v5285 = vpop.f32.mrf.mxu0
      %v5286 = vadd.f32 0.0, %v5285
      %5287 = vmatmul.f32.gmra.mxu0 %v5181
      %v5288 = vpop.f32.mrf.mxu0
      %v5289 = vadd.f32 0.0, %v5288
      %5290 = vmatmul.f32.gmra.mxu0 %v5184
      %v5291 = vpop.f32.mrf.mxu0
      %v5292 = vadd.f32 0.0, %v5291
      %5293 = vmatmul.f32.gmra.mxu0 %v5187
      %v5294 = vpop.f32.mrf.mxu0
      %v5295 = vadd.f32 0.0, %v5294
      %5296 = vmatmul.f32.gmra.mxu0 %v5190
      %v5297 = vpop.f32.mrf.mxu0
      %v5298 = vadd.f32 0.0, %v5297
      %5299 = vmatmul.f32.gmra.mxu0 %v5193
      %v5300 = vpop.f32.mrf.mxu0
      %v5301 = vadd.f32 0.0, %v5300
      %5302 = vmatmul.f32.gmra.mxu0 %v5196
      %v5303 = vpop.f32.mrf.mxu0
      %v5304 = vadd.f32 0.0, %v5303
      %5305 = vmatmul.f32.gmra.mxu0 %v5199
      %v5306 = vpop.f32.mrf.mxu0
      %v5307 = vadd.f32 0.0, %v5306
      %5308 = vmatmul.f32.gmra.mxu0 %v5202
      %v5309 = vpop.f32.mrf.mxu0
      %v5310 = vadd.f32 0.0, %v5309
      %5311 = vmatmul.f32.gmra.mxu0 %v5205
      %v5312 = vpop.f32.mrf.mxu0
      %v5313 = vadd.f32 0.0, %v5312
      %5314 = vmatmul.f32.gmra.mxu0 %v5208
      %v5315 = vpop.f32.mrf.mxu0
      %v5316 = vadd.f32 0.0, %v5315
      %5317 = vmatmul.f32.gmra.mxu0 %v5211
      %v5318 = vpop.f32.mrf.mxu0
      %v5319 = vadd.f32 0.0, %v5318
      %5320 = vmatmul.f32.gmra.mxu0 %v5214
      %v5321 = vpop.f32.mrf.mxu0
      %v5322 = vadd.f32 0.0, %v5321
      %5323 = vmatmul.f32.gmra.mxu0 %v5217
      %v5324 = vpop.f32.mrf.mxu0
      %v5325 = vadd.f32 0.0, %v5324
      %5326 = vmatmul.f32.gmra.mxu0 %v5220
      %v5327 = vpop.f32.mrf.mxu0
      %v5328 = vadd.f32 0.0, %v5327
      %5329 = vmatmul.f32.gmra.mxu0 %v5223
      %v5330 = vpop.f32.mrf.mxu0
      %v5331 = vadd.f32 0.0, %v5330
      %5332 = vmatmul.f32.gmra.mxu0 %v5226
      %v5333 = vpop.f32.mrf.mxu0
      %v5334 = vadd.f32 0.0, %v5333
      %5335 = vmatmul.f32.gmra.mxu0 %v5229
      %v5336 = vpop.f32.mrf.mxu0
      %v5337 = vadd.f32 0.0, %v5336
      %5338 = vmatmul.f32.gmra.mxu0 %v5232
      %v5339 = vpop.f32.mrf.mxu0
      %v5340 = vadd.f32 0.0, %v5339
      %5341 = vmatmul.f32.gmra.mxu0 %v5235
      %v5342 = vpop.f32.mrf.mxu0
      %v5343 = vadd.f32 0.0, %v5342
      %5344 = vmatmul.f32.gmra.mxu0 %v5238
      %v5345 = vpop.f32.mrf.mxu0
      %v5346 = vadd.f32 0.0, %v5345
      %5347 = vmatmul.f32.gmra.mxu0 %v5241
      %v5348 = vpop.f32.mrf.mxu0
      %v5349 = vadd.f32 0.0, %v5348
      %5350 = vmatmul.f32.gmra.mxu0 %v5244
      %v5351 = vpop.f32.mrf.mxu0
      %v5352 = vadd.f32 0.0, %v5351
      %5353 = vmatmul.f32.gmra.mxu0 %v5247
      %v5354 = vpop.f32.mrf.mxu0
      %v5355 = vadd.f32 0.0, %v5354
      %5356 = vdwg.mxu0
      %v5357 = vadd.f32 %v5087, %v5262
      %v5358 = vadd.f32 %v5088, %v5265
      %v5359 = vadd.f32 %v5089, %v5268
      %v5360 = vadd.f32 %v5090, %v5271
      %v5361 = vadd.f32 %v5091, %v5274
      %v5362 = vadd.f32 %v5092, %v5277
      %v5363 = vadd.f32 %v5093, %v5280
      %v5364 = vadd.f32 %v5094, %v5283
      %v5365 = vadd.f32 %v5095, %v5286
      %v5366 = vadd.f32 %v5096, %v5289
      %v5367 = vadd.f32 %v5097, %v5292
      %v5368 = vadd.f32 %v5098, %v5295
      %v5369 = vadd.f32 %v5099, %v5298
      %v5370 = vadd.f32 %v5100, %v5301
      %v5371 = vadd.f32 %v5101, %v5304
      %v5372 = vadd.f32 %v5102, %v5307
      %v5373 = vadd.f32 %v5103, %v5310
      %v5374 = vadd.f32 %v5104, %v5313
      %v5375 = vadd.f32 %v5105, %v5316
      %v5376 = vadd.f32 %v5106, %v5319
      %v5377 = vadd.f32 %v5107, %v5322
      %v5378 = vadd.f32 %v5108, %v5325
      %v5379 = vadd.f32 %v5109, %v5328
      %v5380 = vadd.f32 %v5110, %v5331
      %v5381 = vadd.f32 %v5111, %v5334
      %v5382 = vadd.f32 %v5112, %v5337
      %v5383 = vadd.f32 %v5113, %v5340
      %v5384 = vadd.f32 %v5114, %v5343
      %v5385 = vadd.f32 %v5115, %v5346
      %v5386 = vadd.f32 %v5116, %v5349
      %v5387 = vadd.f32 %v5117, %v5352
      %v5388 = vadd.f32 %v5118, %v5355
      %v5389 = vld [vmem:[%s5] sm:$0x1]
      %v5391 = vperm.slane %v5389, 0
      %v5393 = vmul.f32 %v5357, %v5391
      %v5394 = vmul.f32 %v5358, %v5391
      %v5395 = vmul.f32 %v5359, %v5391
      %v5396 = vmul.f32 %v5360, %v5391
      %v5397 = vmul.f32 %v5361, %v5391
      %v5398 = vmul.f32 %v5362, %v5391
      %v5399 = vmul.f32 %v5363, %v5391
      %v5400 = vmul.f32 %v5364, %v5391
      %v5401 = vmul.f32 %v5365, %v5391
      %v5402 = vmul.f32 %v5366, %v5391
      %v5403 = vmul.f32 %v5367, %v5391
      %v5404 = vmul.f32 %v5368, %v5391
      %v5405 = vmul.f32 %v5369, %v5391
      %v5406 = vmul.f32 %v5370, %v5391
      %v5407 = vmul.f32 %v5371, %v5391
      %v5408 = vmul.f32 %v5372, %v5391
      %v5409 = vmul.f32 %v5373, %v5391
      %v5410 = vmul.f32 %v5374, %v5391
      %v5411 = vmul.f32 %v5375, %v5391
      %v5412 = vmul.f32 %v5376, %v5391
      %v5413 = vmul.f32 %v5377, %v5391
      %v5414 = vmul.f32 %v5378, %v5391
      %v5415 = vmul.f32 %v5379, %v5391
      %v5416 = vmul.f32 %v5380, %v5391
      %v5417 = vmul.f32 %v5381, %v5391
      %v5418 = vmul.f32 %v5382, %v5391
      %v5419 = vmul.f32 %v5383, %v5391
      %v5420 = vmul.f32 %v5384, %v5391
      %v5421 = vmul.f32 %v5385, %v5391
      %v5422 = vmul.f32 %v5386, %v5391
      %v5423 = vmul.f32 %v5387, %v5391
      %v5424 = vmul.f32 %v5388, %v5391
      %v5425 = vld [vmem:[%s6] sm:$0x1]
      %v5427 = vperm.slane %v5425, 0
      %v5429 = vadd.f32 %v5393, %v5427
      %v5430 = vadd.f32 %v5394, %v5427
      %v5431 = vadd.f32 %v5395, %v5427
      %v5432 = vadd.f32 %v5396, %v5427
      %v5433 = vadd.f32 %v5397, %v5427
      %v5434 = vadd.f32 %v5398, %v5427
      %v5435 = vadd.f32 %v5399, %v5427
      %v5436 = vadd.f32 %v5400, %v5427
      %v5437 = vadd.f32 %v5401, %v5427
      %v5438 = vadd.f32 %v5402, %v5427
      %v5439 = vadd.f32 %v5403, %v5427
      %v5440 = vadd.f32 %v5404, %v5427
      %v5441 = vadd.f32 %v5405, %v5427
      %v5442 = vadd.f32 %v5406, %v5427
      %v5443 = vadd.f32 %v5407, %v5427
      %v5444 = vadd.f32 %v5408, %v5427
      %v5445 = vadd.f32 %v5409, %v5427
      %v5446 = vadd.f32 %v5410, %v5427
      %v5447 = vadd.f32 %v5411, %v5427
      %v5448 = vadd.f32 %v5412, %v5427
      %v5449 = vadd.f32 %v5413, %v5427
      %v5450 = vadd.f32 %v5414, %v5427
      %v5451 = vadd.f32 %v5415, %v5427
      %v5452 = vadd.f32 %v5416, %v5427
      %v5453 = vadd.f32 %v5417, %v5427
      %v5454 = vadd.f32 %v5418, %v5427
      %v5455 = vadd.f32 %v5419, %v5427
      %v5456 = vadd.f32 %v5420, %v5427
      %v5457 = vadd.f32 %v5421, %v5427
      %v5458 = vadd.f32 %v5422, %v5427
      %v5459 = vadd.f32 %v5423, %v5427
      %v5460 = vadd.f32 %v5424, %v5427
      %v5461 = vxor.u32 %v5429, 2147483648
      %v5462 = vxor.u32 %v5430, 2147483648
      %v5463 = vxor.u32 %v5431, 2147483648
      %v5464 = vxor.u32 %v5432, 2147483648
      %v5465 = vxor.u32 %v5433, 2147483648
      %v5466 = vxor.u32 %v5434, 2147483648
      %v5467 = vxor.u32 %v5435, 2147483648
      %v5468 = vxor.u32 %v5436, 2147483648
      %v5469 = vxor.u32 %v5437, 2147483648
      %v5470 = vxor.u32 %v5438, 2147483648
      %v5471 = vxor.u32 %v5439, 2147483648
      %v5472 = vxor.u32 %v5440, 2147483648
      %v5473 = vxor.u32 %v5441, 2147483648
      %v5474 = vxor.u32 %v5442, 2147483648
      %v5475 = vxor.u32 %v5443, 2147483648
      %v5476 = vxor.u32 %v5444, 2147483648
      %v5477 = vxor.u32 %v5445, 2147483648
      %v5478 = vxor.u32 %v5446, 2147483648
      %v5479 = vxor.u32 %v5447, 2147483648
      %v5480 = vxor.u32 %v5448, 2147483648
      %v5481 = vxor.u32 %v5449, 2147483648
      %v5482 = vxor.u32 %v5450, 2147483648
      %v5483 = vxor.u32 %v5451, 2147483648
      %v5484 = vxor.u32 %v5452, 2147483648
      %v5485 = vxor.u32 %v5453, 2147483648
      %v5486 = vxor.u32 %v5454, 2147483648
      %v5487 = vxor.u32 %v5455, 2147483648
      %v5488 = vxor.u32 %v5456, 2147483648
      %v5489 = vxor.u32 %v5457, 2147483648
      %v5490 = vxor.u32 %v5458, 2147483648
      %v5491 = vxor.u32 %v5459, 2147483648
      %v5492 = vxor.u32 %v5460, 2147483648
      %v5493 = vmul.f32 %v5461, 1.442695
      %v5494 = vpow.pop %v5493
      %v5495 = vmul.f32 %v5462, 1.442695
      %v5496 = vpow.pop %v5495
      %v5497 = vmul.f32 %v5463, 1.442695
      %v5498 = vpow.pop %v5497
      %v5499 = vmul.f32 %v5464, 1.442695
      %v5500 = vpow.pop %v5499
      %v5501 = vmul.f32 %v5465, 1.442695
      %v5502 = vpow.pop %v5501
      %v5503 = vmul.f32 %v5466, 1.442695
      %v5504 = vpow.pop %v5503
      %v5505 = vmul.f32 %v5467, 1.442695
      %v5506 = vpow.pop %v5505
      %v5507 = vmul.f32 %v5468, 1.442695
      %v5508 = vpow.pop %v5507
      %v5509 = vmul.f32 %v5469, 1.442695
      %v5510 = vpow.pop %v5509
      %v5511 = vmul.f32 %v5470, 1.442695
      %v5512 = vpow.pop %v5511
      %v5513 = vmul.f32 %v5471, 1.442695
      %v5514 = vpow.pop %v5513
      %v5515 = vmul.f32 %v5472, 1.442695
      %v5516 = vpow.pop %v5515
      %v5517 = vmul.f32 %v5473, 1.442695
      %v5518 = vpow.pop %v5517
      %v5519 = vmul.f32 %v5474, 1.442695
      %v5520 = vpow.pop %v5519
      %v5521 = vmul.f32 %v5475, 1.442695
      %v5522 = vpow.pop %v5521
      %v5523 = vmul.f32 %v5476, 1.442695
      %v5524 = vpow.pop %v5523
      %v5525 = vmul.f32 %v5477, 1.442695
      %v5526 = vpow.pop %v5525
      %v5527 = vmul.f32 %v5478, 1.442695
      %v5528 = vpow.pop %v5527
      %v5529 = vmul.f32 %v5479, 1.442695
      %v5530 = vpow.pop %v5529
      %v5531 = vmul.f32 %v5480, 1.442695
      %v5532 = vpow.pop %v5531
      %v5533 = vmul.f32 %v5481, 1.442695
      %v5534 = vpow.pop %v5533
      %v5535 = vmul.f32 %v5482, 1.442695
      %v5536 = vpow.pop %v5535
      %v5537 = vmul.f32 %v5483, 1.442695
      %v5538 = vpow.pop %v5537
      %v5539 = vmul.f32 %v5484, 1.442695
      %v5540 = vpow.pop %v5539
      %v5541 = vmul.f32 %v5485, 1.442695
      %v5542 = vpow.pop %v5541
      %v5543 = vmul.f32 %v5486, 1.442695
      %v5544 = vpow.pop %v5543
      %v5545 = vmul.f32 %v5487, 1.442695
      %v5546 = vpow.pop %v5545
      %v5547 = vmul.f32 %v5488, 1.442695
      %v5548 = vpow.pop %v5547
      %v5549 = vmul.f32 %v5489, 1.442695
      %v5550 = vpow.pop %v5549
      %v5551 = vmul.f32 %v5490, 1.442695
      %v5552 = vpow.pop %v5551
      %v5553 = vmul.f32 %v5491, 1.442695
      %v5554 = vpow.pop %v5553
      %v5555 = vmul.f32 %v5492, 1.442695
      %v5556 = vpow.pop %v5555
      %v5557 = vadd.f32 %v5494, 1.0
      %v5558 = vadd.f32 %v5496, 1.0
      %v5559 = vadd.f32 %v5498, 1.0
      %v5560 = vadd.f32 %v5500, 1.0
      %v5561 = vadd.f32 %v5502, 1.0
      %v5562 = vadd.f32 %v5504, 1.0
      %v5563 = vadd.f32 %v5506, 1.0
      %v5564 = vadd.f32 %v5508, 1.0
      %v5565 = vadd.f32 %v5510, 1.0
      %v5566 = vadd.f32 %v5512, 1.0
      %v5567 = vadd.f32 %v5514, 1.0
      %v5568 = vadd.f32 %v5516, 1.0
      %v5569 = vadd.f32 %v5518, 1.0
      %v5570 = vadd.f32 %v5520, 1.0
      %v5571 = vadd.f32 %v5522, 1.0
      %v5572 = vadd.f32 %v5524, 1.0
      %v5573 = vadd.f32 %v5526, 1.0
      %v5574 = vadd.f32 %v5528, 1.0
      %v5575 = vadd.f32 %v5530, 1.0
      %v5576 = vadd.f32 %v5532, 1.0
      %v5577 = vadd.f32 %v5534, 1.0
      %v5578 = vadd.f32 %v5536, 1.0
      %v5579 = vadd.f32 %v5538, 1.0
      %v5580 = vadd.f32 %v5540, 1.0
      %v5581 = vadd.f32 %v5542, 1.0
      %v5582 = vadd.f32 %v5544, 1.0
      %v5583 = vadd.f32 %v5546, 1.0
      %v5584 = vadd.f32 %v5548, 1.0
      %v5585 = vadd.f32 %v5550, 1.0
      %v5586 = vadd.f32 %v5552, 1.0
      %v5587 = vadd.f32 %v5554, 1.0
      %v5588 = vadd.f32 %v5556, 1.0
      %v5589 = vrcp.pop %v5557
      %v5590 = vmul.f32 %v5557, %v5589
      %v5591 = vsub.f32 1.0, %v5590
      %v5592 = vmul.f32 %v5589, %v5591
      %v5593 = vadd.f32 %v5589, %v5592
      %vm5594 = vweird.f32 %v5557
      %vm5595 = vweird.f32 %v5589
      %vm5596 = vmor %vm5594, %vm5595
      %v5597 = vsel %vm5596, %v5589, %v5593
      %v5598 = vand.u32 2147483647, %v5557
      %vm5599 = vcmp.eq.f32.partialorder %v5598, 8.507059e+37
      %v5600 = vand.u32 %v5557, 2147483648
      %v5601 = vor.u32 1.1754944e-38, %v5600
      %v5602 = vsel %vm5599, %v5601, %v5597
      %v5603 = vmul.f32 1.0, %v5602
      %v5604 = vrcp.pop %v5558
      %v5605 = vmul.f32 %v5558, %v5604
      %v5606 = vsub.f32 1.0, %v5605
      %v5607 = vmul.f32 %v5604, %v5606
      %v5608 = vadd.f32 %v5604, %v5607
      %vm5609 = vweird.f32 %v5558
      %vm5610 = vweird.f32 %v5604
      %vm5611 = vmor %vm5609, %vm5610
      %v5612 = vsel %vm5611, %v5604, %v5608
      %v5613 = vand.u32 2147483647, %v5558
      %vm5614 = vcmp.eq.f32.partialorder %v5613, 8.507059e+37
      %v5615 = vand.u32 %v5558, 2147483648
      %v5616 = vor.u32 1.1754944e-38, %v5615
      %v5617 = vsel %vm5614, %v5616, %v5612
      %v5618 = vmul.f32 1.0, %v5617
      %v5619 = vrcp.pop %v5559
      %v5620 = vmul.f32 %v5559, %v5619
      %v5621 = vsub.f32 1.0, %v5620
      %v5622 = vmul.f32 %v5619, %v5621
      %v5623 = vadd.f32 %v5619, %v5622
      %vm5624 = vweird.f32 %v5559
      %vm5625 = vweird.f32 %v5619
      %vm5626 = vmor %vm5624, %vm5625
      %v5627 = vsel %vm5626, %v5619, %v5623
      %v5628 = vand.u32 2147483647, %v5559
      %vm5629 = vcmp.eq.f32.partialorder %v5628, 8.507059e+37
      %v5630 = vand.u32 %v5559, 2147483648
      %v5631 = vor.u32 1.1754944e-38, %v5630
      %v5632 = vsel %vm5629, %v5631, %v5627
      %v5633 = vmul.f32 1.0, %v5632
      %v5634 = vrcp.pop %v5560
      %v5635 = vmul.f32 %v5560, %v5634
      %v5636 = vsub.f32 1.0, %v5635
      %v5637 = vmul.f32 %v5634, %v5636
      %v5638 = vadd.f32 %v5634, %v5637
      %vm5639 = vweird.f32 %v5560
      %vm5640 = vweird.f32 %v5634
      %vm5641 = vmor %vm5639, %vm5640
      %v5642 = vsel %vm5641, %v5634, %v5638
      %v5643 = vand.u32 2147483647, %v5560
      %vm5644 = vcmp.eq.f32.partialorder %v5643, 8.507059e+37
      %v5645 = vand.u32 %v5560, 2147483648
      %v5646 = vor.u32 1.1754944e-38, %v5645
      %v5647 = vsel %vm5644, %v5646, %v5642
      %v5648 = vmul.f32 1.0, %v5647
      %v5649 = vrcp.pop %v5561
      %v5650 = vmul.f32 %v5561, %v5649
      %v5651 = vsub.f32 1.0, %v5650
      %v5652 = vmul.f32 %v5649, %v5651
      %v5653 = vadd.f32 %v5649, %v5652
      %vm5654 = vweird.f32 %v5561
      %vm5655 = vweird.f32 %v5649
      %vm5656 = vmor %vm5654, %vm5655
      %v5657 = vsel %vm5656, %v5649, %v5653
      %v5658 = vand.u32 2147483647, %v5561
      %vm5659 = vcmp.eq.f32.partialorder %v5658, 8.507059e+37
      %v5660 = vand.u32 %v5561, 2147483648
      %v5661 = vor.u32 1.1754944e-38, %v5660
      %v5662 = vsel %vm5659, %v5661, %v5657
      %v5663 = vmul.f32 1.0, %v5662
      %v5664 = vrcp.pop %v5562
      %v5665 = vmul.f32 %v5562, %v5664
      %v5666 = vsub.f32 1.0, %v5665
      %v5667 = vmul.f32 %v5664, %v5666
      %v5668 = vadd.f32 %v5664, %v5667
      %vm5669 = vweird.f32 %v5562
      %vm5670 = vweird.f32 %v5664
      %vm5671 = vmor %vm5669, %vm5670
      %v5672 = vsel %vm5671, %v5664, %v5668
      %v5673 = vand.u32 2147483647, %v5562
      %vm5674 = vcmp.eq.f32.partialorder %v5673, 8.507059e+37
      %v5675 = vand.u32 %v5562, 2147483648
      %v5676 = vor.u32 1.1754944e-38, %v5675
      %v5677 = vsel %vm5674, %v5676, %v5672
      %v5678 = vmul.f32 1.0, %v5677
      %v5679 = vrcp.pop %v5563
      %v5680 = vmul.f32 %v5563, %v5679
      %v5681 = vsub.f32 1.0, %v5680
      %v5682 = vmul.f32 %v5679, %v5681
      %v5683 = vadd.f32 %v5679, %v5682
      %vm5684 = vweird.f32 %v5563
      %vm5685 = vweird.f32 %v5679
      %vm5686 = vmor %vm5684, %vm5685
      %v5687 = vsel %vm5686, %v5679, %v5683
      %v5688 = vand.u32 2147483647, %v5563
      %vm5689 = vcmp.eq.f32.partialorder %v5688, 8.507059e+37
      %v5690 = vand.u32 %v5563, 2147483648
      %v5691 = vor.u32 1.1754944e-38, %v5690
      %v5692 = vsel %vm5689, %v5691, %v5687
      %v5693 = vmul.f32 1.0, %v5692
      %v5694 = vrcp.pop %v5564
      %v5695 = vmul.f32 %v5564, %v5694
      %v5696 = vsub.f32 1.0, %v5695
      %v5697 = vmul.f32 %v5694, %v5696
      %v5698 = vadd.f32 %v5694, %v5697
      %vm5699 = vweird.f32 %v5564
      %vm5700 = vweird.f32 %v5694
      %vm5701 = vmor %vm5699, %vm5700
      %v5702 = vsel %vm5701, %v5694, %v5698
      %v5703 = vand.u32 2147483647, %v5564
      %vm5704 = vcmp.eq.f32.partialorder %v5703, 8.507059e+37
      %v5705 = vand.u32 %v5564, 2147483648
      %v5706 = vor.u32 1.1754944e-38, %v5705
      %v5707 = vsel %vm5704, %v5706, %v5702
      %v5708 = vmul.f32 1.0, %v5707
      %v5709 = vrcp.pop %v5565
      %v5710 = vmul.f32 %v5565, %v5709
      %v5711 = vsub.f32 1.0, %v5710
      %v5712 = vmul.f32 %v5709, %v5711
      %v5713 = vadd.f32 %v5709, %v5712
      %vm5714 = vweird.f32 %v5565
      %vm5715 = vweird.f32 %v5709
      %vm5716 = vmor %vm5714, %vm5715
      %v5717 = vsel %vm5716, %v5709, %v5713
      %v5718 = vand.u32 2147483647, %v5565
      %vm5719 = vcmp.eq.f32.partialorder %v5718, 8.507059e+37
      %v5720 = vand.u32 %v5565, 2147483648
      %v5721 = vor.u32 1.1754944e-38, %v5720
      %v5722 = vsel %vm5719, %v5721, %v5717
      %v5723 = vmul.f32 1.0, %v5722
      %v5724 = vrcp.pop %v5566
      %v5725 = vmul.f32 %v5566, %v5724
      %v5726 = vsub.f32 1.0, %v5725
      %v5727 = vmul.f32 %v5724, %v5726
      %v5728 = vadd.f32 %v5724, %v5727
      %vm5729 = vweird.f32 %v5566
      %vm5730 = vweird.f32 %v5724
      %vm5731 = vmor %vm5729, %vm5730
      %v5732 = vsel %vm5731, %v5724, %v5728
      %v5733 = vand.u32 2147483647, %v5566
      %vm5734 = vcmp.eq.f32.partialorder %v5733, 8.507059e+37
      %v5735 = vand.u32 %v5566, 2147483648
      %v5736 = vor.u32 1.1754944e-38, %v5735
      %v5737 = vsel %vm5734, %v5736, %v5732
      %v5738 = vmul.f32 1.0, %v5737
      %v5739 = vrcp.pop %v5567
      %v5740 = vmul.f32 %v5567, %v5739
      %v5741 = vsub.f32 1.0, %v5740
      %v5742 = vmul.f32 %v5739, %v5741
      %v5743 = vadd.f32 %v5739, %v5742
      %vm5744 = vweird.f32 %v5567
      %vm5745 = vweird.f32 %v5739
      %vm5746 = vmor %vm5744, %vm5745
      %v5747 = vsel %vm5746, %v5739, %v5743
      %v5748 = vand.u32 2147483647, %v5567
      %vm5749 = vcmp.eq.f32.partialorder %v5748, 8.507059e+37
      %v5750 = vand.u32 %v5567, 2147483648
      %v5751 = vor.u32 1.1754944e-38, %v5750
      %v5752 = vsel %vm5749, %v5751, %v5747
      %v5753 = vmul.f32 1.0, %v5752
      %v5754 = vrcp.pop %v5568
      %v5755 = vmul.f32 %v5568, %v5754
      %v5756 = vsub.f32 1.0, %v5755
      %v5757 = vmul.f32 %v5754, %v5756
      %v5758 = vadd.f32 %v5754, %v5757
      %vm5759 = vweird.f32 %v5568
      %vm5760 = vweird.f32 %v5754
      %vm5761 = vmor %vm5759, %vm5760
      %v5762 = vsel %vm5761, %v5754, %v5758
      %v5763 = vand.u32 2147483647, %v5568
      %vm5764 = vcmp.eq.f32.partialorder %v5763, 8.507059e+37
      %v5765 = vand.u32 %v5568, 2147483648
      %v5766 = vor.u32 1.1754944e-38, %v5765
      %v5767 = vsel %vm5764, %v5766, %v5762
      %v5768 = vmul.f32 1.0, %v5767
      %v5769 = vrcp.pop %v5569
      %v5770 = vmul.f32 %v5569, %v5769
      %v5771 = vsub.f32 1.0, %v5770
      %v5772 = vmul.f32 %v5769, %v5771
      %v5773 = vadd.f32 %v5769, %v5772
      %vm5774 = vweird.f32 %v5569
      %vm5775 = vweird.f32 %v5769
      %vm5776 = vmor %vm5774, %vm5775
      %v5777 = vsel %vm5776, %v5769, %v5773
      %v5778 = vand.u32 2147483647, %v5569
      %vm5779 = vcmp.eq.f32.partialorder %v5778, 8.507059e+37
      %v5780 = vand.u32 %v5569, 2147483648
      %v5781 = vor.u32 1.1754944e-38, %v5780
      %v5782 = vsel %vm5779, %v5781, %v5777
      %v5783 = vmul.f32 1.0, %v5782
      %v5784 = vrcp.pop %v5570
      %v5785 = vmul.f32 %v5570, %v5784
      %v5786 = vsub.f32 1.0, %v5785
      %v5787 = vmul.f32 %v5784, %v5786
      %v5788 = vadd.f32 %v5784, %v5787
      %vm5789 = vweird.f32 %v5570
      %vm5790 = vweird.f32 %v5784
      %vm5791 = vmor %vm5789, %vm5790
      %v5792 = vsel %vm5791, %v5784, %v5788
      %v5793 = vand.u32 2147483647, %v5570
      %vm5794 = vcmp.eq.f32.partialorder %v5793, 8.507059e+37
      %v5795 = vand.u32 %v5570, 2147483648
      %v5796 = vor.u32 1.1754944e-38, %v5795
      %v5797 = vsel %vm5794, %v5796, %v5792
      %v5798 = vmul.f32 1.0, %v5797
      %v5799 = vrcp.pop %v5571
      %v5800 = vmul.f32 %v5571, %v5799
      %v5801 = vsub.f32 1.0, %v5800
      %v5802 = vmul.f32 %v5799, %v5801
      %v5803 = vadd.f32 %v5799, %v5802
      %vm5804 = vweird.f32 %v5571
      %vm5805 = vweird.f32 %v5799
      %vm5806 = vmor %vm5804, %vm5805
      %v5807 = vsel %vm5806, %v5799, %v5803
      %v5808 = vand.u32 2147483647, %v5571
      %vm5809 = vcmp.eq.f32.partialorder %v5808, 8.507059e+37
      %v5810 = vand.u32 %v5571, 2147483648
      %v5811 = vor.u32 1.1754944e-38, %v5810
      %v5812 = vsel %vm5809, %v5811, %v5807
      %v5813 = vmul.f32 1.0, %v5812
      %v5814 = vrcp.pop %v5572
      %v5815 = vmul.f32 %v5572, %v5814
      %v5816 = vsub.f32 1.0, %v5815
      %v5817 = vmul.f32 %v5814, %v5816
      %v5818 = vadd.f32 %v5814, %v5817
      %vm5819 = vweird.f32 %v5572
      %vm5820 = vweird.f32 %v5814
      %vm5821 = vmor %vm5819, %vm5820
      %v5822 = vsel %vm5821, %v5814, %v5818
      %v5823 = vand.u32 2147483647, %v5572
      %vm5824 = vcmp.eq.f32.partialorder %v5823, 8.507059e+37
      %v5825 = vand.u32 %v5572, 2147483648
      %v5826 = vor.u32 1.1754944e-38, %v5825
      %v5827 = vsel %vm5824, %v5826, %v5822
      %v5828 = vmul.f32 1.0, %v5827
      %v5829 = vrcp.pop %v5573
      %v5830 = vmul.f32 %v5573, %v5829
      %v5831 = vsub.f32 1.0, %v5830
      %v5832 = vmul.f32 %v5829, %v5831
      %v5833 = vadd.f32 %v5829, %v5832
      %vm5834 = vweird.f32 %v5573
      %vm5835 = vweird.f32 %v5829
      %vm5836 = vmor %vm5834, %vm5835
      %v5837 = vsel %vm5836, %v5829, %v5833
      %v5838 = vand.u32 2147483647, %v5573
      %vm5839 = vcmp.eq.f32.partialorder %v5838, 8.507059e+37
      %v5840 = vand.u32 %v5573, 2147483648
      %v5841 = vor.u32 1.1754944e-38, %v5840
      %v5842 = vsel %vm5839, %v5841, %v5837
      %v5843 = vmul.f32 1.0, %v5842
      %v5844 = vrcp.pop %v5574
      %v5845 = vmul.f32 %v5574, %v5844
      %v5846 = vsub.f32 1.0, %v5845
      %v5847 = vmul.f32 %v5844, %v5846
      %v5848 = vadd.f32 %v5844, %v5847
      %vm5849 = vweird.f32 %v5574
      %vm5850 = vweird.f32 %v5844
      %vm5851 = vmor %vm5849, %vm5850
      %v5852 = vsel %vm5851, %v5844, %v5848
      %v5853 = vand.u32 2147483647, %v5574
      %vm5854 = vcmp.eq.f32.partialorder %v5853, 8.507059e+37
      %v5855 = vand.u32 %v5574, 2147483648
      %v5856 = vor.u32 1.1754944e-38, %v5855
      %v5857 = vsel %vm5854, %v5856, %v5852
      %v5858 = vmul.f32 1.0, %v5857
      %v5859 = vrcp.pop %v5575
      %v5860 = vmul.f32 %v5575, %v5859
      %v5861 = vsub.f32 1.0, %v5860
      %v5862 = vmul.f32 %v5859, %v5861
      %v5863 = vadd.f32 %v5859, %v5862
      %vm5864 = vweird.f32 %v5575
      %vm5865 = vweird.f32 %v5859
      %vm5866 = vmor %vm5864, %vm5865
      %v5867 = vsel %vm5866, %v5859, %v5863
      %v5868 = vand.u32 2147483647, %v5575
      %vm5869 = vcmp.eq.f32.partialorder %v5868, 8.507059e+37
      %v5870 = vand.u32 %v5575, 2147483648
      %v5871 = vor.u32 1.1754944e-38, %v5870
      %v5872 = vsel %vm5869, %v5871, %v5867
      %v5873 = vmul.f32 1.0, %v5872
      %v5874 = vrcp.pop %v5576
      %v5875 = vmul.f32 %v5576, %v5874
      %v5876 = vsub.f32 1.0, %v5875
      %v5877 = vmul.f32 %v5874, %v5876
      %v5878 = vadd.f32 %v5874, %v5877
      %vm5879 = vweird.f32 %v5576
      %vm5880 = vweird.f32 %v5874
      %vm5881 = vmor %vm5879, %vm5880
      %v5882 = vsel %vm5881, %v5874, %v5878
      %v5883 = vand.u32 2147483647, %v5576
      %vm5884 = vcmp.eq.f32.partialorder %v5883, 8.507059e+37
      %v5885 = vand.u32 %v5576, 2147483648
      %v5886 = vor.u32 1.1754944e-38, %v5885
      %v5887 = vsel %vm5884, %v5886, %v5882
      %v5888 = vmul.f32 1.0, %v5887
      %v5889 = vrcp.pop %v5577
      %v5890 = vmul.f32 %v5577, %v5889
      %v5891 = vsub.f32 1.0, %v5890
      %v5892 = vmul.f32 %v5889, %v5891
      %v5893 = vadd.f32 %v5889, %v5892
      %vm5894 = vweird.f32 %v5577
      %vm5895 = vweird.f32 %v5889
      %vm5896 = vmor %vm5894, %vm5895
      %v5897 = vsel %vm5896, %v5889, %v5893
      %v5898 = vand.u32 2147483647, %v5577
      %vm5899 = vcmp.eq.f32.partialorder %v5898, 8.507059e+37
      %v5900 = vand.u32 %v5577, 2147483648
      %v5901 = vor.u32 1.1754944e-38, %v5900
      %v5902 = vsel %vm5899, %v5901, %v5897
      %v5903 = vmul.f32 1.0, %v5902
      %v5904 = vrcp.pop %v5578
      %v5905 = vmul.f32 %v5578, %v5904
      %v5906 = vsub.f32 1.0, %v5905
      %v5907 = vmul.f32 %v5904, %v5906
      %v5908 = vadd.f32 %v5904, %v5907
      %vm5909 = vweird.f32 %v5578
      %vm5910 = vweird.f32 %v5904
      %vm5911 = vmor %vm5909, %vm5910
      %v5912 = vsel %vm5911, %v5904, %v5908
      %v5913 = vand.u32 2147483647, %v5578
      %vm5914 = vcmp.eq.f32.partialorder %v5913, 8.507059e+37
      %v5915 = vand.u32 %v5578, 2147483648
      %v5916 = vor.u32 1.1754944e-38, %v5915
      %v5917 = vsel %vm5914, %v5916, %v5912
      %v5918 = vmul.f32 1.0, %v5917
      %v5919 = vrcp.pop %v5579
      %v5920 = vmul.f32 %v5579, %v5919
      %v5921 = vsub.f32 1.0, %v5920
      %v5922 = vmul.f32 %v5919, %v5921
      %v5923 = vadd.f32 %v5919, %v5922
      %vm5924 = vweird.f32 %v5579
      %vm5925 = vweird.f32 %v5919
      %vm5926 = vmor %vm5924, %vm5925
      %v5927 = vsel %vm5926, %v5919, %v5923
      %v5928 = vand.u32 2147483647, %v5579
      %vm5929 = vcmp.eq.f32.partialorder %v5928, 8.507059e+37
      %v5930 = vand.u32 %v5579, 2147483648
      %v5931 = vor.u32 1.1754944e-38, %v5930
      %v5932 = vsel %vm5929, %v5931, %v5927
      %v5933 = vmul.f32 1.0, %v5932
      %v5934 = vrcp.pop %v5580
      %v5935 = vmul.f32 %v5580, %v5934
      %v5936 = vsub.f32 1.0, %v5935
      %v5937 = vmul.f32 %v5934, %v5936
      %v5938 = vadd.f32 %v5934, %v5937
      %vm5939 = vweird.f32 %v5580
      %vm5940 = vweird.f32 %v5934
      %vm5941 = vmor %vm5939, %vm5940
      %v5942 = vsel %vm5941, %v5934, %v5938
      %v5943 = vand.u32 2147483647, %v5580
      %vm5944 = vcmp.eq.f32.partialorder %v5943, 8.507059e+37
      %v5945 = vand.u32 %v5580, 2147483648
      %v5946 = vor.u32 1.1754944e-38, %v5945
      %v5947 = vsel %vm5944, %v5946, %v5942
      %v5948 = vmul.f32 1.0, %v5947
      %v5949 = vrcp.pop %v5581
      %v5950 = vmul.f32 %v5581, %v5949
      %v5951 = vsub.f32 1.0, %v5950
      %v5952 = vmul.f32 %v5949, %v5951
      %v5953 = vadd.f32 %v5949, %v5952
      %vm5954 = vweird.f32 %v5581
      %vm5955 = vweird.f32 %v5949
      %vm5956 = vmor %vm5954, %vm5955
      %v5957 = vsel %vm5956, %v5949, %v5953
      %v5958 = vand.u32 2147483647, %v5581
      %vm5959 = vcmp.eq.f32.partialorder %v5958, 8.507059e+37
      %v5960 = vand.u32 %v5581, 2147483648
      %v5961 = vor.u32 1.1754944e-38, %v5960
      %v5962 = vsel %vm5959, %v5961, %v5957
      %v5963 = vmul.f32 1.0, %v5962
      %v5964 = vrcp.pop %v5582
      %v5965 = vmul.f32 %v5582, %v5964
      %v5966 = vsub.f32 1.0, %v5965
      %v5967 = vmul.f32 %v5964, %v5966
      %v5968 = vadd.f32 %v5964, %v5967
      %vm5969 = vweird.f32 %v5582
      %vm5970 = vweird.f32 %v5964
      %vm5971 = vmor %vm5969, %vm5970
      %v5972 = vsel %vm5971, %v5964, %v5968
      %v5973 = vand.u32 2147483647, %v5582
      %vm5974 = vcmp.eq.f32.partialorder %v5973, 8.507059e+37
      %v5975 = vand.u32 %v5582, 2147483648
      %v5976 = vor.u32 1.1754944e-38, %v5975
      %v5977 = vsel %vm5974, %v5976, %v5972
      %v5978 = vmul.f32 1.0, %v5977
      %v5979 = vrcp.pop %v5583
      %v5980 = vmul.f32 %v5583, %v5979
      %v5981 = vsub.f32 1.0, %v5980
      %v5982 = vmul.f32 %v5979, %v5981
      %v5983 = vadd.f32 %v5979, %v5982
      %vm5984 = vweird.f32 %v5583
      %vm5985 = vweird.f32 %v5979
      %vm5986 = vmor %vm5984, %vm5985
      %v5987 = vsel %vm5986, %v5979, %v5983
      %v5988 = vand.u32 2147483647, %v5583
      %vm5989 = vcmp.eq.f32.partialorder %v5988, 8.507059e+37
      %v5990 = vand.u32 %v5583, 2147483648
      %v5991 = vor.u32 1.1754944e-38, %v5990
      %v5992 = vsel %vm5989, %v5991, %v5987
      %v5993 = vmul.f32 1.0, %v5992
      %v5994 = vrcp.pop %v5584
      %v5995 = vmul.f32 %v5584, %v5994
      %v5996 = vsub.f32 1.0, %v5995
      %v5997 = vmul.f32 %v5994, %v5996
      %v5998 = vadd.f32 %v5994, %v5997
      %vm5999 = vweird.f32 %v5584
      %vm6000 = vweird.f32 %v5994
      %vm6001 = vmor %vm5999, %vm6000
      %v6002 = vsel %vm6001, %v5994, %v5998
      %v6003 = vand.u32 2147483647, %v5584
      %vm6004 = vcmp.eq.f32.partialorder %v6003, 8.507059e+37
      %v6005 = vand.u32 %v5584, 2147483648
      %v6006 = vor.u32 1.1754944e-38, %v6005
      %v6007 = vsel %vm6004, %v6006, %v6002
      %v6008 = vmul.f32 1.0, %v6007
      %v6009 = vrcp.pop %v5585
      %v6010 = vmul.f32 %v5585, %v6009
      %v6011 = vsub.f32 1.0, %v6010
      %v6012 = vmul.f32 %v6009, %v6011
      %v6013 = vadd.f32 %v6009, %v6012
      %vm6014 = vweird.f32 %v5585
      %vm6015 = vweird.f32 %v6009
      %vm6016 = vmor %vm6014, %vm6015
      %v6017 = vsel %vm6016, %v6009, %v6013
      %v6018 = vand.u32 2147483647, %v5585
      %vm6019 = vcmp.eq.f32.partialorder %v6018, 8.507059e+37
      %v6020 = vand.u32 %v5585, 2147483648
      %v6021 = vor.u32 1.1754944e-38, %v6020
      %v6022 = vsel %vm6019, %v6021, %v6017
      %v6023 = vmul.f32 1.0, %v6022
      %v6024 = vrcp.pop %v5586
      %v6025 = vmul.f32 %v5586, %v6024
      %v6026 = vsub.f32 1.0, %v6025
      %v6027 = vmul.f32 %v6024, %v6026
      %v6028 = vadd.f32 %v6024, %v6027
      %vm6029 = vweird.f32 %v5586
      %vm6030 = vweird.f32 %v6024
      %vm6031 = vmor %vm6029, %vm6030
      %v6032 = vsel %vm6031, %v6024, %v6028
      %v6033 = vand.u32 2147483647, %v5586
      %vm6034 = vcmp.eq.f32.partialorder %v6033, 8.507059e+37
      %v6035 = vand.u32 %v5586, 2147483648
      %v6036 = vor.u32 1.1754944e-38, %v6035
      %v6037 = vsel %vm6034, %v6036, %v6032
      %v6038 = vmul.f32 1.0, %v6037
      %v6039 = vrcp.pop %v5587
      %v6040 = vmul.f32 %v5587, %v6039
      %v6041 = vsub.f32 1.0, %v6040
      %v6042 = vmul.f32 %v6039, %v6041
      %v6043 = vadd.f32 %v6039, %v6042
      %vm6044 = vweird.f32 %v5587
      %vm6045 = vweird.f32 %v6039
      %vm6046 = vmor %vm6044, %vm6045
      %v6047 = vsel %vm6046, %v6039, %v6043
      %v6048 = vand.u32 2147483647, %v5587
      %vm6049 = vcmp.eq.f32.partialorder %v6048, 8.507059e+37
      %v6050 = vand.u32 %v5587, 2147483648
      %v6051 = vor.u32 1.1754944e-38, %v6050
      %v6052 = vsel %vm6049, %v6051, %v6047
      %v6053 = vmul.f32 1.0, %v6052
      %v6054 = vrcp.pop %v5588
      %v6055 = vmul.f32 %v5588, %v6054
      %v6056 = vsub.f32 1.0, %v6055
      %v6057 = vmul.f32 %v6054, %v6056
      %v6058 = vadd.f32 %v6054, %v6057
      %vm6059 = vweird.f32 %v5588
      %vm6060 = vweird.f32 %v6054
      %vm6061 = vmor %vm6059, %vm6060
      %v6062 = vsel %vm6061, %v6054, %v6058
      %v6063 = vand.u32 2147483647, %v5588
      %vm6064 = vcmp.eq.f32.partialorder %v6063, 8.507059e+37
      %v6065 = vand.u32 %v5588, 2147483648
      %v6066 = vor.u32 1.1754944e-38, %v6065
      %v6067 = vsel %vm6064, %v6066, %v6062
      %v6068 = vmul.f32 1.0, %v6067
      %v6069 = vmul.f32 %v5429, %v5603
      %v6070 = vmul.f32 %v5430, %v5618
      %v6071 = vmul.f32 %v5431, %v5633
      %v6072 = vmul.f32 %v5432, %v5648
      %v6073 = vmul.f32 %v5433, %v5663
      %v6074 = vmul.f32 %v5434, %v5678
      %v6075 = vmul.f32 %v5435, %v5693
      %v6076 = vmul.f32 %v5436, %v5708
      %v6077 = vmul.f32 %v5437, %v5723
      %v6078 = vmul.f32 %v5438, %v5738
      %v6079 = vmul.f32 %v5439, %v5753
      %v6080 = vmul.f32 %v5440, %v5768
      %v6081 = vmul.f32 %v5441, %v5783
      %v6082 = vmul.f32 %v5442, %v5798
      %v6083 = vmul.f32 %v5443, %v5813
      %v6084 = vmul.f32 %v5444, %v5828
      %v6085 = vmul.f32 %v5445, %v5843
      %v6086 = vmul.f32 %v5446, %v5858
      %v6087 = vmul.f32 %v5447, %v5873
      %v6088 = vmul.f32 %v5448, %v5888
      %v6089 = vmul.f32 %v5449, %v5903
      %v6090 = vmul.f32 %v5450, %v5918
      %v6091 = vmul.f32 %v5451, %v5933
      %v6092 = vmul.f32 %v5452, %v5948
      %v6093 = vmul.f32 %v5453, %v5963
      %v6094 = vmul.f32 %v5454, %v5978
      %v6095 = vmul.f32 %v5455, %v5993
      %v6096 = vmul.f32 %v5456, %v6008
      %v6097 = vmul.f32 %v5457, %v6023
      %v6098 = vmul.f32 %v5458, %v6038
      %v6099 = vmul.f32 %v5459, %v6053
      %v6100 = vmul.f32 %v5460, %v6068
      %v6101 = vpack.c.bf16 %v6069, %v6069
      %v6102 = vpack.c.bf16 %v6070, %v6070
      %v6103 = vpack.c.bf16 %v6071, %v6071
      %v6104 = vpack.c.bf16 %v6072, %v6072
      %v6105 = vpack.c.bf16 %v6073, %v6073
      %v6106 = vpack.c.bf16 %v6074, %v6074
      %v6107 = vpack.c.bf16 %v6075, %v6075
      %v6108 = vpack.c.bf16 %v6076, %v6076
      %v6109 = vpack.c.bf16 %v6077, %v6077
      %v6110 = vpack.c.bf16 %v6078, %v6078
      %v6111 = vpack.c.bf16 %v6079, %v6079
      %v6112 = vpack.c.bf16 %v6080, %v6080
      %v6113 = vpack.c.bf16 %v6081, %v6081
      %v6114 = vpack.c.bf16 %v6082, %v6082
      %v6115 = vpack.c.bf16 %v6083, %v6083
      %v6116 = vpack.c.bf16 %v6084, %v6084
      %v6117 = vpack.c.bf16 %v6085, %v6085
      %v6118 = vpack.c.bf16 %v6086, %v6086
      %v6119 = vpack.c.bf16 %v6087, %v6087
      %v6120 = vpack.c.bf16 %v6088, %v6088
      %v6121 = vpack.c.bf16 %v6089, %v6089
      %v6122 = vpack.c.bf16 %v6090, %v6090
      %v6123 = vpack.c.bf16 %v6091, %v6091
      %v6124 = vpack.c.bf16 %v6092, %v6092
      %v6125 = vpack.c.bf16 %v6093, %v6093
      %v6126 = vpack.c.bf16 %v6094, %v6094
      %v6127 = vpack.c.bf16 %v6095, %v6095
      %v6128 = vpack.c.bf16 %v6096, %v6096
      %v6129 = vpack.c.bf16 %v6097, %v6097
      %v6130 = vpack.c.bf16 %v6098, %v6098
      %v6131 = vpack.c.bf16 %v6099, %v6099
      %v6132 = vpack.c.bf16 %v6100, %v6100
      %vm6133 = vcmask 27648
      %6134 = vst.msk [vmem:[%s318] sm:$0xf] %vm6133, %v6101
      %6135 = vst.msk [vmem:[%s318 + $0x4] sm:$0xf] %vm6133, %v6102
      %6136 = vst.msk [vmem:[%s318 + $0x8] sm:$0xf] %vm6133, %v6103
      %6137 = vst.msk [vmem:[%s318 + $0xc] sm:$0xf] %vm6133, %v6104
      %6138 = vst.msk [vmem:[%s318 + $0x10] sm:$0xf] %vm6133, %v6105
      %6139 = vst.msk [vmem:[%s318 + $0x14] sm:$0xf] %vm6133, %v6106
      %6140 = vst.msk [vmem:[%s318 + $0x18] sm:$0xf] %vm6133, %v6107
      %6141 = vst.msk [vmem:[%s318 + $0x1c] sm:$0xf] %vm6133, %v6108
      %6142 = vst.msk [vmem:[%s318 + $0x20] sm:$0xf] %vm6133, %v6109
      %6143 = vst.msk [vmem:[%s318 + $0x24] sm:$0xf] %vm6133, %v6110
      %6144 = vst.msk [vmem:[%s318 + $0x28] sm:$0xf] %vm6133, %v6111
      %6145 = vst.msk [vmem:[%s318 + $0x2c] sm:$0xf] %vm6133, %v6112
      %6146 = vst.msk [vmem:[%s318 + $0x30] sm:$0xf] %vm6133, %v6113
      %6147 = vst.msk [vmem:[%s318 + $0x34] sm:$0xf] %vm6133, %v6114
      %6148 = vst.msk [vmem:[%s318 + $0x38] sm:$0xf] %vm6133, %v6115
      %6149 = vst.msk [vmem:[%s318 + $0x3c] sm:$0xf] %vm6133, %v6116
      %6150 = vst.msk [vmem:[%s318 + $0x40] sm:$0xf] %vm6133, %v6117
      %6151 = vst.msk [vmem:[%s318 + $0x44] sm:$0xf] %vm6133, %v6118
      %6152 = vst.msk [vmem:[%s318 + $0x48] sm:$0xf] %vm6133, %v6119
      %6153 = vst.msk [vmem:[%s318 + $0x4c] sm:$0xf] %vm6133, %v6120
      %6154 = vst.msk [vmem:[%s318 + $0x50] sm:$0xf] %vm6133, %v6121
      %6155 = vst.msk [vmem:[%s318 + $0x54] sm:$0xf] %vm6133, %v6122
      %6156 = vst.msk [vmem:[%s318 + $0x58] sm:$0xf] %vm6133, %v6123
      %6157 = vst.msk [vmem:[%s318 + $0x5c] sm:$0xf] %vm6133, %v6124
      %6158 = vst.msk [vmem:[%s318 + $0x60] sm:$0xf] %vm6133, %v6125
      %6159 = vst.msk [vmem:[%s318 + $0x64] sm:$0xf] %vm6133, %v6126
      %6160 = vst.msk [vmem:[%s318 + $0x68] sm:$0xf] %vm6133, %v6127
      %6161 = vst.msk [vmem:[%s318 + $0x6c] sm:$0xf] %vm6133, %v6128
      %6162 = vst.msk [vmem:[%s318 + $0x70] sm:$0xf] %vm6133, %v6129
      %6163 = vst.msk [vmem:[%s318 + $0x74] sm:$0xf] %vm6133, %v6130
      %6164 = vst.msk [vmem:[%s318 + $0x78] sm:$0xf] %vm6133, %v6131
      %6165 = vst.msk [vmem:[%s318 + $0x7c] sm:$0xf] %vm6133, %v6132
      %p6166 = scmp.lt.s32.totalorder %s20, 1
      %s6167 = scalar_select %p6166, %s20, 1
      %s6168 = smul.addr %s6167, 32
      %s6169 = smul.addr %s6168, 4
      %s6170 = scalar_lea.vmem %s7, %s6169
      %p6171 = scmp.lt.s32.totalorder %s20, 1
      %s6172 = scalar_select %p6171, %s20, 1
      %s6173 = smul.addr %s6172, 32
      %s6174 = smul.addr %s6173, 4
      %s6175 = scalar_lea.vmem %s8, %s6174
      // Predicated region
      $region49: #{tpu_custom_call.1} parent=47 // pred_check
        %p6176 = pneg %p190
      $region50: #{tpu_custom_call.1} parent=47 // pred_check_branch
        %6178 = sbr.rel (%p6176) target = $region52
      $region51: #{tpu_custom_call.1} parent=47 // pred_region
        _
      $region52: #{tpu_custom_call.1} parent=47 // pred_fallthru
        _
      // Predicated region
      $region53: #{tpu_custom_call.1} parent=47 // pred_check
        %p6179 = pneg %p216
      $region54: #{tpu_custom_call.1} parent=47 // pred_check_branch
        %6181 = sbr.rel (%p6179) target = $region56
      $region55: #{tpu_custom_call.1} parent=47 // pred_region
        _
      $region56: #{tpu_custom_call.1} parent=47 // pred_fallthru
        _
    $region48: #{tpu_custom_call.1} parent=5 // pred_fallthru
      _
    %p6182 = scmp.le.s32.totalorder 2, %s15
    // Predicated region
    $region57: #{tpu_custom_call.1} parent=5 // pred_check
      %p6183 = pneg %p6182
    $region58: #{tpu_custom_call.1} parent=5 // pred_check_branch
      %6185 = sbr.rel (%p6183) target = $region60
    $region59: #{tpu_custom_call.1} parent=5 // pred_region
      %s6186 = ssub.s32 %s15, 2
      // Predicated region
      $region61: #{tpu_custom_call.1} parent=59 // pred_check
        %p6187 = pneg %p196
      $region62: #{tpu_custom_call.1} parent=59 // pred_check_branch
        %6189 = sbr.rel (%p6187) target = $region64
      $region63: #{tpu_custom_call.1} parent=59 // pred_region
        %p6190 = scmp.lt.s32.totalorder %s21, 1
        %s6191 = scalar_select %p6190, %s21, 1
        %s6192 = smul.addr %s6191, 32
        %s6193 = smul.addr %s6192, 4
        %s6194 = scalar_lea.vmem %s7, %s6193
      $region64: #{tpu_custom_call.1} parent=59 // pred_fallthru
        _
      // Predicated region
      $region65: #{tpu_custom_call.1} parent=59 // pred_check
        %p6195 = pneg %p222
      $region66: #{tpu_custom_call.1} parent=59 // pred_check_branch
        %6197 = sbr.rel (%p6195) target = $region68
      $region67: #{tpu_custom_call.1} parent=59 // pred_region
        %p6198 = scmp.lt.s32.totalorder %s21, 1
        %s6199 = scalar_select %p6198, %s21, 1
        %s6200 = smul.addr %s6199, 32
        %s6201 = smul.addr %s6200, 4
        %s6202 = scalar_lea.vmem %s8, %s6201
      $region68: #{tpu_custom_call.1} parent=59 // pred_fallthru
        _
    $region60: #{tpu_custom_call.1} parent=5 // pred_fallthru
      _
  $region6: #{tpu_custom_call.1} parent=0 // loop_footer
    %s19 = sadd.s32 1, %s15
  $region7: #{tpu_custom_call.1} parent=0 // loop_footer_branch
    %14 = sbr.rel target = $region3
  $region8: #{tpu_custom_call.1} parent=0 // loop_exit
    _

</llo_original>
